<compile_context>
chip_gen: v7x
topology: tpu7x:2x2x1
jax: 0.10.0
libtpu: 0.0.40
codegen_flags: <defaults>
</compile_context>

<pallas_src>
import functools

import jax
import jax.numpy as jnp
import numpy as np
from jax.experimental import pallas as pl
from jax.experimental.pallas import tpu as pltpu


def _layernorm_f32(v, w, b, eps=1e-5):
    mu = jnp.mean(v, axis=-1, keepdims=True)
    var = jnp.mean(jnp.square(v - mu), axis=-1, keepdims=True)
    return (v - mu) * jax.lax.rsqrt(var + eps) * w + b


def _attn_block_kernel(x_ref, ln1w_ref, ln1b_ref,
                       wqkv_ref, bqkv_ref, wo_ref, bo_ref,
                       y_ref, *, n_head):
    """One grid step = a block of batch elements: y = x + out_proj(MHA(ln_1(x)))."""
    x = x_ref[...].astype(jnp.float32)                        # (B, L, D)
    B, L, D = x.shape
    hd = D // n_head
    scale = 1.0 / float(np.sqrt(hd))

    x2 = x.reshape(B * L, D)                                  # layout-preserving merge
    h = _layernorm_f32(x2, ln1w_ref[...], ln1b_ref[...])      # f32 elementwise
    # Fused QKV projection: bf16 MXU feeds, f32 accumulation.
    qkv = jnp.dot(h.astype(jnp.bfloat16), wqkv_ref[...],
                  preferred_element_type=jnp.float32) + bqkv_ref[...]    # (B*L, 3D)

    # Split heads once; (batch, head) becomes the single batch dim of one
    # batched einsum -- no per-head loops, no lane-axis concatenates.
    q = (qkv[:, 0 * D:1 * D] * scale).reshape(B, L, n_head, hd)   # scale folded here
    k = qkv[:, 1 * D:2 * D].reshape(B, L, n_head, hd)
    v = qkv[:, 2 * D:3 * D].reshape(B, L, n_head, hd)
    qh = q.transpose(0, 2, 1, 3).reshape(B * n_head, L, hd).astype(jnp.bfloat16)
    kh = k.transpose(0, 2, 1, 3).reshape(B * n_head, L, hd).astype(jnp.bfloat16)
    vh = v.transpose(0, 2, 1, 3).reshape(B * n_head, L, hd).astype(jnp.bfloat16)

    s = jnp.einsum('gld,gmd->glm', qh, kh,
                   preferred_element_type=jnp.float32)        # (B*H, L, L) f32
    m = jnp.max(s, axis=-1, keepdims=True)
    e = jnp.exp(s - m)
    denom = jnp.sum(e, axis=-1, keepdims=True)
    p = e * pl.reciprocal(denom, approx=True)                 # EUP, not VALU div
    ctx = jnp.einsum('glm,gmd->gld', p.astype(jnp.bfloat16), vh,
                     preferred_element_type=jnp.float32)      # (B*H, L, hd)
    ctx = ctx.reshape(B, n_head, L, hd).transpose(0, 2, 1, 3).reshape(B * L, D)

    attn = jnp.dot(ctx.astype(jnp.bfloat16), wo_ref[...],
                   preferred_element_type=jnp.float32) + bo_ref[...]
    y_ref[...] = (x2 + attn).reshape(B, L, D).astype(y_ref.dtype)
    # TODO(synk): for long L, replace the (L, L) score materialization with an
    # online-softmax (flash) loop over KV tiles on an "arbitrary" grid axis.


def _mlp_block_kernel(y_ref, ln2w_ref, ln2b_ref,
                      wfc_ref, bfc_ref, wproj_ref, bproj_ref,
                      o_ref):
    """One grid step = one row tile: o = y + c_proj(quick_gelu(c_fc(ln_2(y))))."""
    y = y_ref[...].astype(jnp.float32)                        # (TM, D)
    h = _layernorm_f32(y, ln2w_ref[...], ln2b_ref[...])
    hid = jnp.dot(h.astype(jnp.bfloat16), wfc_ref[...],
                  preferred_element_type=jnp.float32) + bfc_ref[...]     # (TM, 4D)
    hid = hid * jax.nn.sigmoid(1.702 * hid)                   # QuickGELU in f32
    mlp = jnp.dot(hid.astype(jnp.bfloat16), wproj_ref[...],
                  preferred_element_type=jnp.float32) + bproj_ref[...]   # (TM, D)
    o_ref[...] = (y + mlp).astype(o_ref.dtype)


def _pick_batch_block(N, L, D, n_head, budget_bytes=8 * 1024 * 1024):
    """Largest divisor of N whose per-step intermediates fit a VMEM budget."""
    best = 1
    for nb in range(1, N + 1):
        if N % nb:
            continue
        # scores (B*H, L, L) f32 + qkv (B*L, 3D) f32 + ctx (B*L, D) f32
        est = nb * n_head * L * L * 4 + nb * L * 3 * D * 4 + nb * L * D * 4
        if est <= budget_bytes:
            best = nb
    return best


def residual_attention_block(x, params, n_head, *, row_block=512,
                             vmem_limit_bytes=48 * 1024 * 1024):
    """x: (L, N, D) float32, same convention as the PyTorch module."""
    L, N, D = x.shape
    assert D % n_head == 0, "d_model must be divisible by n_head"
    f32, bf16 = jnp.float32, jnp.bfloat16

    # PyTorch stores Linear weights as (out, in); pre-transpose to (in, out)
    # and feed the MXU bf16.  Biases stay f32 (added once on the f32 acc).
    ln1_w = params['ln1_w'].reshape(1, D).astype(f32)
    ln1_b = params['ln1_b'].reshape(1, D).astype(f32)
    wqkv = params['in_proj_w'].T.astype(bf16)                 # (D, 3D)
    bqkv = params['in_proj_b'].reshape(1, 3 * D).astype(f32)
    wo = params['out_proj_w'].T.astype(bf16)                  # (D, D)
    bo = params['out_proj_b'].reshape(1, D).astype(f32)
    ln2_w = params['ln2_w'].reshape(1, D).astype(f32)
    ln2_b = params['ln2_b'].reshape(1, D).astype(f32)
    wfc = params['c_fc_w'].T.astype(bf16)                     # (D, 4D)
    bfc = params['c_fc_b'].reshape(1, 4 * D).astype(f32)
    wproj = params['c_proj_w'].T.astype(bf16)                 # (4D, D)
    bproj = params['c_proj_b'].reshape(1, D).astype(f32)

    # (L, N, D) -> (N, L, D): batch-major, so the attention grid takes whole
    # token slabs per step as aligned (nb, L, D) blocks.
    xt = jnp.transpose(x, (1, 0, 2))

    cparams = pltpu.CompilerParams(dimension_semantics=("parallel",),
                                   vmem_limit_bytes=vmem_limit_bytes)
    full = lambda shape: pl.BlockSpec(shape, lambda i: (0,) * len(shape))

    # ---- pass 1: x + out_proj(MHA(ln_1(x))), grid over batch blocks ---------
    nb = _pick_batch_block(N, L, D, n_head)
    attn_call = pl.pallas_call(
        functools.partial(_attn_block_kernel, n_head=n_head),
        out_shape=jax.ShapeDtypeStruct((N, L, D), x.dtype),
        grid_spec=pltpu.PrefetchScalarGridSpec(
            num_scalar_prefetch=0,
            grid=(N // nb,),
            in_specs=[
                pl.BlockSpec((nb, L, D), lambda n: (n, 0, 0)),
                full((1, D)), full((1, D)),                   # ln_1 w/b
                full((D, 3 * D)), full((1, 3 * D)),           # in_proj
                full((D, D)), full((1, D)),                   # out_proj
            ],
            out_specs=pl.BlockSpec((nb, L, D), lambda n: (n, 0, 0)),
        ),
        compiler_params=cparams,
    )
    y = attn_call(xt, ln1_w, ln1_b, wqkv, bqkv, wo, bo)       # (N, L, D)

    # ---- pass 2: x + c_proj(gelu(c_fc(ln_2(x)))), grid over row tiles -------
    rows = N * L
    tm = min(row_block, rows)
    if rows >= 8:
        tm = max(8, (tm // 8) * 8)                            # keep (8,128) alignment
    y2 = y.reshape(rows, D)                                   # free reshape
    mlp_call = pl.pallas_call(
        _mlp_block_kernel,
        out_shape=jax.ShapeDtypeStruct((rows, D), x.dtype),
        grid_spec=pltpu.PrefetchScalarGridSpec(
            num_scalar_prefetch=0,
            grid=(pl.cdiv(rows, tm),),
            in_specs=[
                pl.BlockSpec((tm, D), lambda i: (i, 0)),
                full((1, D)), full((1, D)),                   # ln_2 w/b
                full((D, 4 * D)), full((1, 4 * D)),           # c_fc
                full((4 * D, D)), full((1, D)),               # c_proj
            ],
            out_specs=pl.BlockSpec((tm, D), lambda i: (i, 0)),
        ),
        compiler_params=cparams,
    )
    out2 = mlp_call(y2, ln2_w, ln2_b, wfc, bfc, wproj, bproj)
    return out2.reshape(N, L, D).transpose(1, 0, 2)           # back to (L, N, D)


def ref_forward(x, params, n_head):
    """Pure-JAX f32 reference mirroring the PyTorch forward."""
    L, N, D = x.shape
    hd = D // n_head

    def ln(v, w, b):
        mu = v.mean(-1, keepdims=True)
        var = ((v - mu) ** 2).mean(-1, keepdims=True)
        return (v - mu) / jnp.sqrt(var + 1e-5) * w + b

    h = ln(x, params['ln1_w'], params['ln1_b'])
    qkv = h @ params['in_proj_w'].T + params['in_proj_b']     # (L, N, 3D)
    q, k, v = qkv[..., :D], qkv[..., D:2 * D], qkv[..., 2 * D:]

    def split(t):  # (L, N, D) -> (N, H, L, hd)
        return t.reshape(L, N, n_head, hd).transpose(1, 2, 0, 3)

    q, k, v = split(q), split(k), split(v)
    s = jnp.einsum('nhle,nhme->nhlm', q, k) / np.sqrt(hd)
    p = jax.nn.softmax(s, axis=-1)
    ctx = jnp.einsum('nhlm,nhme->nhle', p, v)
    ctx = ctx.transpose(2, 0, 1, 3).reshape(L, N, D)
    attn = ctx @ params['out_proj_w'].T + params['out_proj_b']
    x = x + attn

    h2 = ln(x, params['ln2_w'], params['ln2_b'])
    hid = h2 @ params['c_fc_w'].T + params['c_fc_b']
    hid = hid * jax.nn.sigmoid(1.702 * hid)
    mlp = hid @ params['c_proj_w'].T + params['c_proj_b']
    return x + mlp


if __name__ == "__main__":
    # Small but layout-realistic shapes: D a multiple of 128 lanes, rows % 8 == 0.
    L, N, D, H = 16, 4, 128, 4    # seq=16, batch=4, d_model=128, n_head=4

    key = jax.random.PRNGKey(0)
    ks = jax.random.split(key, 13)
    f32 = jnp.float32
    params = {
        'ln1_w':      1.0 + 0.1 * jax.random.normal(ks[0], (D,), f32),
        'ln1_b':      0.1 * jax.random.normal(ks[1], (D,), f32),
        'in_proj_w':  0.05 * jax.random.normal(ks[2], (3 * D, D), f32),
        'in_proj_b':  0.05 * jax.random.normal(ks[3], (3 * D,), f32),
        'out_proj_w': 0.05 * jax.random.normal(ks[4], (D, D), f32),
        'out_proj_b': 0.05 * jax.random.normal(ks[5], (D,), f32),
        'ln2_w':      1.0 + 0.1 * jax.random.normal(ks[6], (D,), f32),
        'ln2_b':      0.1 * jax.random.normal(ks[7], (D,), f32),
        'c_fc_w':     0.05 * jax.random.normal(ks[8], (4 * D, D), f32),
        'c_fc_b':     0.05 * jax.random.normal(ks[9], (4 * D,), f32),
        'c_proj_w':   0.05 * jax.random.normal(ks[10], (D, 4 * D), f32),
        'c_proj_b':   0.05 * jax.random.normal(ks[11], (D,), f32),
    }
    x = jax.random.normal(ks[12], (L, N, D), f32)

    out = jax.block_until_ready(residual_attention_block(x, params, H))
    ref = jax.block_until_ready(ref_forward(x, params, H))
    assert out.shape == (L, N, D)
    np.testing.assert_allclose(np.asarray(out), np.asarray(ref),
                               rtol=2e-2, atol=2e-2)
    print("KERNEL_OK")
</pallas_src>

<mosaic_0001>
module attributes {stable_mosaic.version = 11 : i64} {
  func.func @_attn_block_kernel(%arg0: i32, %arg1: memref<4x16x128xf32, #tpu.memory_space<vmem>>, %arg2: memref<1x128xf32, #tpu.memory_space<vmem>>, %arg3: memref<1x128xf32, #tpu.memory_space<vmem>>, %arg4: memref<128x384xbf16, #tpu.memory_space<vmem>>, %arg5: memref<1x384xf32, #tpu.memory_space<vmem>>, %arg6: memref<128x128xbf16, #tpu.memory_space<vmem>>, %arg7: memref<1x128xf32, #tpu.memory_space<vmem>>, %arg8: memref<4x16x128xf32, #tpu.memory_space<vmem>>) attributes {dimension_semantics = [#tpu.dimension_semantics<parallel>], iteration_bounds = array<i64: 1>, scalar_prefetch = 0 : i64, scratch_operands = 0 : i64, tpu.core_type = #tpu.core_type<tc>, window_params = [{transform_indices = @transform_0, window_bounds = array<i64: 4, 16, 128>}, {pipeline_mode = #tpu.pipeline_mode<synchronous>, transform_indices = @transform_1, window_bounds = array<i64: 1, 128>}, {pipeline_mode = #tpu.pipeline_mode<synchronous>, transform_indices = @transform_2, window_bounds = array<i64: 1, 128>}, {pipeline_mode = #tpu.pipeline_mode<synchronous>, transform_indices = @transform_3, window_bounds = array<i64: 128, 384>}, {pipeline_mode = #tpu.pipeline_mode<synchronous>, transform_indices = @transform_4, window_bounds = array<i64: 1, 384>}, {pipeline_mode = #tpu.pipeline_mode<synchronous>, transform_indices = @transform_5, window_bounds = array<i64: 128, 128>}, {pipeline_mode = #tpu.pipeline_mode<synchronous>, transform_indices = @transform_6, window_bounds = array<i64: 1, 128>}, {transform_indices = @transform_7, window_bounds = array<i64: 4, 16, 128>}]} {
    %c0 = arith.constant 0 : index
    %c0_0 = arith.constant 0 : index
    %c0_1 = arith.constant 0 : index
    %0 = vector.load %arg1[%c0, %c0_0, %c0_1] : memref<4x16x128xf32, #tpu.memory_space<vmem>>, vector<4x16x128xf32>
    %1 = vector.shape_cast %0 : vector<4x16x128xf32> to vector<64x128xf32>
    %c0_2 = arith.constant 0 : index
    %c0_3 = arith.constant 0 : index
    %2 = vector.load %arg2[%c0_2, %c0_3] : memref<1x128xf32, #tpu.memory_space<vmem>>, vector<1x128xf32>
    %c0_4 = arith.constant 0 : index
    %c0_5 = arith.constant 0 : index
    %3 = vector.load %arg3[%c0_4, %c0_5] : memref<1x128xf32, #tpu.memory_space<vmem>>, vector<1x128xf32>
    %cst = arith.constant dense<0.000000e+00> : vector<64xf32>
    %4 = vector.multi_reduction <add>, %1, %cst [1] : vector<64x128xf32> to vector<64xf32>
    %5 = vector.shape_cast %4 : vector<64xf32> to vector<64x1xf32>
    %cst_6 = arith.constant 1.280000e+02 : f32
    %6 = vector.broadcast %cst_6 : f32 to vector<64x1xf32>
    %7 = arith.divf %5, %6 : vector<64x1xf32>
    %8 = vector.broadcast %7 : vector<64x1xf32> to vector<64x128xf32>
    %9 = arith.subf %1, %8 : vector<64x128xf32>
    %10 = arith.mulf %9, %9 : vector<64x128xf32>
    %cst_7 = arith.constant dense<0.000000e+00> : vector<64xf32>
    %11 = vector.multi_reduction <add>, %10, %cst_7 [1] : vector<64x128xf32> to vector<64xf32>
    %12 = vector.shape_cast %11 : vector<64xf32> to vector<64x1xf32>
    %cst_8 = arith.constant 1.280000e+02 : f32
    %13 = vector.broadcast %cst_8 : f32 to vector<64x1xf32>
    %14 = arith.divf %12, %13 : vector<64x1xf32>
    %15 = vector.broadcast %7 : vector<64x1xf32> to vector<64x128xf32>
    %16 = arith.subf %1, %15 : vector<64x128xf32>
    %cst_9 = arith.constant 9.99999974E-6 : f32
    %17 = vector.broadcast %cst_9 : f32 to vector<64x1xf32>
    %18 = arith.addf %14, %17 : vector<64x1xf32>
    %19 = math.rsqrt %18 : vector<64x1xf32>
    %20 = vector.broadcast %19 : vector<64x1xf32> to vector<64x128xf32>
    %21 = arith.mulf %16, %20 : vector<64x128xf32>
    %22 = vector.broadcast %2 : vector<1x128xf32> to vector<64x128xf32>
    %23 = arith.mulf %21, %22 : vector<64x128xf32>
    %24 = vector.broadcast %3 : vector<1x128xf32> to vector<64x128xf32>
    %25 = arith.addf %23, %24 : vector<64x128xf32>
    %26 = arith.truncf %25 : vector<64x128xf32> to vector<64x128xbf16>
    %c0_10 = arith.constant 0 : index
    %c0_11 = arith.constant 0 : index
    %27 = vector.load %arg4[%c0_10, %c0_11] : memref<128x384xbf16, #tpu.memory_space<vmem>>, vector<128x384xbf16>
    %cst_12 = arith.constant dense<0.000000e+00> : vector<64x384xf32>
    %28 = tpu.matmul %26, %27, %cst_12 {dimension_numbers = #tpu.dot_dimension_numbers<[1], [0], [0], [1], [0, 0, 1, 1], [], []>} : vector<64x128xbf16>, vector<128x384xbf16>, vector<64x384xf32> -> vector<64x384xf32>
    %c0_13 = arith.constant 0 : index
    %c0_14 = arith.constant 0 : index
    %29 = vector.load %arg5[%c0_13, %c0_14] : memref<1x384xf32, #tpu.memory_space<vmem>>, vector<1x384xf32>
    %30 = vector.broadcast %29 : vector<1x384xf32> to vector<64x384xf32>
    %31 = arith.addf %28, %30 : vector<64x384xf32>
    %32 = vector.extract_strided_slice %31 {offsets = [0, 0], sizes = [64, 128], strides = [1, 1]} : vector<64x384xf32> to vector<64x128xf32>
    %cst_15 = arith.constant 0.176776692 : f32
    %33 = vector.broadcast %cst_15 : f32 to vector<64x128xf32>
    %34 = arith.mulf %32, %33 : vector<64x128xf32>
    %35 = vector.shape_cast %34 : vector<64x128xf32> to vector<4x16x4x32xf32>
    %36 = vector.extract_strided_slice %31 {offsets = [0, 128], sizes = [64, 128], strides = [1, 1]} : vector<64x384xf32> to vector<64x128xf32>
    %37 = vector.shape_cast %36 : vector<64x128xf32> to vector<4x16x4x32xf32>
    %38 = vector.extract_strided_slice %31 {offsets = [0, 256], sizes = [64, 128], strides = [1, 1]} : vector<64x384xf32> to vector<64x128xf32>
    %39 = vector.shape_cast %38 : vector<64x128xf32> to vector<4x16x4x32xf32>
    %40 = tpu.transpose %35, [0, 2, 1, 3] : vector<4x16x4x32xf32> -> vector<4x4x16x32xf32>
    %41 = vector.shape_cast %40 : vector<4x4x16x32xf32> to vector<16x16x32xf32>
    %42 = arith.truncf %41 : vector<16x16x32xf32> to vector<16x16x32xbf16>
    %43 = tpu.transpose %37, [0, 2, 1, 3] : vector<4x16x4x32xf32> -> vector<4x4x16x32xf32>
    %44 = vector.shape_cast %43 : vector<4x4x16x32xf32> to vector<16x16x32xf32>
    %45 = arith.truncf %44 : vector<16x16x32xf32> to vector<16x16x32xbf16>
    %46 = tpu.transpose %39, [0, 2, 1, 3] : vector<4x16x4x32xf32> -> vector<4x4x16x32xf32>
    %47 = vector.shape_cast %46 : vector<4x4x16x32xf32> to vector<16x16x32xf32>
    %48 = arith.truncf %47 : vector<16x16x32xf32> to vector<16x16x32xbf16>
    "tpu.trace_start"() <{level = 10 : i32, message = "gld,gmd->glm"}> : () -> ()
    %cst_16 = arith.constant dense<0.000000e+00> : vector<16x16x16xf32>
    %49 = tpu.matmul %42, %45, %cst_16 {dimension_numbers = #tpu.dot_dimension_numbers<[2], [2], [1], [1], [0, 0, 0, 1, 1, 1], [0], [0]>} : vector<16x16x32xbf16>, vector<16x16x32xbf16>, vector<16x16x16xf32> -> vector<16x16x16xf32>
    "tpu.trace_stop"() : () -> ()
    %cst_17 = arith.constant dense<0xFF800000> : vector<16x16xf32>
    %50 = vector.multi_reduction <maximumf>, %49, %cst_17 [2] : vector<16x16x16xf32> to vector<16x16xf32>
    %51 = vector.shape_cast %50 : vector<16x16xf32> to vector<16x16x1xf32>
    %52 = vector.broadcast %51 : vector<16x16x1xf32> to vector<16x16x16xf32>
    %53 = arith.subf %49, %52 : vector<16x16x16xf32>
    %54 = math.exp %53 : vector<16x16x16xf32>
    %cst_18 = arith.constant dense<0.000000e+00> : vector<16x16xf32>
    %55 = vector.multi_reduction <add>, %54, %cst_18 [2] : vector<16x16x16xf32> to vector<16x16xf32>
    %56 = vector.shape_cast %55 : vector<16x16xf32> to vector<16x16x1xf32>
    %57 = tpu.reciprocal %56 {approx = true} : vector<16x16x1xf32> -> vector<16x16x1xf32>
    %58 = vector.broadcast %57 : vector<16x16x1xf32> to vector<16x16x16xf32>
    %59 = arith.mulf %54, %58 : vector<16x16x16xf32>
    %60 = arith.truncf %59 : vector<16x16x16xf32> to vector<16x16x16xbf16>
    "tpu.trace_start"() <{level = 10 : i32, message = "glm,gmd->gld"}> : () -> ()
    %cst_19 = arith.constant dense<0.000000e+00> : vector<16x16x32xf32>
    %61 = tpu.matmul %60, %48, %cst_19 {dimension_numbers = #tpu.dot_dimension_numbers<[2], [1], [1], [2], [0, 0, 0, 1, 1, 2], [0], [0]>} : vector<16x16x16xbf16>, vector<16x16x32xbf16>, vector<16x16x32xf32> -> vector<16x16x32xf32>
    "tpu.trace_stop"() : () -> ()
    %62 = vector.shape_cast %61 : vector<16x16x32xf32> to vector<4x4x16x32xf32>
    %63 = tpu.transpose %62, [0, 2, 1, 3] : vector<4x4x16x32xf32> -> vector<4x16x4x32xf32>
    %64 = vector.shape_cast %63 : vector<4x16x4x32xf32> to vector<64x128xf32>
    %65 = arith.truncf %64 : vector<64x128xf32> to vector<64x128xbf16>
    %c0_20 = arith.constant 0 : index
    %c0_21 = arith.constant 0 : index
    %66 = vector.load %arg6[%c0_20, %c0_21] : memref<128x128xbf16, #tpu.memory_space<vmem>>, vector<128x128xbf16>
    %cst_22 = arith.constant dense<0.000000e+00> : vector<64x128xf32>
    %67 = tpu.matmul %65, %66, %cst_22 {dimension_numbers = #tpu.dot_dimension_numbers<[1], [0], [0], [1], [0, 0, 1, 1], [], []>} : vector<64x128xbf16>, vector<128x128xbf16>, vector<64x128xf32> -> vector<64x128xf32>
    %c0_23 = arith.constant 0 : index
    %c0_24 = arith.constant 0 : index
    %68 = vector.load %arg7[%c0_23, %c0_24] : memref<1x128xf32, #tpu.memory_space<vmem>>, vector<1x128xf32>
    %69 = vector.broadcast %68 : vector<1x128xf32> to vector<64x128xf32>
    %70 = arith.addf %67, %69 : vector<64x128xf32>
    %71 = arith.addf %1, %70 : vector<64x128xf32>
    %72 = vector.shape_cast %71 : vector<64x128xf32> to vector<4x16x128xf32>
    %c0_25 = arith.constant 0 : index
    %c0_26 = arith.constant 0 : index
    %c0_27 = arith.constant 0 : index
    %73 = vector.load %arg8[%c0_25, %c0_26, %c0_27] : memref<4x16x128xf32, #tpu.memory_space<vmem>>, vector<4x16x128xf32>
    tpu.vector_store %arg8[%c0_25, %c0_26, %c0_27], %72 {strides = array<i32>} : memref<4x16x128xf32, #tpu.memory_space<vmem>>, vector<4x16x128xf32>,
    return
  }
  func.func @transform_0(%arg0: i32) -> (i32, i32, i32) {
    %c0_i32 = arith.constant 0 : i32
    %c0_i32_0 = arith.constant 0 : i32
    %c0_i32_1 = arith.constant 0 : i32
    return %arg0, %c0_i32, %c0_i32_0 : i32, i32, i32
  }
  func.func @transform_1(%arg0: i32) -> (i32, i32) {
    %c0_i32 = arith.constant 0 : i32
    %c0_i32_0 = arith.constant 0 : i32
    %c0_i32_1 = arith.constant 0 : i32
    return %c0_i32, %c0_i32_0 : i32, i32
  }
  func.func @transform_2(%arg0: i32) -> (i32, i32) {
    %c0_i32 = arith.constant 0 : i32
    %c0_i32_0 = arith.constant 0 : i32
    %c0_i32_1 = arith.constant 0 : i32
    return %c0_i32, %c0_i32_0 : i32, i32
  }
  func.func @transform_3(%arg0: i32) -> (i32, i32) {
    %c0_i32 = arith.constant 0 : i32
    %c0_i32_0 = arith.constant 0 : i32
    %c0_i32_1 = arith.constant 0 : i32
    return %c0_i32, %c0_i32_0 : i32, i32
  }
  func.func @transform_4(%arg0: i32) -> (i32, i32) {
    %c0_i32 = arith.constant 0 : i32
    %c0_i32_0 = arith.constant 0 : i32
    %c0_i32_1 = arith.constant 0 : i32
    return %c0_i32, %c0_i32_0 : i32, i32
  }
  func.func @transform_5(%arg0: i32) -> (i32, i32) {
    %c0_i32 = arith.constant 0 : i32
    %c0_i32_0 = arith.constant 0 : i32
    %c0_i32_1 = arith.constant 0 : i32
    return %c0_i32, %c0_i32_0 : i32, i32
  }
  func.func @transform_6(%arg0: i32) -> (i32, i32) {
    %c0_i32 = arith.constant 0 : i32
    %c0_i32_0 = arith.constant 0 : i32
    %c0_i32_1 = arith.constant 0 : i32
    return %c0_i32, %c0_i32_0 : i32, i32
  }
  func.func @transform_7(%arg0: i32) -> (i32, i32, i32) {
    %c0_i32 = arith.constant 0 : i32
    %c0_i32_0 = arith.constant 0 : i32
    %c0_i32_1 = arith.constant 0 : i32
    return %arg0, %c0_i32, %c0_i32_0 : i32, i32, i32
  }
}

</mosaic_0001>

<llo_original>
// kernel: tpu_custom_call.1
$region0: #{tpu_custom_call.1}
  #allocation0 [shape = 'u32[]', space=smem, size = 0x4, offset = 0x4, fixed_abs, tag = 'smem constant byte address 0x4 - core index']
  #allocation1 [shape = 'u32[144,128]{1,0:T(1,128)}', space=vmem, size = 0x12000, scoped, tag = 'internal scratch']
  %s0 = inlined_call_operand.hbm [shape: f32[4,16,128], index: 0, kind: input, shape index: {}]
  %s1 = inlined_call_operand.vmem [shape: f32[1,128], index: 1, kind: input, shape index: {}]
  %s2 = inlined_call_operand.vmem [shape: f32[1,128], index: 2, kind: input, shape index: {}]
  %s3 = inlined_call_operand.hbm [shape: bf16[128,384], index: 3, kind: input, shape index: {}]
  %s4 = inlined_call_operand.vmem [shape: f32[1,384], index: 4, kind: input, shape index: {}]
  %s5 = inlined_call_operand.hbm [shape: bf16[128,128], index: 5, kind: input, shape index: {}]
  %s6 = inlined_call_operand.vmem [shape: f32[1,128], index: 6, kind: input, shape index: {}]
  %s7 = inlined_call_operand.hbm [shape: f32[4,16,128], index: 7, kind: output, shape index: {}]
  %s8 = sld [smem:[#allocation0]]
  $region50: #{tpu_custom_call.1} parent=0
    _
  %s10 = ssub.s32 1, %s8
  %s11 = scalar_select 0, %s10, %s8
  $region1: #{tpu_custom_call.1} parent=0
    #allocation2 [shape = 'u8[32768]{0}', space=vmem, size = 0x8000, scoped, tag = 'input window, operand 0, single buffered']
    #allocation3 [shape = 's32[1]{0}', space=sflag, size = 0x4, scoped, tag = 'scoped memory for tpu_custom_call.1']
    #allocation4 [shape = 's32[1]{0}', space=sflag, size = 0x4, scoped, tag = 'scoped memory for tpu_custom_call.1']
    #allocation5 [shape = 'u8[98304]{0}', space=vmem, size = 0x18000, scoped, tag = 'input window, operand 3, single buffered']
    #allocation6 [shape = 's32[1]{0}', space=sflag, size = 0x4, scoped, tag = 'scoped memory for tpu_custom_call.1']
    #allocation7 [shape = 'u8[32768]{0}', space=vmem, size = 0x8000, scoped, tag = 'input window, operand 5, single buffered']
    #allocation8 [shape = 'u8[32768]{0}', space=vmem, size = 0x8000, scoped, tag = 'output window, operand 0, single buffered']
    %12 = vsyncpa [#allocation3], 0
    %13 = vsyncpa [#allocation6], 0
    %14 = vsyncpa [#allocation4], 0
    // Predicated region
    $region2: #{tpu_custom_call.1} parent=1 // pred_check
      _
    $region3: #{tpu_custom_call.1} parent=1 // pred_check_branch
      %16 = sbr.rel (0) target = $region5
    $region4: #{tpu_custom_call.1} parent=1 // pred_region
      %s18 = ssub.s32 1024, 1024
      %19 = vsyncadd [#allocation3], %s18
      %s20 = sshll.u32 [#allocation2], 4
      %s21 = int_to_ptr.vmem [resolvable:$true] %s20
      %26 = dma.hbm_to_vmem [thread:$0]  %s0, 1024, %s21, [#allocation3], 128, 128, 8
    $region5: #{tpu_custom_call.1} parent=1 // pred_fallthru
      _
    // Predicated region
    $region6: #{tpu_custom_call.1} parent=1 // pred_check
      _
    $region7: #{tpu_custom_call.1} parent=1 // pred_check_branch
      %28 = sbr.rel (0) target = $region9
    $region8: #{tpu_custom_call.1} parent=1 // pred_region
      _
    $region9: #{tpu_custom_call.1} parent=1 // pred_fallthru
      _
    // Predicated region
    $region10: #{tpu_custom_call.1} parent=1 // pred_check
      _
    $region11: #{tpu_custom_call.1} parent=1 // pred_check_branch
      %30 = sbr.rel (0) target = $region13
    $region12: #{tpu_custom_call.1} parent=1 // pred_region
      _
    $region13: #{tpu_custom_call.1} parent=1 // pred_fallthru
      _
    // Predicated region
    $region14: #{tpu_custom_call.1} parent=1 // pred_check
      _
    $region15: #{tpu_custom_call.1} parent=1 // pred_check_branch
      %32 = sbr.rel (0) target = $region17
    $region16: #{tpu_custom_call.1} parent=1 // pred_region
      %s34 = ssub.s32 3072, 3072
      %35 = vsyncadd [#allocation6], %s34
      %s36 = sshll.u32 [#allocation5], 4
      %s37 = int_to_ptr.vmem [resolvable:$true] %s36
      %42 = dma.hbm_to_vmem [thread:$0]  %s3, 3072, %s37, [#allocation6], 192, 192, 12
    $region17: #{tpu_custom_call.1} parent=1 // pred_fallthru
      _
    // Predicated region
    $region18: #{tpu_custom_call.1} parent=1 // pred_check
      _
    $region19: #{tpu_custom_call.1} parent=1 // pred_check_branch
      %44 = sbr.rel (0) target = $region21
    $region20: #{tpu_custom_call.1} parent=1 // pred_region
      _
    $region21: #{tpu_custom_call.1} parent=1 // pred_fallthru
      _
    // Predicated region
    $region22: #{tpu_custom_call.1} parent=1 // pred_check
      _
    $region23: #{tpu_custom_call.1} parent=1 // pred_check_branch
      %46 = sbr.rel (0) target = $region25
    $region24: #{tpu_custom_call.1} parent=1 // pred_region
      %s48 = ssub.s32 1024, 1024
      %49 = vsyncadd [#allocation6], %s48
      %s50 = sshll.u32 [#allocation7], 4
      %s51 = int_to_ptr.vmem [resolvable:$true] %s50
      %56 = dma.hbm_to_vmem [thread:$0]  %s5, 1024, %s51, [#allocation6], 64, 64, 4
    $region25: #{tpu_custom_call.1} parent=1 // pred_fallthru
      _
    // Predicated region
    $region26: #{tpu_custom_call.1} parent=1 // pred_check
      _
    $region27: #{tpu_custom_call.1} parent=1 // pred_check_branch
      %58 = sbr.rel (0) target = $region29
    $region28: #{tpu_custom_call.1} parent=1 // pred_region
      _
    $region29: #{tpu_custom_call.1} parent=1 // pred_fallthru
      _
    // Predicated region
    $region30: #{tpu_custom_call.1} parent=1 // pred_check
      _
    $region31: #{tpu_custom_call.1} parent=1 // pred_check_branch
      %60 = sbr.rel (0) target = $region33
    $region32: #{tpu_custom_call.1} parent=1 // pred_region
      %61 = dma.done [#allocation3], 1024
    $region33: #{tpu_custom_call.1} parent=1 // pred_fallthru
      _
    // Predicated region
    $region34: #{tpu_custom_call.1} parent=1 // pred_check
      _
    $region35: #{tpu_custom_call.1} parent=1 // pred_check_branch
      %63 = sbr.rel (0) target = $region37
    $region36: #{tpu_custom_call.1} parent=1 // pred_region
      %64 = dma.done [#allocation6], 3072
    $region37: #{tpu_custom_call.1} parent=1 // pred_fallthru
      _
    // Predicated region
    $region38: #{tpu_custom_call.1} parent=1 // pred_check
      _
    $region39: #{tpu_custom_call.1} parent=1 // pred_check_branch
      %66 = sbr.rel (0) target = $region41
    $region40: #{tpu_custom_call.1} parent=1 // pred_region
      %67 = dma.done [#allocation6], 1024
    $region41: #{tpu_custom_call.1} parent=1 // pred_fallthru
      _
    %v69 = vld [vmem:[#allocation2] sm:$0xff]
    %v70 = vld [vmem:[#allocation2 + $0x8] sm:$0xff]
    %v71 = vld [vmem:[#allocation2 + $0x10] sm:$0xff]
    %v72 = vld [vmem:[#allocation2 + $0x18] sm:$0xff]
    %v73 = vld [vmem:[#allocation2 + $0x20] sm:$0xff]
    %v74 = vld [vmem:[#allocation2 + $0x28] sm:$0xff]
    %v75 = vld [vmem:[#allocation2 + $0x30] sm:$0xff]
    %v76 = vld [vmem:[#allocation2 + $0x38] sm:$0xff]
    %v77 = vld [vmem:[%s1] sm:$0x1]
    %v78 = vld [vmem:[%s2] sm:$0x1]
    %79 = vadd.xlane.f32.xlu0 %v69
    %v80 = vpop.xlane.xlu0 %79
    %81 = vadd.xlane.f32.xlu0 %v70
    %v82 = vpop.xlane.xlu0 %81
    %83 = vadd.xlane.f32.xlu0 %v71
    %v84 = vpop.xlane.xlu0 %83
    %85 = vadd.xlane.f32.xlu0 %v72
    %v86 = vpop.xlane.xlu0 %85
    %87 = vadd.xlane.f32.xlu0 %v73
    %v88 = vpop.xlane.xlu0 %87
    %89 = vadd.xlane.f32.xlu0 %v74
    %v90 = vpop.xlane.xlu0 %89
    %91 = vadd.xlane.f32.xlu0 %v75
    %v92 = vpop.xlane.xlu0 %91
    %93 = vadd.xlane.f32.xlu0 %v76
    %v94 = vpop.xlane.xlu0 %93
    %v95 = vrcp.pop 128.0
    %v96 = vmul.f32 %v80, %v95
    %v97 = vmul.f32 %v82, %v95
    %v98 = vmul.f32 %v84, %v95
    %v99 = vmul.f32 %v86, %v95
    %v100 = vmul.f32 %v88, %v95
    %v101 = vmul.f32 %v90, %v95
    %v102 = vmul.f32 %v92, %v95
    %v103 = vmul.f32 %v94, %v95
    %v104 = vsub.f32 %v69, %v96
    %v105 = vsub.f32 %v70, %v97
    %v106 = vsub.f32 %v71, %v98
    %v107 = vsub.f32 %v72, %v99
    %v108 = vsub.f32 %v73, %v100
    %v109 = vsub.f32 %v74, %v101
    %v110 = vsub.f32 %v75, %v102
    %v111 = vsub.f32 %v76, %v103
    %v112 = vmul.f32 %v104, %v104
    %v113 = vmul.f32 %v105, %v105
    %v114 = vmul.f32 %v106, %v106
    %v115 = vmul.f32 %v107, %v107
    %v116 = vmul.f32 %v108, %v108
    %v117 = vmul.f32 %v109, %v109
    %v118 = vmul.f32 %v110, %v110
    %v119 = vmul.f32 %v111, %v111
    %120 = vadd.xlane.f32.xlu0 %v112
    %v121 = vpop.xlane.xlu0 %120
    %122 = vadd.xlane.f32.xlu0 %v113
    %v123 = vpop.xlane.xlu0 %122
    %124 = vadd.xlane.f32.xlu0 %v114
    %v125 = vpop.xlane.xlu0 %124
    %126 = vadd.xlane.f32.xlu0 %v115
    %v127 = vpop.xlane.xlu0 %126
    %128 = vadd.xlane.f32.xlu0 %v116
    %v129 = vpop.xlane.xlu0 %128
    %130 = vadd.xlane.f32.xlu0 %v117
    %v131 = vpop.xlane.xlu0 %130
    %132 = vadd.xlane.f32.xlu0 %v118
    %v133 = vpop.xlane.xlu0 %132
    %134 = vadd.xlane.f32.xlu0 %v119
    %v135 = vpop.xlane.xlu0 %134
    %v136 = vmul.f32 %v121, %v95
    %v137 = vmul.f32 %v123, %v95
    %v138 = vmul.f32 %v125, %v95
    %v139 = vmul.f32 %v127, %v95
    %v140 = vmul.f32 %v129, %v95
    %v141 = vmul.f32 %v131, %v95
    %v142 = vmul.f32 %v133, %v95
    %v143 = vmul.f32 %v135, %v95
    %v144 = vadd.f32 %v136, 1e-05
    %v145 = vadd.f32 %v137, 1e-05
    %v146 = vadd.f32 %v138, 1e-05
    %v147 = vadd.f32 %v139, 1e-05
    %v148 = vadd.f32 %v140, 1e-05
    %v149 = vadd.f32 %v141, 1e-05
    %v150 = vadd.f32 %v142, 1e-05
    %v151 = vadd.f32 %v143, 1e-05
    %v152 = vrsqrt.pop %v144
    %v153 = vrsqrt.pop %v145
    %v154 = vrsqrt.pop %v146
    %v155 = vrsqrt.pop %v147
    %v156 = vrsqrt.pop %v148
    %v157 = vrsqrt.pop %v149
    %v158 = vrsqrt.pop %v150
    %v159 = vrsqrt.pop %v151
    %v160 = vmul.f32 %v104, %v152
    %v161 = vmul.f32 %v105, %v153
    %v162 = vmul.f32 %v106, %v154
    %v163 = vmul.f32 %v107, %v155
    %v164 = vmul.f32 %v108, %v156
    %v165 = vmul.f32 %v109, %v157
    %v166 = vmul.f32 %v110, %v158
    %v167 = vmul.f32 %v111, %v159
    %v169 = vlaneseq
    %v170 = vshrl.u32 %v169, 7
    %v171 = vsub.s32 0, %v170
    %v172 = vrot.slane %v77, %v171
    %v174 = vmul.f32 %v160, %v172
    %v175 = vmul.f32 %v161, %v172
    %v176 = vmul.f32 %v162, %v172
    %v177 = vmul.f32 %v163, %v172
    %v178 = vmul.f32 %v164, %v172
    %v179 = vmul.f32 %v165, %v172
    %v180 = vmul.f32 %v166, %v172
    %v181 = vmul.f32 %v167, %v172
    %v183 = vlaneseq
    %v184 = vshrl.u32 %v183, 7
    %v185 = vsub.s32 0, %v184
    %v186 = vrot.slane %v78, %v185
    %v188 = vadd.f32 %v174, %v186
    %v189 = vadd.f32 %v175, %v186
    %v190 = vadd.f32 %v176, %v186
    %v191 = vadd.f32 %v177, %v186
    %v192 = vadd.f32 %v178, %v186
    %v193 = vadd.f32 %v179, %v186
    %v194 = vadd.f32 %v180, %v186
    %v195 = vadd.f32 %v181, %v186
    %v196 = vpack.c.bf16 %v189, %v188
    %v197 = vpack.c.bf16 %v191, %v190
    %v198 = vpack.c.bf16 %v193, %v192
    %v199 = vpack.c.bf16 %v195, %v194
    %v200 = vld [vmem:[#allocation5] sm:$0xff]
    %v201 = vld [vmem:[#allocation5 + $0x8] sm:$0xf]
    %v202 = vld [vmem:[#allocation5 + $0xc] sm:$0xff]
    %v203 = vld [vmem:[#allocation5 + $0x14] sm:$0xf]
    %v204 = vld [vmem:[#allocation5 + $0x18] sm:$0xff]
    %v205 = vld [vmem:[#allocation5 + $0x20] sm:$0xf]
    %v206 = vld [vmem:[#allocation5 + $0x24] sm:$0xff]
    %v207 = vld [vmem:[#allocation5 + $0x2c] sm:$0xf]
    %v208 = vld [vmem:[#allocation5 + $0x30] sm:$0xff]
    %v209 = vld [vmem:[#allocation5 + $0x38] sm:$0xf]
    %v210 = vld [vmem:[#allocation5 + $0x3c] sm:$0xff]
    %v211 = vld [vmem:[#allocation5 + $0x44] sm:$0xf]
    %v212 = vld [vmem:[#allocation5 + $0x48] sm:$0xff]
    %v213 = vld [vmem:[#allocation5 + $0x50] sm:$0xf]
    %v214 = vld [vmem:[#allocation5 + $0x54] sm:$0xff]
    %v215 = vld [vmem:[#allocation5 + $0x5c] sm:$0xf]
    %v216 = vld [vmem:[#allocation5 + $0x60] sm:$0xff]
    %v217 = vld [vmem:[#allocation5 + $0x68] sm:$0xf]
    %v218 = vld [vmem:[#allocation5 + $0x6c] sm:$0xff]
    %v219 = vld [vmem:[#allocation5 + $0x74] sm:$0xf]
    %v220 = vld [vmem:[#allocation5 + $0x78] sm:$0xff]
    %v221 = vld [vmem:[#allocation5 + $0x80] sm:$0xf]
    %v222 = vld [vmem:[#allocation5 + $0x84] sm:$0xff]
    %v223 = vld [vmem:[#allocation5 + $0x8c] sm:$0xf]
    %v224 = vld [vmem:[#allocation5 + $0x90] sm:$0xff]
    %v225 = vld [vmem:[#allocation5 + $0x98] sm:$0xf]
    %v226 = vld [vmem:[#allocation5 + $0x9c] sm:$0xff]
    %v227 = vld [vmem:[#allocation5 + $0xa4] sm:$0xf]
    %v228 = vld [vmem:[#allocation5 + $0xa8] sm:$0xff]
    %v229 = vld [vmem:[#allocation5 + $0xb0] sm:$0xf]
    %v230 = vld [vmem:[#allocation5 + $0xb4] sm:$0xff]
    %v231 = vld [vmem:[#allocation5 + $0xbc] sm:$0xf]
    %v232 = vld [vmem:[%s4] sm:$0x7]
    %v234 = vlaneseq
    %v235 = vshrl.u32 %v234, 7
    %v236 = vsub.s32 0, %v235
    %v237 = vrot.slane %v232, %v236
    %v238 = vlaneseq
    %v239 = vshrl.u32 %v238, 7
    %v240 = vsub.s32 1, %v239
    %v241 = vrot.slane %v232, %v240
    %v242 = vlaneseq
    %v243 = vshrl.u32 %v242, 7
    %v244 = vsub.s32 2, %v243
    %v245 = vrot.slane %v232, %v244
    %v281 = vunpack.c.l.b16 %v200
    %v282 = vunpack.c.h.b16 %v200
    %v283 = vunpack.c.l.b16 %v201
    %v284 = vunpack.c.l.b16 %v202
    %v285 = vunpack.c.h.b16 %v202
    %v286 = vunpack.c.l.b16 %v203
    %v287 = vunpack.c.l.b16 %v204
    %v288 = vunpack.c.h.b16 %v204
    %v289 = vunpack.c.l.b16 %v205
    %v290 = vunpack.c.l.b16 %v206
    %v291 = vunpack.c.h.b16 %v206
    %v292 = vunpack.c.l.b16 %v207
    %v293 = vunpack.c.l.b16 %v208
    %v294 = vunpack.c.h.b16 %v208
    %v295 = vunpack.c.l.b16 %v209
    %v296 = vunpack.c.l.b16 %v210
    %v297 = vunpack.c.h.b16 %v210
    %v298 = vunpack.c.l.b16 %v211
    %v299 = vunpack.c.l.b16 %v212
    %v300 = vunpack.c.h.b16 %v212
    %v301 = vunpack.c.l.b16 %v213
    %v302 = vunpack.c.l.b16 %v214
    %v303 = vunpack.c.h.b16 %v214
    %v304 = vunpack.c.l.b16 %v215
    %v305 = vunpack.c.l.b16 %v216
    %v306 = vunpack.c.h.b16 %v216
    %v307 = vunpack.c.l.b16 %v217
    %v308 = vunpack.c.l.b16 %v218
    %v309 = vunpack.c.h.b16 %v218
    %v310 = vunpack.c.l.b16 %v219
    %v311 = vunpack.c.l.b16 %v220
    %v312 = vunpack.c.h.b16 %v220
    %v313 = vunpack.c.l.b16 %v221
    %v314 = vunpack.c.l.b16 %v222
    %v315 = vunpack.c.h.b16 %v222
    %v316 = vunpack.c.l.b16 %v223
    %v317 = vunpack.c.l.b16 %v224
    %v318 = vunpack.c.h.b16 %v224
    %v319 = vunpack.c.l.b16 %v225
    %v320 = vunpack.c.l.b16 %v226
    %v321 = vunpack.c.h.b16 %v226
    %v322 = vunpack.c.l.b16 %v227
    %v323 = vunpack.c.l.b16 %v228
    %v324 = vunpack.c.h.b16 %v228
    %v325 = vunpack.c.l.b16 %v229
    %v326 = vunpack.c.l.b16 %v230
    %v327 = vunpack.c.h.b16 %v230
    %v328 = vunpack.c.l.b16 %v231
    %v329 = vpack.c.b16 %v284, %v281
    %v330 = vpack.c.b16 %v285, %v282
    %v331 = vpack.c.b16 %v286, %v283
    %v332 = vpack.c.b16 %v290, %v287
    %v333 = vpack.c.b16 %v291, %v288
    %v334 = vpack.c.b16 %v292, %v289
    %v335 = vpack.c.b16 %v296, %v293
    %v336 = vpack.c.b16 %v297, %v294
    %v337 = vpack.c.b16 %v298, %v295
    %v338 = vpack.c.b16 %v302, %v299
    %v339 = vpack.c.b16 %v303, %v300
    %v340 = vpack.c.b16 %v304, %v301
    %v341 = vpack.c.b16 %v308, %v305
    %v342 = vpack.c.b16 %v309, %v306
    %v343 = vpack.c.b16 %v310, %v307
    %v344 = vpack.c.b16 %v314, %v311
    %v345 = vpack.c.b16 %v315, %v312
    %v346 = vpack.c.b16 %v316, %v313
    %v347 = vpack.c.b16 %v320, %v317
    %v348 = vpack.c.b16 %v321, %v318
    %v349 = vpack.c.b16 %v322, %v319
    %v350 = vpack.c.b16 %v326, %v323
    %v351 = vpack.c.b16 %v327, %v324
    %v352 = vpack.c.b16 %v328, %v325
    %377 = vmatprep.subr.bf16.mxu0 %v330
    %378 = vmatpush1.bf16.msra.mxu0 %v329
    %379 = vmatprep.subr.bf16.mxu0 %v333
    %380 = vmatpush1.bf16.msra.mxu0 %v332
    %381 = vmatprep.subr.bf16.mxu0 %v336
    %382 = vmatpush1.bf16.msra.mxu0 %v335
    %383 = vmatprep.subr.bf16.mxu0 %v339
    %384 = vmatpush1.bf16.msra.mxu0 %v338
    %385 = vmatprep.subr.bf16.mxu0 %v342
    %386 = vmatpush1.bf16.msra.mxu0 %v341
    %387 = vmatprep.subr.bf16.mxu0 %v345
    %388 = vmatpush1.bf16.msra.mxu0 %v344
    %389 = vmatprep.subr.bf16.mxu0 %v348
    %390 = vmatpush1.bf16.msra.mxu0 %v347
    %391 = vmatprep.subr.bf16.mxu0 %v351
    %392 = vmatpush1.bf16.msra.mxu0 %v350
    %393 = vmatprep.subr.bf16.mxu0 0
    %394 = vmatpush1.bf16.msra.mxu0 0
    %395 = vmatprep.subr.bf16.mxu0 0
    %396 = vmatpush1.bf16.msra.mxu0 0
    %397 = vmatprep.subr.bf16.mxu0 0
    %398 = vmatpush1.bf16.msra.mxu0 0
    %399 = vmatprep.subr.bf16.mxu0 0
    %400 = vmatpush1.bf16.msra.mxu0 0
    %401 = vmatprep.subr.bf16.mxu0 0
    %402 = vmatpush1.bf16.msra.mxu0 0
    %403 = vmatprep.subr.bf16.mxu0 0
    %404 = vmatpush1.bf16.msra.mxu0 0
    %405 = vmatprep.subr.bf16.mxu0 0
    %406 = vmatpush1.bf16.msra.mxu0 0
    %407 = vmatprep.subr.bf16.mxu0 0
    %408 = vmatpush1.bf16.msra.mxu0 0
    %409 = vmatprep.mubr.bf16.mxu0 0
    %410 = vmatmul.mubr.bf16.gmra.mrb[0].mxu0 %v196
    %v411 = vpop.f32.mrb[0].mxu0
    %v412 = vadd.f32 %v237, %v411
    %v413 = vpop.f32.mrb[0].mxu0
    %v414 = vadd.f32 %v241, %v413
    %v415 = vpop.f32.mrb[0].mxu0
    %v416 = vadd.f32 %v237, %v415
    %v417 = vpop.f32.mrb[0].mxu0
    %v418 = vadd.f32 %v241, %v417
    %419 = vmatprep.mubr.bf16.mxu0 0
    %420 = vmatmul.mubr.bf16.gmra.mrb[0].mxu0 %v197
    %v421 = vpop.f32.mrb[0].mxu0
    %v422 = vadd.f32 %v237, %v421
    %v423 = vpop.f32.mrb[0].mxu0
    %v424 = vadd.f32 %v241, %v423
    %v425 = vpop.f32.mrb[0].mxu0
    %v426 = vadd.f32 %v237, %v425
    %v427 = vpop.f32.mrb[0].mxu0
    %v428 = vadd.f32 %v241, %v427
    %429 = vmatprep.mubr.bf16.mxu0 0
    %430 = vmatmul.mubr.bf16.gmra.mrb[0].mxu0 %v198
    %v431 = vpop.f32.mrb[0].mxu0
    %v432 = vadd.f32 %v237, %v431
    %v433 = vpop.f32.mrb[0].mxu0
    %v434 = vadd.f32 %v241, %v433
    %v435 = vpop.f32.mrb[0].mxu0
    %v436 = vadd.f32 %v237, %v435
    %v437 = vpop.f32.mrb[0].mxu0
    %v438 = vadd.f32 %v241, %v437
    %439 = vmatprep.mubr.bf16.mxu0 0
    %440 = vmatmul.mubr.bf16.gmra.mrb[0].mxu0 %v199
    %v441 = vpop.f32.mrb[0].mxu0
    %v442 = vadd.f32 %v237, %v441
    %v443 = vpop.f32.mrb[0].mxu0
    %v444 = vadd.f32 %v241, %v443
    %v445 = vpop.f32.mrb[0].mxu0
    %v446 = vadd.f32 %v237, %v445
    %v447 = vpop.f32.mrb[0].mxu0
    %v448 = vadd.f32 %v241, %v447
    %449 = vdwg.mxu0
    %450 = vmatprep.subr.bf16.mxu0 0
    %451 = vmatpush1.bf16.msra.mxu0 %v331
    %452 = vmatprep.subr.bf16.mxu0 0
    %453 = vmatpush1.bf16.msra.mxu0 %v334
    %454 = vmatprep.subr.bf16.mxu0 0
    %455 = vmatpush1.bf16.msra.mxu0 %v337
    %456 = vmatprep.subr.bf16.mxu0 0
    %457 = vmatpush1.bf16.msra.mxu0 %v340
    %458 = vmatprep.subr.bf16.mxu0 0
    %459 = vmatpush1.bf16.msra.mxu0 %v343
    %460 = vmatprep.subr.bf16.mxu0 0
    %461 = vmatpush1.bf16.msra.mxu0 %v346
    %462 = vmatprep.subr.bf16.mxu0 0
    %463 = vmatpush1.bf16.msra.mxu0 %v349
    %464 = vmatprep.subr.bf16.mxu0 0
    %465 = vmatpush1.bf16.msra.mxu0 %v352
    %466 = vmatprep.subr.bf16.mxu0 0
    %467 = vmatpush1.bf16.msra.mxu0 0
    %468 = vmatprep.subr.bf16.mxu0 0
    %469 = vmatpush1.bf16.msra.mxu0 0
    %470 = vmatprep.subr.bf16.mxu0 0
    %471 = vmatpush1.bf16.msra.mxu0 0
    %472 = vmatprep.subr.bf16.mxu0 0
    %473 = vmatpush1.bf16.msra.mxu0 0
    %474 = vmatprep.subr.bf16.mxu0 0
    %475 = vmatpush1.bf16.msra.mxu0 0
    %476 = vmatprep.subr.bf16.mxu0 0
    %477 = vmatpush1.bf16.msra.mxu0 0
    %478 = vmatprep.subr.bf16.mxu0 0
    %479 = vmatpush1.bf16.msra.mxu0 0
    %480 = vmatprep.subr.bf16.mxu0 0
    %481 = vmatpush1.bf16.msra.mxu0 0
    %482 = vmatprep.mubr.bf16.mxu0 0
    %483 = vmatmul.mubr.bf16.gmra.mrb[0].mxu0 %v196
    %v484 = vpop.f32.mrb[0].mxu0
    %v485 = vadd.f32 %v245, %v484
    %v486 = vpop.f32.mrb[0].mxu0
    %v487 = vpop.f32.mrb[0].mxu0
    %v488 = vadd.f32 %v245, %v487
    %v489 = vpop.f32.mrb[0].mxu0
    %490 = vmatprep.mubr.bf16.mxu0 0
    %491 = vmatmul.mubr.bf16.gmra.mrb[0].mxu0 %v197
    %v492 = vpop.f32.mrb[0].mxu0
    %v493 = vadd.f32 %v245, %v492
    %v494 = vpop.f32.mrb[0].mxu0
    %v495 = vpop.f32.mrb[0].mxu0
    %v496 = vadd.f32 %v245, %v495
    %v497 = vpop.f32.mrb[0].mxu0
    %498 = vmatprep.mubr.bf16.mxu0 0
    %499 = vmatmul.mubr.bf16.gmra.mrb[0].mxu0 %v198
    %v500 = vpop.f32.mrb[0].mxu0
    %v501 = vadd.f32 %v245, %v500
    %v502 = vpop.f32.mrb[0].mxu0
    %v503 = vpop.f32.mrb[0].mxu0
    %v504 = vadd.f32 %v245, %v503
    %v505 = vpop.f32.mrb[0].mxu0
    %506 = vmatprep.mubr.bf16.mxu0 0
    %507 = vmatmul.mubr.bf16.gmra.mrb[0].mxu0 %v199
    %v508 = vpop.f32.mrb[0].mxu0
    %v509 = vadd.f32 %v245, %v508
    %v510 = vpop.f32.mrb[0].mxu0
    %v511 = vpop.f32.mrb[0].mxu0
    %v512 = vadd.f32 %v245, %v511
    %v513 = vpop.f32.mrb[0].mxu0
    %514 = vdwg.mxu0
    %v515 = vmul.f32 %v412, 0.17677669
    %v516 = vmul.f32 %v416, 0.17677669
    %v517 = vmul.f32 %v422, 0.17677669
    %v518 = vmul.f32 %v426, 0.17677669
    %v519 = vmul.f32 %v432, 0.17677669
    %v520 = vmul.f32 %v436, 0.17677669
    %v521 = vmul.f32 %v442, 0.17677669
    %v522 = vmul.f32 %v446, 0.17677669
    %531 = vrot.lane.b32.xlu0 %v515, 96
    %v532 = vpop.permute.xlu0 %531
    %533 = vrot.lane.b32.xlu0 %v516, 96
    %v534 = vpop.permute.xlu0 %533
    %535 = vrot.lane.b32.xlu0 %v517, 96
    %v536 = vpop.permute.xlu0 %535
    %537 = vrot.lane.b32.xlu0 %v518, 96
    %v538 = vpop.permute.xlu0 %537
    %539 = vrot.lane.b32.xlu0 %v519, 96
    %v540 = vpop.permute.xlu0 %539
    %541 = vrot.lane.b32.xlu0 %v520, 96
    %v542 = vpop.permute.xlu0 %541
    %543 = vrot.lane.b32.xlu0 %v521, 96
    %v544 = vpop.permute.xlu0 %543
    %545 = vrot.lane.b32.xlu0 %v522, 96
    %v546 = vpop.permute.xlu0 %545
    %555 = vrot.lane.b32.xlu0 %v515, 64
    %v556 = vpop.permute.xlu0 %555
    %557 = vrot.lane.b32.xlu0 %v516, 64
    %v558 = vpop.permute.xlu0 %557
    %559 = vrot.lane.b32.xlu0 %v517, 64
    %v560 = vpop.permute.xlu0 %559
    %561 = vrot.lane.b32.xlu0 %v518, 64
    %v562 = vpop.permute.xlu0 %561
    %563 = vrot.lane.b32.xlu0 %v519, 64
    %v564 = vpop.permute.xlu0 %563
    %565 = vrot.lane.b32.xlu0 %v520, 64
    %v566 = vpop.permute.xlu0 %565
    %567 = vrot.lane.b32.xlu0 %v521, 64
    %v568 = vpop.permute.xlu0 %567
    %569 = vrot.lane.b32.xlu0 %v522, 64
    %v570 = vpop.permute.xlu0 %569
    %579 = vrot.lane.b32.xlu0 %v515, 32
    %v580 = vpop.permute.xlu0 %579
    %581 = vrot.lane.b32.xlu0 %v516, 32
    %v582 = vpop.permute.xlu0 %581
    %583 = vrot.lane.b32.xlu0 %v517, 32
    %v584 = vpop.permute.xlu0 %583
    %585 = vrot.lane.b32.xlu0 %v518, 32
    %v586 = vpop.permute.xlu0 %585
    %587 = vrot.lane.b32.xlu0 %v519, 32
    %v588 = vpop.permute.xlu0 %587
    %589 = vrot.lane.b32.xlu0 %v520, 32
    %v590 = vpop.permute.xlu0 %589
    %591 = vrot.lane.b32.xlu0 %v521, 32
    %v592 = vpop.permute.xlu0 %591
    %593 = vrot.lane.b32.xlu0 %v522, 32
    %v594 = vpop.permute.xlu0 %593
    %v603 = vcombine.low %v515, %v556
    %v604 = vcombine.high %v515, %v556
    %v606 = vunpack.c.l.s4 1983009808
    %v607 = vunpack.c.0.s8 %v606
    %v608 = vlaneseq
    %v609 = vshrl.u32 %v608, 7
    %v610 = vsub.s32 %v607, %v609
    %v611 = vrot.slane %v603, %v610
    %v613 = vunpack.c.l.s4 1983009808
    %v614 = vunpack.c.0.s8 %v613
    %v615 = vlaneseq
    %v616 = vshrl.u32 %v615, 7
    %v617 = vsub.s32 %v614, %v616
    %v618 = vrot.slane %v604, %v617
    %v619 = vcombine.low %v532, %v580
    %v620 = vcombine.high %v532, %v580
    %v622 = vunpack.c.l.s4 1983009808
    %v623 = vunpack.c.0.s8 %v622
    %v624 = vlaneseq
    %v625 = vshrl.u32 %v624, 7
    %v626 = vsub.s32 %v623, %v625
    %v627 = vrot.slane %v619, %v626
    %v629 = vunpack.c.l.s4 1983009808
    %v630 = vunpack.c.0.s8 %v629
    %v631 = vlaneseq
    %v632 = vshrl.u32 %v631, 7
    %v633 = vsub.s32 %v630, %v632
    %v634 = vrot.slane %v620, %v633
    %v635 = vcombine.low %v611, %v627
    %v636 = vcombine.high %v611, %v627
    %v638 = vunpack.c.l.s4 1934713408
    %v639 = vunpack.c.0.s8 %v638
    %v640 = vlaneseq
    %v641 = vshrl.u32 %v640, 7
    %v642 = vsub.s32 %v639, %v641
    %v643 = vrot.slane %v635, %v642
    %v645 = vunpack.c.l.s4 1934713408
    %v646 = vunpack.c.0.s8 %v645
    %v647 = vlaneseq
    %v648 = vshrl.u32 %v647, 7
    %v649 = vsub.s32 %v646, %v648
    %v650 = vrot.slane %v636, %v649
    %v651 = vcombine.low %v618, %v634
    %v652 = vcombine.high %v618, %v634
    %v654 = vunpack.c.l.s4 1934713408
    %v655 = vunpack.c.0.s8 %v654
    %v656 = vlaneseq
    %v657 = vshrl.u32 %v656, 7
    %v658 = vsub.s32 %v655, %v657
    %v659 = vrot.slane %v651, %v658
    %v661 = vunpack.c.l.s4 1934713408
    %v662 = vunpack.c.0.s8 %v661
    %v663 = vlaneseq
    %v664 = vshrl.u32 %v663, 7
    %v665 = vsub.s32 %v662, %v664
    %v666 = vrot.slane %v652, %v665
    %v667 = vcombine.high %v643, 0.0
    %v668 = vcombine.high %v650, 0.0
    %v669 = vcombine.high %v659, 0.0
    %v670 = vcombine.high %v666, 0.0
    %v671 = vcombine.low %v516, %v558
    %v672 = vcombine.high %v516, %v558
    %v674 = vunpack.c.l.s4 1983009808
    %v675 = vunpack.c.0.s8 %v674
    %v676 = vlaneseq
    %v677 = vshrl.u32 %v676, 7
    %v678 = vsub.s32 %v675, %v677
    %v679 = vrot.slane %v671, %v678
    %v681 = vunpack.c.l.s4 1983009808
    %v682 = vunpack.c.0.s8 %v681
    %v683 = vlaneseq
    %v684 = vshrl.u32 %v683, 7
    %v685 = vsub.s32 %v682, %v684
    %v686 = vrot.slane %v672, %v685
    %v687 = vcombine.low %v534, %v582
    %v688 = vcombine.high %v534, %v582
    %v690 = vunpack.c.l.s4 1983009808
    %v691 = vunpack.c.0.s8 %v690
    %v692 = vlaneseq
    %v693 = vshrl.u32 %v692, 7
    %v694 = vsub.s32 %v691, %v693
    %v695 = vrot.slane %v687, %v694
    %v697 = vunpack.c.l.s4 1983009808
    %v698 = vunpack.c.0.s8 %v697
    %v699 = vlaneseq
    %v700 = vshrl.u32 %v699, 7
    %v701 = vsub.s32 %v698, %v700
    %v702 = vrot.slane %v688, %v701
    %v703 = vcombine.low %v679, %v695
    %v704 = vcombine.high %v679, %v695
    %v706 = vunpack.c.l.s4 1934713408
    %v707 = vunpack.c.0.s8 %v706
    %v708 = vlaneseq
    %v709 = vshrl.u32 %v708, 7
    %v710 = vsub.s32 %v707, %v709
    %v711 = vrot.slane %v703, %v710
    %v713 = vunpack.c.l.s4 1934713408
    %v714 = vunpack.c.0.s8 %v713
    %v715 = vlaneseq
    %v716 = vshrl.u32 %v715, 7
    %v717 = vsub.s32 %v714, %v716
    %v718 = vrot.slane %v704, %v717
    %v719 = vcombine.low %v686, %v702
    %v720 = vcombine.high %v686, %v702
    %v722 = vunpack.c.l.s4 1934713408
    %v723 = vunpack.c.0.s8 %v722
    %v724 = vlaneseq
    %v725 = vshrl.u32 %v724, 7
    %v726 = vsub.s32 %v723, %v725
    %v727 = vrot.slane %v719, %v726
    %v729 = vunpack.c.l.s4 1934713408
    %v730 = vunpack.c.0.s8 %v729
    %v731 = vlaneseq
    %v732 = vshrl.u32 %v731, 7
    %v733 = vsub.s32 %v730, %v732
    %v734 = vrot.slane %v720, %v733
    %v735 = vcombine.high %v711, 0.0
    %v736 = vcombine.high %v718, 0.0
    %v737 = vcombine.high %v727, 0.0
    %v738 = vcombine.high %v734, 0.0
    %v739 = vcombine.low %v517, %v560
    %v740 = vcombine.high %v517, %v560
    %v742 = vunpack.c.l.s4 1983009808
    %v743 = vunpack.c.0.s8 %v742
    %v744 = vlaneseq
    %v745 = vshrl.u32 %v744, 7
    %v746 = vsub.s32 %v743, %v745
    %v747 = vrot.slane %v739, %v746
    %v749 = vunpack.c.l.s4 1983009808
    %v750 = vunpack.c.0.s8 %v749
    %v751 = vlaneseq
    %v752 = vshrl.u32 %v751, 7
    %v753 = vsub.s32 %v750, %v752
    %v754 = vrot.slane %v740, %v753
    %v755 = vcombine.low %v536, %v584
    %v756 = vcombine.high %v536, %v584
    %v758 = vunpack.c.l.s4 1983009808
    %v759 = vunpack.c.0.s8 %v758
    %v760 = vlaneseq
    %v761 = vshrl.u32 %v760, 7
    %v762 = vsub.s32 %v759, %v761
    %v763 = vrot.slane %v755, %v762
    %v765 = vunpack.c.l.s4 1983009808
    %v766 = vunpack.c.0.s8 %v765
    %v767 = vlaneseq
    %v768 = vshrl.u32 %v767, 7
    %v769 = vsub.s32 %v766, %v768
    %v770 = vrot.slane %v756, %v769
    %v771 = vcombine.low %v747, %v763
    %v772 = vcombine.high %v747, %v763
    %v774 = vunpack.c.l.s4 1934713408
    %v775 = vunpack.c.0.s8 %v774
    %v776 = vlaneseq
    %v777 = vshrl.u32 %v776, 7
    %v778 = vsub.s32 %v775, %v777
    %v779 = vrot.slane %v771, %v778
    %v781 = vunpack.c.l.s4 1934713408
    %v782 = vunpack.c.0.s8 %v781
    %v783 = vlaneseq
    %v784 = vshrl.u32 %v783, 7
    %v785 = vsub.s32 %v782, %v784
    %v786 = vrot.slane %v772, %v785
    %v787 = vcombine.low %v754, %v770
    %v788 = vcombine.high %v754, %v770
    %v790 = vunpack.c.l.s4 1934713408
    %v791 = vunpack.c.0.s8 %v790
    %v792 = vlaneseq
    %v793 = vshrl.u32 %v792, 7
    %v794 = vsub.s32 %v791, %v793
    %v795 = vrot.slane %v787, %v794
    %v797 = vunpack.c.l.s4 1934713408
    %v798 = vunpack.c.0.s8 %v797
    %v799 = vlaneseq
    %v800 = vshrl.u32 %v799, 7
    %v801 = vsub.s32 %v798, %v800
    %v802 = vrot.slane %v788, %v801
    %v803 = vcombine.high %v779, 0.0
    %v804 = vcombine.high %v786, 0.0
    %v805 = vcombine.high %v795, 0.0
    %v806 = vcombine.high %v802, 0.0
    %v807 = vcombine.low %v518, %v562
    %v808 = vcombine.high %v518, %v562
    %v810 = vunpack.c.l.s4 1983009808
    %v811 = vunpack.c.0.s8 %v810
    %v812 = vlaneseq
    %v813 = vshrl.u32 %v812, 7
    %v814 = vsub.s32 %v811, %v813
    %v815 = vrot.slane %v807, %v814
    %v817 = vunpack.c.l.s4 1983009808
    %v818 = vunpack.c.0.s8 %v817
    %v819 = vlaneseq
    %v820 = vshrl.u32 %v819, 7
    %v821 = vsub.s32 %v818, %v820
    %v822 = vrot.slane %v808, %v821
    %v823 = vcombine.low %v538, %v586
    %v824 = vcombine.high %v538, %v586
    %v826 = vunpack.c.l.s4 1983009808
    %v827 = vunpack.c.0.s8 %v826
    %v828 = vlaneseq
    %v829 = vshrl.u32 %v828, 7
    %v830 = vsub.s32 %v827, %v829
    %v831 = vrot.slane %v823, %v830
    %v833 = vunpack.c.l.s4 1983009808
    %v834 = vunpack.c.0.s8 %v833
    %v835 = vlaneseq
    %v836 = vshrl.u32 %v835, 7
    %v837 = vsub.s32 %v834, %v836
    %v838 = vrot.slane %v824, %v837
    %v839 = vcombine.low %v815, %v831
    %v840 = vcombine.high %v815, %v831
    %v842 = vunpack.c.l.s4 1934713408
    %v843 = vunpack.c.0.s8 %v842
    %v844 = vlaneseq
    %v845 = vshrl.u32 %v844, 7
    %v846 = vsub.s32 %v843, %v845
    %v847 = vrot.slane %v839, %v846
    %v849 = vunpack.c.l.s4 1934713408
    %v850 = vunpack.c.0.s8 %v849
    %v851 = vlaneseq
    %v852 = vshrl.u32 %v851, 7
    %v853 = vsub.s32 %v850, %v852
    %v854 = vrot.slane %v840, %v853
    %v855 = vcombine.low %v822, %v838
    %v856 = vcombine.high %v822, %v838
    %v858 = vunpack.c.l.s4 1934713408
    %v859 = vunpack.c.0.s8 %v858
    %v860 = vlaneseq
    %v861 = vshrl.u32 %v860, 7
    %v862 = vsub.s32 %v859, %v861
    %v863 = vrot.slane %v855, %v862
    %v865 = vunpack.c.l.s4 1934713408
    %v866 = vunpack.c.0.s8 %v865
    %v867 = vlaneseq
    %v868 = vshrl.u32 %v867, 7
    %v869 = vsub.s32 %v866, %v868
    %v870 = vrot.slane %v856, %v869
    %v871 = vcombine.high %v847, 0.0
    %v872 = vcombine.high %v854, 0.0
    %v873 = vcombine.high %v863, 0.0
    %v874 = vcombine.high %v870, 0.0
    %v875 = vcombine.low %v519, %v564
    %v876 = vcombine.high %v519, %v564
    %v878 = vunpack.c.l.s4 1983009808
    %v879 = vunpack.c.0.s8 %v878
    %v880 = vlaneseq
    %v881 = vshrl.u32 %v880, 7
    %v882 = vsub.s32 %v879, %v881
    %v883 = vrot.slane %v875, %v882
    %v885 = vunpack.c.l.s4 1983009808
    %v886 = vunpack.c.0.s8 %v885
    %v887 = vlaneseq
    %v888 = vshrl.u32 %v887, 7
    %v889 = vsub.s32 %v886, %v888
    %v890 = vrot.slane %v876, %v889
    %v891 = vcombine.low %v540, %v588
    %v892 = vcombine.high %v540, %v588
    %v894 = vunpack.c.l.s4 1983009808
    %v895 = vunpack.c.0.s8 %v894
    %v896 = vlaneseq
    %v897 = vshrl.u32 %v896, 7
    %v898 = vsub.s32 %v895, %v897
    %v899 = vrot.slane %v891, %v898
    %v901 = vunpack.c.l.s4 1983009808
    %v902 = vunpack.c.0.s8 %v901
    %v903 = vlaneseq
    %v904 = vshrl.u32 %v903, 7
    %v905 = vsub.s32 %v902, %v904
    %v906 = vrot.slane %v892, %v905
    %v907 = vcombine.low %v883, %v899
    %v908 = vcombine.high %v883, %v899
    %v910 = vunpack.c.l.s4 1934713408
    %v911 = vunpack.c.0.s8 %v910
    %v912 = vlaneseq
    %v913 = vshrl.u32 %v912, 7
    %v914 = vsub.s32 %v911, %v913
    %v915 = vrot.slane %v907, %v914
    %v917 = vunpack.c.l.s4 1934713408
    %v918 = vunpack.c.0.s8 %v917
    %v919 = vlaneseq
    %v920 = vshrl.u32 %v919, 7
    %v921 = vsub.s32 %v918, %v920
    %v922 = vrot.slane %v908, %v921
    %v923 = vcombine.low %v890, %v906
    %v924 = vcombine.high %v890, %v906
    %v926 = vunpack.c.l.s4 1934713408
    %v927 = vunpack.c.0.s8 %v926
    %v928 = vlaneseq
    %v929 = vshrl.u32 %v928, 7
    %v930 = vsub.s32 %v927, %v929
    %v931 = vrot.slane %v923, %v930
    %v933 = vunpack.c.l.s4 1934713408
    %v934 = vunpack.c.0.s8 %v933
    %v935 = vlaneseq
    %v936 = vshrl.u32 %v935, 7
    %v937 = vsub.s32 %v934, %v936
    %v938 = vrot.slane %v924, %v937
    %v939 = vcombine.high %v915, 0.0
    %v940 = vcombine.high %v922, 0.0
    %v941 = vcombine.high %v931, 0.0
    %v942 = vcombine.high %v938, 0.0
    %v943 = vcombine.low %v520, %v566
    %v944 = vcombine.high %v520, %v566
    %v946 = vunpack.c.l.s4 1983009808
    %v947 = vunpack.c.0.s8 %v946
    %v948 = vlaneseq
    %v949 = vshrl.u32 %v948, 7
    %v950 = vsub.s32 %v947, %v949
    %v951 = vrot.slane %v943, %v950
    %v953 = vunpack.c.l.s4 1983009808
    %v954 = vunpack.c.0.s8 %v953
    %v955 = vlaneseq
    %v956 = vshrl.u32 %v955, 7
    %v957 = vsub.s32 %v954, %v956
    %v958 = vrot.slane %v944, %v957
    %v959 = vcombine.low %v542, %v590
    %v960 = vcombine.high %v542, %v590
    %v962 = vunpack.c.l.s4 1983009808
    %v963 = vunpack.c.0.s8 %v962
    %v964 = vlaneseq
    %v965 = vshrl.u32 %v964, 7
    %v966 = vsub.s32 %v963, %v965
    %v967 = vrot.slane %v959, %v966
    %v969 = vunpack.c.l.s4 1983009808
    %v970 = vunpack.c.0.s8 %v969
    %v971 = vlaneseq
    %v972 = vshrl.u32 %v971, 7
    %v973 = vsub.s32 %v970, %v972
    %v974 = vrot.slane %v960, %v973
    %v975 = vcombine.low %v951, %v967
    %v976 = vcombine.high %v951, %v967
    %v978 = vunpack.c.l.s4 1934713408
    %v979 = vunpack.c.0.s8 %v978
    %v980 = vlaneseq
    %v981 = vshrl.u32 %v980, 7
    %v982 = vsub.s32 %v979, %v981
    %v983 = vrot.slane %v975, %v982
    %v985 = vunpack.c.l.s4 1934713408
    %v986 = vunpack.c.0.s8 %v985
    %v987 = vlaneseq
    %v988 = vshrl.u32 %v987, 7
    %v989 = vsub.s32 %v986, %v988
    %v990 = vrot.slane %v976, %v989
    %v991 = vcombine.low %v958, %v974
    %v992 = vcombine.high %v958, %v974
    %v994 = vunpack.c.l.s4 1934713408
    %v995 = vunpack.c.0.s8 %v994
    %v996 = vlaneseq
    %v997 = vshrl.u32 %v996, 7
    %v998 = vsub.s32 %v995, %v997
    %v999 = vrot.slane %v991, %v998
    %v1001 = vunpack.c.l.s4 1934713408
    %v1002 = vunpack.c.0.s8 %v1001
    %v1003 = vlaneseq
    %v1004 = vshrl.u32 %v1003, 7
    %v1005 = vsub.s32 %v1002, %v1004
    %v1006 = vrot.slane %v992, %v1005
    %v1007 = vcombine.high %v983, 0.0
    %v1008 = vcombine.high %v990, 0.0
    %v1009 = vcombine.high %v999, 0.0
    %v1010 = vcombine.high %v1006, 0.0
    %v1011 = vcombine.low %v521, %v568
    %v1012 = vcombine.high %v521, %v568
    %v1014 = vunpack.c.l.s4 1983009808
    %v1015 = vunpack.c.0.s8 %v1014
    %v1016 = vlaneseq
    %v1017 = vshrl.u32 %v1016, 7
    %v1018 = vsub.s32 %v1015, %v1017
    %v1019 = vrot.slane %v1011, %v1018
    %v1021 = vunpack.c.l.s4 1983009808
    %v1022 = vunpack.c.0.s8 %v1021
    %v1023 = vlaneseq
    %v1024 = vshrl.u32 %v1023, 7
    %v1025 = vsub.s32 %v1022, %v1024
    %v1026 = vrot.slane %v1012, %v1025
    %v1027 = vcombine.low %v544, %v592
    %v1028 = vcombine.high %v544, %v592
    %v1030 = vunpack.c.l.s4 1983009808
    %v1031 = vunpack.c.0.s8 %v1030
    %v1032 = vlaneseq
    %v1033 = vshrl.u32 %v1032, 7
    %v1034 = vsub.s32 %v1031, %v1033
    %v1035 = vrot.slane %v1027, %v1034
    %v1037 = vunpack.c.l.s4 1983009808
    %v1038 = vunpack.c.0.s8 %v1037
    %v1039 = vlaneseq
    %v1040 = vshrl.u32 %v1039, 7
    %v1041 = vsub.s32 %v1038, %v1040
    %v1042 = vrot.slane %v1028, %v1041
    %v1043 = vcombine.low %v1019, %v1035
    %v1044 = vcombine.high %v1019, %v1035
    %v1046 = vunpack.c.l.s4 1934713408
    %v1047 = vunpack.c.0.s8 %v1046
    %v1048 = vlaneseq
    %v1049 = vshrl.u32 %v1048, 7
    %v1050 = vsub.s32 %v1047, %v1049
    %v1051 = vrot.slane %v1043, %v1050
    %v1053 = vunpack.c.l.s4 1934713408
    %v1054 = vunpack.c.0.s8 %v1053
    %v1055 = vlaneseq
    %v1056 = vshrl.u32 %v1055, 7
    %v1057 = vsub.s32 %v1054, %v1056
    %v1058 = vrot.slane %v1044, %v1057
    %v1059 = vcombine.low %v1026, %v1042
    %v1060 = vcombine.high %v1026, %v1042
    %v1062 = vunpack.c.l.s4 1934713408
    %v1063 = vunpack.c.0.s8 %v1062
    %v1064 = vlaneseq
    %v1065 = vshrl.u32 %v1064, 7
    %v1066 = vsub.s32 %v1063, %v1065
    %v1067 = vrot.slane %v1059, %v1066
    %v1069 = vunpack.c.l.s4 1934713408
    %v1070 = vunpack.c.0.s8 %v1069
    %v1071 = vlaneseq
    %v1072 = vshrl.u32 %v1071, 7
    %v1073 = vsub.s32 %v1070, %v1072
    %v1074 = vrot.slane %v1060, %v1073
    %v1075 = vcombine.high %v1051, 0.0
    %v1076 = vcombine.high %v1058, 0.0
    %v1077 = vcombine.high %v1067, 0.0
    %v1078 = vcombine.high %v1074, 0.0
    %v1079 = vcombine.low %v522, %v570
    %v1080 = vcombine.high %v522, %v570
    %v1082 = vunpack.c.l.s4 1983009808
    %v1083 = vunpack.c.0.s8 %v1082
    %v1084 = vlaneseq
    %v1085 = vshrl.u32 %v1084, 7
    %v1086 = vsub.s32 %v1083, %v1085
    %v1087 = vrot.slane %v1079, %v1086
    %v1089 = vunpack.c.l.s4 1983009808
    %v1090 = vunpack.c.0.s8 %v1089
    %v1091 = vlaneseq
    %v1092 = vshrl.u32 %v1091, 7
    %v1093 = vsub.s32 %v1090, %v1092
    %v1094 = vrot.slane %v1080, %v1093
    %v1095 = vcombine.low %v546, %v594
    %v1096 = vcombine.high %v546, %v594
    %v1098 = vunpack.c.l.s4 1983009808
    %v1099 = vunpack.c.0.s8 %v1098
    %v1100 = vlaneseq
    %v1101 = vshrl.u32 %v1100, 7
    %v1102 = vsub.s32 %v1099, %v1101
    %v1103 = vrot.slane %v1095, %v1102
    %v1105 = vunpack.c.l.s4 1983009808
    %v1106 = vunpack.c.0.s8 %v1105
    %v1107 = vlaneseq
    %v1108 = vshrl.u32 %v1107, 7
    %v1109 = vsub.s32 %v1106, %v1108
    %v1110 = vrot.slane %v1096, %v1109
    %v1111 = vcombine.low %v1087, %v1103
    %v1112 = vcombine.high %v1087, %v1103
    %v1114 = vunpack.c.l.s4 1934713408
    %v1115 = vunpack.c.0.s8 %v1114
    %v1116 = vlaneseq
    %v1117 = vshrl.u32 %v1116, 7
    %v1118 = vsub.s32 %v1115, %v1117
    %v1119 = vrot.slane %v1111, %v1118
    %v1121 = vunpack.c.l.s4 1934713408
    %v1122 = vunpack.c.0.s8 %v1121
    %v1123 = vlaneseq
    %v1124 = vshrl.u32 %v1123, 7
    %v1125 = vsub.s32 %v1122, %v1124
    %v1126 = vrot.slane %v1112, %v1125
    %v1127 = vcombine.low %v1094, %v1110
    %v1128 = vcombine.high %v1094, %v1110
    %v1130 = vunpack.c.l.s4 1934713408
    %v1131 = vunpack.c.0.s8 %v1130
    %v1132 = vlaneseq
    %v1133 = vshrl.u32 %v1132, 7
    %v1134 = vsub.s32 %v1131, %v1133
    %v1135 = vrot.slane %v1127, %v1134
    %v1137 = vunpack.c.l.s4 1934713408
    %v1138 = vunpack.c.0.s8 %v1137
    %v1139 = vlaneseq
    %v1140 = vshrl.u32 %v1139, 7
    %v1141 = vsub.s32 %v1138, %v1140
    %v1142 = vrot.slane %v1128, %v1141
    %v1143 = vcombine.high %v1119, 0.0
    %v1144 = vcombine.high %v1126, 0.0
    %v1145 = vcombine.high %v1135, 0.0
    %v1146 = vcombine.high %v1142, 0.0
    %1155 = vrot.lane.b32.xlu0 %v414, 96
    %v1156 = vpop.permute.xlu0 %1155
    %1157 = vrot.lane.b32.xlu0 %v418, 96
    %v1158 = vpop.permute.xlu0 %1157
    %1159 = vrot.lane.b32.xlu0 %v424, 96
    %v1160 = vpop.permute.xlu0 %1159
    %1161 = vrot.lane.b32.xlu0 %v428, 96
    %v1162 = vpop.permute.xlu0 %1161
    %1163 = vrot.lane.b32.xlu0 %v434, 96
    %v1164 = vpop.permute.xlu0 %1163
    %1165 = vrot.lane.b32.xlu0 %v438, 96
    %v1166 = vpop.permute.xlu0 %1165
    %1167 = vrot.lane.b32.xlu0 %v444, 96
    %v1168 = vpop.permute.xlu0 %1167
    %1169 = vrot.lane.b32.xlu0 %v448, 96
    %v1170 = vpop.permute.xlu0 %1169
    %1179 = vrot.lane.b32.xlu0 %v414, 64
    %v1180 = vpop.permute.xlu0 %1179
    %1181 = vrot.lane.b32.xlu0 %v418, 64
    %v1182 = vpop.permute.xlu0 %1181
    %1183 = vrot.lane.b32.xlu0 %v424, 64
    %v1184 = vpop.permute.xlu0 %1183
    %1185 = vrot.lane.b32.xlu0 %v428, 64
    %v1186 = vpop.permute.xlu0 %1185
    %1187 = vrot.lane.b32.xlu0 %v434, 64
    %v1188 = vpop.permute.xlu0 %1187
    %1189 = vrot.lane.b32.xlu0 %v438, 64
    %v1190 = vpop.permute.xlu0 %1189
    %1191 = vrot.lane.b32.xlu0 %v444, 64
    %v1192 = vpop.permute.xlu0 %1191
    %1193 = vrot.lane.b32.xlu0 %v448, 64
    %v1194 = vpop.permute.xlu0 %1193
    %1203 = vrot.lane.b32.xlu0 %v414, 32
    %v1204 = vpop.permute.xlu0 %1203
    %1205 = vrot.lane.b32.xlu0 %v418, 32
    %v1206 = vpop.permute.xlu0 %1205
    %1207 = vrot.lane.b32.xlu0 %v424, 32
    %v1208 = vpop.permute.xlu0 %1207
    %1209 = vrot.lane.b32.xlu0 %v428, 32
    %v1210 = vpop.permute.xlu0 %1209
    %1211 = vrot.lane.b32.xlu0 %v434, 32
    %v1212 = vpop.permute.xlu0 %1211
    %1213 = vrot.lane.b32.xlu0 %v438, 32
    %v1214 = vpop.permute.xlu0 %1213
    %1215 = vrot.lane.b32.xlu0 %v444, 32
    %v1216 = vpop.permute.xlu0 %1215
    %1217 = vrot.lane.b32.xlu0 %v448, 32
    %v1218 = vpop.permute.xlu0 %1217
    %v1227 = vcombine.low %v414, %v1180
    %v1228 = vcombine.high %v414, %v1180
    %v1230 = vunpack.c.l.s4 1983009808
    %v1231 = vunpack.c.0.s8 %v1230
    %v1232 = vlaneseq
    %v1233 = vshrl.u32 %v1232, 7
    %v1234 = vsub.s32 %v1231, %v1233
    %v1235 = vrot.slane %v1227, %v1234
    %v1237 = vunpack.c.l.s4 1983009808
    %v1238 = vunpack.c.0.s8 %v1237
    %v1239 = vlaneseq
    %v1240 = vshrl.u32 %v1239, 7
    %v1241 = vsub.s32 %v1238, %v1240
    %v1242 = vrot.slane %v1228, %v1241
    %v1243 = vcombine.low %v1156, %v1204
    %v1244 = vcombine.high %v1156, %v1204
    %v1246 = vunpack.c.l.s4 1983009808
    %v1247 = vunpack.c.0.s8 %v1246
    %v1248 = vlaneseq
    %v1249 = vshrl.u32 %v1248, 7
    %v1250 = vsub.s32 %v1247, %v1249
    %v1251 = vrot.slane %v1243, %v1250
    %v1253 = vunpack.c.l.s4 1983009808
    %v1254 = vunpack.c.0.s8 %v1253
    %v1255 = vlaneseq
    %v1256 = vshrl.u32 %v1255, 7
    %v1257 = vsub.s32 %v1254, %v1256
    %v1258 = vrot.slane %v1244, %v1257
    %v1259 = vcombine.low %v1235, %v1251
    %v1260 = vcombine.high %v1235, %v1251
    %v1262 = vunpack.c.l.s4 1934713408
    %v1263 = vunpack.c.0.s8 %v1262
    %v1264 = vlaneseq
    %v1265 = vshrl.u32 %v1264, 7
    %v1266 = vsub.s32 %v1263, %v1265
    %v1267 = vrot.slane %v1259, %v1266
    %v1269 = vunpack.c.l.s4 1934713408
    %v1270 = vunpack.c.0.s8 %v1269
    %v1271 = vlaneseq
    %v1272 = vshrl.u32 %v1271, 7
    %v1273 = vsub.s32 %v1270, %v1272
    %v1274 = vrot.slane %v1260, %v1273
    %v1275 = vcombine.low %v1242, %v1258
    %v1276 = vcombine.high %v1242, %v1258
    %v1278 = vunpack.c.l.s4 1934713408
    %v1279 = vunpack.c.0.s8 %v1278
    %v1280 = vlaneseq
    %v1281 = vshrl.u32 %v1280, 7
    %v1282 = vsub.s32 %v1279, %v1281
    %v1283 = vrot.slane %v1275, %v1282
    %v1285 = vunpack.c.l.s4 1934713408
    %v1286 = vunpack.c.0.s8 %v1285
    %v1287 = vlaneseq
    %v1288 = vshrl.u32 %v1287, 7
    %v1289 = vsub.s32 %v1286, %v1288
    %v1290 = vrot.slane %v1276, %v1289
    %v1291 = vcombine.high %v1267, 0.0
    %v1292 = vcombine.high %v1274, 0.0
    %v1293 = vcombine.high %v1283, 0.0
    %v1294 = vcombine.high %v1290, 0.0
    %v1295 = vcombine.low %v418, %v1182
    %v1296 = vcombine.high %v418, %v1182
    %v1298 = vunpack.c.l.s4 1983009808
    %v1299 = vunpack.c.0.s8 %v1298
    %v1300 = vlaneseq
    %v1301 = vshrl.u32 %v1300, 7
    %v1302 = vsub.s32 %v1299, %v1301
    %v1303 = vrot.slane %v1295, %v1302
    %v1305 = vunpack.c.l.s4 1983009808
    %v1306 = vunpack.c.0.s8 %v1305
    %v1307 = vlaneseq
    %v1308 = vshrl.u32 %v1307, 7
    %v1309 = vsub.s32 %v1306, %v1308
    %v1310 = vrot.slane %v1296, %v1309
    %v1311 = vcombine.low %v1158, %v1206
    %v1312 = vcombine.high %v1158, %v1206
    %v1314 = vunpack.c.l.s4 1983009808
    %v1315 = vunpack.c.0.s8 %v1314
    %v1316 = vlaneseq
    %v1317 = vshrl.u32 %v1316, 7
    %v1318 = vsub.s32 %v1315, %v1317
    %v1319 = vrot.slane %v1311, %v1318
    %v1321 = vunpack.c.l.s4 1983009808
    %v1322 = vunpack.c.0.s8 %v1321
    %v1323 = vlaneseq
    %v1324 = vshrl.u32 %v1323, 7
    %v1325 = vsub.s32 %v1322, %v1324
    %v1326 = vrot.slane %v1312, %v1325
    %v1327 = vcombine.low %v1303, %v1319
    %v1328 = vcombine.high %v1303, %v1319
    %v1330 = vunpack.c.l.s4 1934713408
    %v1331 = vunpack.c.0.s8 %v1330
    %v1332 = vlaneseq
    %v1333 = vshrl.u32 %v1332, 7
    %v1334 = vsub.s32 %v1331, %v1333
    %v1335 = vrot.slane %v1327, %v1334
    %v1337 = vunpack.c.l.s4 1934713408
    %v1338 = vunpack.c.0.s8 %v1337
    %v1339 = vlaneseq
    %v1340 = vshrl.u32 %v1339, 7
    %v1341 = vsub.s32 %v1338, %v1340
    %v1342 = vrot.slane %v1328, %v1341
    %v1343 = vcombine.low %v1310, %v1326
    %v1344 = vcombine.high %v1310, %v1326
    %v1346 = vunpack.c.l.s4 1934713408
    %v1347 = vunpack.c.0.s8 %v1346
    %v1348 = vlaneseq
    %v1349 = vshrl.u32 %v1348, 7
    %v1350 = vsub.s32 %v1347, %v1349
    %v1351 = vrot.slane %v1343, %v1350
    %v1353 = vunpack.c.l.s4 1934713408
    %v1354 = vunpack.c.0.s8 %v1353
    %v1355 = vlaneseq
    %v1356 = vshrl.u32 %v1355, 7
    %v1357 = vsub.s32 %v1354, %v1356
    %v1358 = vrot.slane %v1344, %v1357
    %v1359 = vcombine.high %v1335, 0.0
    %v1360 = vcombine.high %v1342, 0.0
    %v1361 = vcombine.high %v1351, 0.0
    %v1362 = vcombine.high %v1358, 0.0
    %v1363 = vcombine.low %v424, %v1184
    %v1364 = vcombine.high %v424, %v1184
    %v1366 = vunpack.c.l.s4 1983009808
    %v1367 = vunpack.c.0.s8 %v1366
    %v1368 = vlaneseq
    %v1369 = vshrl.u32 %v1368, 7
    %v1370 = vsub.s32 %v1367, %v1369
    %v1371 = vrot.slane %v1363, %v1370
    %v1373 = vunpack.c.l.s4 1983009808
    %v1374 = vunpack.c.0.s8 %v1373
    %v1375 = vlaneseq
    %v1376 = vshrl.u32 %v1375, 7
    %v1377 = vsub.s32 %v1374, %v1376
    %v1378 = vrot.slane %v1364, %v1377
    %v1379 = vcombine.low %v1160, %v1208
    %v1380 = vcombine.high %v1160, %v1208
    %v1382 = vunpack.c.l.s4 1983009808
    %v1383 = vunpack.c.0.s8 %v1382
    %v1384 = vlaneseq
    %v1385 = vshrl.u32 %v1384, 7
    %v1386 = vsub.s32 %v1383, %v1385
    %v1387 = vrot.slane %v1379, %v1386
    %v1389 = vunpack.c.l.s4 1983009808
    %v1390 = vunpack.c.0.s8 %v1389
    %v1391 = vlaneseq
    %v1392 = vshrl.u32 %v1391, 7
    %v1393 = vsub.s32 %v1390, %v1392
    %v1394 = vrot.slane %v1380, %v1393
    %v1395 = vcombine.low %v1371, %v1387
    %v1396 = vcombine.high %v1371, %v1387
    %v1398 = vunpack.c.l.s4 1934713408
    %v1399 = vunpack.c.0.s8 %v1398
    %v1400 = vlaneseq
    %v1401 = vshrl.u32 %v1400, 7
    %v1402 = vsub.s32 %v1399, %v1401
    %v1403 = vrot.slane %v1395, %v1402
    %v1405 = vunpack.c.l.s4 1934713408
    %v1406 = vunpack.c.0.s8 %v1405
    %v1407 = vlaneseq
    %v1408 = vshrl.u32 %v1407, 7
    %v1409 = vsub.s32 %v1406, %v1408
    %v1410 = vrot.slane %v1396, %v1409
    %v1411 = vcombine.low %v1378, %v1394
    %v1412 = vcombine.high %v1378, %v1394
    %v1414 = vunpack.c.l.s4 1934713408
    %v1415 = vunpack.c.0.s8 %v1414
    %v1416 = vlaneseq
    %v1417 = vshrl.u32 %v1416, 7
    %v1418 = vsub.s32 %v1415, %v1417
    %v1419 = vrot.slane %v1411, %v1418
    %v1421 = vunpack.c.l.s4 1934713408
    %v1422 = vunpack.c.0.s8 %v1421
    %v1423 = vlaneseq
    %v1424 = vshrl.u32 %v1423, 7
    %v1425 = vsub.s32 %v1422, %v1424
    %v1426 = vrot.slane %v1412, %v1425
    %v1427 = vcombine.high %v1403, 0.0
    %v1428 = vcombine.high %v1410, 0.0
    %v1429 = vcombine.high %v1419, 0.0
    %v1430 = vcombine.high %v1426, 0.0
    %v1431 = vcombine.low %v428, %v1186
    %v1432 = vcombine.high %v428, %v1186
    %v1434 = vunpack.c.l.s4 1983009808
    %v1435 = vunpack.c.0.s8 %v1434
    %v1436 = vlaneseq
    %v1437 = vshrl.u32 %v1436, 7
    %v1438 = vsub.s32 %v1435, %v1437
    %v1439 = vrot.slane %v1431, %v1438
    %v1441 = vunpack.c.l.s4 1983009808
    %v1442 = vunpack.c.0.s8 %v1441
    %v1443 = vlaneseq
    %v1444 = vshrl.u32 %v1443, 7
    %v1445 = vsub.s32 %v1442, %v1444
    %v1446 = vrot.slane %v1432, %v1445
    %v1447 = vcombine.low %v1162, %v1210
    %v1448 = vcombine.high %v1162, %v1210
    %v1450 = vunpack.c.l.s4 1983009808
    %v1451 = vunpack.c.0.s8 %v1450
    %v1452 = vlaneseq
    %v1453 = vshrl.u32 %v1452, 7
    %v1454 = vsub.s32 %v1451, %v1453
    %v1455 = vrot.slane %v1447, %v1454
    %v1457 = vunpack.c.l.s4 1983009808
    %v1458 = vunpack.c.0.s8 %v1457
    %v1459 = vlaneseq
    %v1460 = vshrl.u32 %v1459, 7
    %v1461 = vsub.s32 %v1458, %v1460
    %v1462 = vrot.slane %v1448, %v1461
    %v1463 = vcombine.low %v1439, %v1455
    %v1464 = vcombine.high %v1439, %v1455
    %v1466 = vunpack.c.l.s4 1934713408
    %v1467 = vunpack.c.0.s8 %v1466
    %v1468 = vlaneseq
    %v1469 = vshrl.u32 %v1468, 7
    %v1470 = vsub.s32 %v1467, %v1469
    %v1471 = vrot.slane %v1463, %v1470
    %v1473 = vunpack.c.l.s4 1934713408
    %v1474 = vunpack.c.0.s8 %v1473
    %v1475 = vlaneseq
    %v1476 = vshrl.u32 %v1475, 7
    %v1477 = vsub.s32 %v1474, %v1476
    %v1478 = vrot.slane %v1464, %v1477
    %v1479 = vcombine.low %v1446, %v1462
    %v1480 = vcombine.high %v1446, %v1462
    %v1482 = vunpack.c.l.s4 1934713408
    %v1483 = vunpack.c.0.s8 %v1482
    %v1484 = vlaneseq
    %v1485 = vshrl.u32 %v1484, 7
    %v1486 = vsub.s32 %v1483, %v1485
    %v1487 = vrot.slane %v1479, %v1486
    %v1489 = vunpack.c.l.s4 1934713408
    %v1490 = vunpack.c.0.s8 %v1489
    %v1491 = vlaneseq
    %v1492 = vshrl.u32 %v1491, 7
    %v1493 = vsub.s32 %v1490, %v1492
    %v1494 = vrot.slane %v1480, %v1493
    %v1495 = vcombine.high %v1471, 0.0
    %v1496 = vcombine.high %v1478, 0.0
    %v1497 = vcombine.high %v1487, 0.0
    %v1498 = vcombine.high %v1494, 0.0
    %v1499 = vcombine.low %v434, %v1188
    %v1500 = vcombine.high %v434, %v1188
    %v1502 = vunpack.c.l.s4 1983009808
    %v1503 = vunpack.c.0.s8 %v1502
    %v1504 = vlaneseq
    %v1505 = vshrl.u32 %v1504, 7
    %v1506 = vsub.s32 %v1503, %v1505
    %v1507 = vrot.slane %v1499, %v1506
    %v1509 = vunpack.c.l.s4 1983009808
    %v1510 = vunpack.c.0.s8 %v1509
    %v1511 = vlaneseq
    %v1512 = vshrl.u32 %v1511, 7
    %v1513 = vsub.s32 %v1510, %v1512
    %v1514 = vrot.slane %v1500, %v1513
    %v1515 = vcombine.low %v1164, %v1212
    %v1516 = vcombine.high %v1164, %v1212
    %v1518 = vunpack.c.l.s4 1983009808
    %v1519 = vunpack.c.0.s8 %v1518
    %v1520 = vlaneseq
    %v1521 = vshrl.u32 %v1520, 7
    %v1522 = vsub.s32 %v1519, %v1521
    %v1523 = vrot.slane %v1515, %v1522
    %v1525 = vunpack.c.l.s4 1983009808
    %v1526 = vunpack.c.0.s8 %v1525
    %v1527 = vlaneseq
    %v1528 = vshrl.u32 %v1527, 7
    %v1529 = vsub.s32 %v1526, %v1528
    %v1530 = vrot.slane %v1516, %v1529
    %v1531 = vcombine.low %v1507, %v1523
    %v1532 = vcombine.high %v1507, %v1523
    %v1534 = vunpack.c.l.s4 1934713408
    %v1535 = vunpack.c.0.s8 %v1534
    %v1536 = vlaneseq
    %v1537 = vshrl.u32 %v1536, 7
    %v1538 = vsub.s32 %v1535, %v1537
    %v1539 = vrot.slane %v1531, %v1538
    %v1541 = vunpack.c.l.s4 1934713408
    %v1542 = vunpack.c.0.s8 %v1541
    %v1543 = vlaneseq
    %v1544 = vshrl.u32 %v1543, 7
    %v1545 = vsub.s32 %v1542, %v1544
    %v1546 = vrot.slane %v1532, %v1545
    %v1547 = vcombine.low %v1514, %v1530
    %v1548 = vcombine.high %v1514, %v1530
    %v1550 = vunpack.c.l.s4 1934713408
    %v1551 = vunpack.c.0.s8 %v1550
    %v1552 = vlaneseq
    %v1553 = vshrl.u32 %v1552, 7
    %v1554 = vsub.s32 %v1551, %v1553
    %v1555 = vrot.slane %v1547, %v1554
    %v1557 = vunpack.c.l.s4 1934713408
    %v1558 = vunpack.c.0.s8 %v1557
    %v1559 = vlaneseq
    %v1560 = vshrl.u32 %v1559, 7
    %v1561 = vsub.s32 %v1558, %v1560
    %v1562 = vrot.slane %v1548, %v1561
    %v1563 = vcombine.high %v1539, 0.0
    %v1564 = vcombine.high %v1546, 0.0
    %v1565 = vcombine.high %v1555, 0.0
    %v1566 = vcombine.high %v1562, 0.0
    %v1567 = vcombine.low %v438, %v1190
    %v1568 = vcombine.high %v438, %v1190
    %v1570 = vunpack.c.l.s4 1983009808
    %v1571 = vunpack.c.0.s8 %v1570
    %v1572 = vlaneseq
    %v1573 = vshrl.u32 %v1572, 7
    %v1574 = vsub.s32 %v1571, %v1573
    %v1575 = vrot.slane %v1567, %v1574
    %v1577 = vunpack.c.l.s4 1983009808
    %v1578 = vunpack.c.0.s8 %v1577
    %v1579 = vlaneseq
    %v1580 = vshrl.u32 %v1579, 7
    %v1581 = vsub.s32 %v1578, %v1580
    %v1582 = vrot.slane %v1568, %v1581
    %v1583 = vcombine.low %v1166, %v1214
    %v1584 = vcombine.high %v1166, %v1214
    %v1586 = vunpack.c.l.s4 1983009808
    %v1587 = vunpack.c.0.s8 %v1586
    %v1588 = vlaneseq
    %v1589 = vshrl.u32 %v1588, 7
    %v1590 = vsub.s32 %v1587, %v1589
    %v1591 = vrot.slane %v1583, %v1590
    %v1593 = vunpack.c.l.s4 1983009808
    %v1594 = vunpack.c.0.s8 %v1593
    %v1595 = vlaneseq
    %v1596 = vshrl.u32 %v1595, 7
    %v1597 = vsub.s32 %v1594, %v1596
    %v1598 = vrot.slane %v1584, %v1597
    %v1599 = vcombine.low %v1575, %v1591
    %v1600 = vcombine.high %v1575, %v1591
    %v1602 = vunpack.c.l.s4 1934713408
    %v1603 = vunpack.c.0.s8 %v1602
    %v1604 = vlaneseq
    %v1605 = vshrl.u32 %v1604, 7
    %v1606 = vsub.s32 %v1603, %v1605
    %v1607 = vrot.slane %v1599, %v1606
    %v1609 = vunpack.c.l.s4 1934713408
    %v1610 = vunpack.c.0.s8 %v1609
    %v1611 = vlaneseq
    %v1612 = vshrl.u32 %v1611, 7
    %v1613 = vsub.s32 %v1610, %v1612
    %v1614 = vrot.slane %v1600, %v1613
    %v1615 = vcombine.low %v1582, %v1598
    %v1616 = vcombine.high %v1582, %v1598
    %v1618 = vunpack.c.l.s4 1934713408
    %v1619 = vunpack.c.0.s8 %v1618
    %v1620 = vlaneseq
    %v1621 = vshrl.u32 %v1620, 7
    %v1622 = vsub.s32 %v1619, %v1621
    %v1623 = vrot.slane %v1615, %v1622
    %v1625 = vunpack.c.l.s4 1934713408
    %v1626 = vunpack.c.0.s8 %v1625
    %v1627 = vlaneseq
    %v1628 = vshrl.u32 %v1627, 7
    %v1629 = vsub.s32 %v1626, %v1628
    %v1630 = vrot.slane %v1616, %v1629
    %v1631 = vcombine.high %v1607, 0.0
    %v1632 = vcombine.high %v1614, 0.0
    %v1633 = vcombine.high %v1623, 0.0
    %v1634 = vcombine.high %v1630, 0.0
    %v1635 = vcombine.low %v444, %v1192
    %v1636 = vcombine.high %v444, %v1192
    %v1638 = vunpack.c.l.s4 1983009808
    %v1639 = vunpack.c.0.s8 %v1638
    %v1640 = vlaneseq
    %v1641 = vshrl.u32 %v1640, 7
    %v1642 = vsub.s32 %v1639, %v1641
    %v1643 = vrot.slane %v1635, %v1642
    %v1645 = vunpack.c.l.s4 1983009808
    %v1646 = vunpack.c.0.s8 %v1645
    %v1647 = vlaneseq
    %v1648 = vshrl.u32 %v1647, 7
    %v1649 = vsub.s32 %v1646, %v1648
    %v1650 = vrot.slane %v1636, %v1649
    %v1651 = vcombine.low %v1168, %v1216
    %v1652 = vcombine.high %v1168, %v1216
    %v1654 = vunpack.c.l.s4 1983009808
    %v1655 = vunpack.c.0.s8 %v1654
    %v1656 = vlaneseq
    %v1657 = vshrl.u32 %v1656, 7
    %v1658 = vsub.s32 %v1655, %v1657
    %v1659 = vrot.slane %v1651, %v1658
    %v1661 = vunpack.c.l.s4 1983009808
    %v1662 = vunpack.c.0.s8 %v1661
    %v1663 = vlaneseq
    %v1664 = vshrl.u32 %v1663, 7
    %v1665 = vsub.s32 %v1662, %v1664
    %v1666 = vrot.slane %v1652, %v1665
    %v1667 = vcombine.low %v1643, %v1659
    %v1668 = vcombine.high %v1643, %v1659
    %v1670 = vunpack.c.l.s4 1934713408
    %v1671 = vunpack.c.0.s8 %v1670
    %v1672 = vlaneseq
    %v1673 = vshrl.u32 %v1672, 7
    %v1674 = vsub.s32 %v1671, %v1673
    %v1675 = vrot.slane %v1667, %v1674
    %v1677 = vunpack.c.l.s4 1934713408
    %v1678 = vunpack.c.0.s8 %v1677
    %v1679 = vlaneseq
    %v1680 = vshrl.u32 %v1679, 7
    %v1681 = vsub.s32 %v1678, %v1680
    %v1682 = vrot.slane %v1668, %v1681
    %v1683 = vcombine.low %v1650, %v1666
    %v1684 = vcombine.high %v1650, %v1666
    %v1686 = vunpack.c.l.s4 1934713408
    %v1687 = vunpack.c.0.s8 %v1686
    %v1688 = vlaneseq
    %v1689 = vshrl.u32 %v1688, 7
    %v1690 = vsub.s32 %v1687, %v1689
    %v1691 = vrot.slane %v1683, %v1690
    %v1693 = vunpack.c.l.s4 1934713408
    %v1694 = vunpack.c.0.s8 %v1693
    %v1695 = vlaneseq
    %v1696 = vshrl.u32 %v1695, 7
    %v1697 = vsub.s32 %v1694, %v1696
    %v1698 = vrot.slane %v1684, %v1697
    %v1699 = vcombine.high %v1675, 0.0
    %v1700 = vcombine.high %v1682, 0.0
    %v1701 = vcombine.high %v1691, 0.0
    %v1702 = vcombine.high %v1698, 0.0
    %v1703 = vcombine.low %v448, %v1194
    %v1704 = vcombine.high %v448, %v1194
    %v1706 = vunpack.c.l.s4 1983009808
    %v1707 = vunpack.c.0.s8 %v1706
    %v1708 = vlaneseq
    %v1709 = vshrl.u32 %v1708, 7
    %v1710 = vsub.s32 %v1707, %v1709
    %v1711 = vrot.slane %v1703, %v1710
    %v1713 = vunpack.c.l.s4 1983009808
    %v1714 = vunpack.c.0.s8 %v1713
    %v1715 = vlaneseq
    %v1716 = vshrl.u32 %v1715, 7
    %v1717 = vsub.s32 %v1714, %v1716
    %v1718 = vrot.slane %v1704, %v1717
    %v1719 = vcombine.low %v1170, %v1218
    %v1720 = vcombine.high %v1170, %v1218
    %v1722 = vunpack.c.l.s4 1983009808
    %v1723 = vunpack.c.0.s8 %v1722
    %v1724 = vlaneseq
    %v1725 = vshrl.u32 %v1724, 7
    %v1726 = vsub.s32 %v1723, %v1725
    %v1727 = vrot.slane %v1719, %v1726
    %v1729 = vunpack.c.l.s4 1983009808
    %v1730 = vunpack.c.0.s8 %v1729
    %v1731 = vlaneseq
    %v1732 = vshrl.u32 %v1731, 7
    %v1733 = vsub.s32 %v1730, %v1732
    %v1734 = vrot.slane %v1720, %v1733
    %v1735 = vcombine.low %v1711, %v1727
    %v1736 = vcombine.high %v1711, %v1727
    %v1738 = vunpack.c.l.s4 1934713408
    %v1739 = vunpack.c.0.s8 %v1738
    %v1740 = vlaneseq
    %v1741 = vshrl.u32 %v1740, 7
    %v1742 = vsub.s32 %v1739, %v1741
    %v1743 = vrot.slane %v1735, %v1742
    %v1745 = vunpack.c.l.s4 1934713408
    %v1746 = vunpack.c.0.s8 %v1745
    %v1747 = vlaneseq
    %v1748 = vshrl.u32 %v1747, 7
    %v1749 = vsub.s32 %v1746, %v1748
    %v1750 = vrot.slane %v1736, %v1749
    %v1751 = vcombine.low %v1718, %v1734
    %v1752 = vcombine.high %v1718, %v1734
    %v1754 = vunpack.c.l.s4 1934713408
    %v1755 = vunpack.c.0.s8 %v1754
    %v1756 = vlaneseq
    %v1757 = vshrl.u32 %v1756, 7
    %v1758 = vsub.s32 %v1755, %v1757
    %v1759 = vrot.slane %v1751, %v1758
    %v1761 = vunpack.c.l.s4 1934713408
    %v1762 = vunpack.c.0.s8 %v1761
    %v1763 = vlaneseq
    %v1764 = vshrl.u32 %v1763, 7
    %v1765 = vsub.s32 %v1762, %v1764
    %v1766 = vrot.slane %v1752, %v1765
    %v1767 = vcombine.high %v1743, 0.0
    %v1768 = vcombine.high %v1750, 0.0
    %v1769 = vcombine.high %v1759, 0.0
    %v1770 = vcombine.high %v1766, 0.0
    %1779 = vrot.lane.b32.xlu0 %v485, 96
    %v1780 = vpop.permute.xlu0 %1779
    %1781 = vrot.lane.b32.xlu0 %v488, 96
    %v1782 = vpop.permute.xlu0 %1781
    %1783 = vrot.lane.b32.xlu0 %v493, 96
    %v1784 = vpop.permute.xlu0 %1783
    %1785 = vrot.lane.b32.xlu0 %v496, 96
    %v1786 = vpop.permute.xlu0 %1785
    %1787 = vrot.lane.b32.xlu0 %v501, 96
    %v1788 = vpop.permute.xlu0 %1787
    %1789 = vrot.lane.b32.xlu0 %v504, 96
    %v1790 = vpop.permute.xlu0 %1789
    %1791 = vrot.lane.b32.xlu0 %v509, 96
    %v1792 = vpop.permute.xlu0 %1791
    %1793 = vrot.lane.b32.xlu0 %v512, 96
    %v1794 = vpop.permute.xlu0 %1793
    %1803 = vrot.lane.b32.xlu0 %v485, 64
    %v1804 = vpop.permute.xlu0 %1803
    %1805 = vrot.lane.b32.xlu0 %v488, 64
    %v1806 = vpop.permute.xlu0 %1805
    %1807 = vrot.lane.b32.xlu0 %v493, 64
    %v1808 = vpop.permute.xlu0 %1807
    %1809 = vrot.lane.b32.xlu0 %v496, 64
    %v1810 = vpop.permute.xlu0 %1809
    %1811 = vrot.lane.b32.xlu0 %v501, 64
    %v1812 = vpop.permute.xlu0 %1811
    %1813 = vrot.lane.b32.xlu0 %v504, 64
    %v1814 = vpop.permute.xlu0 %1813
    %1815 = vrot.lane.b32.xlu0 %v509, 64
    %v1816 = vpop.permute.xlu0 %1815
    %1817 = vrot.lane.b32.xlu0 %v512, 64
    %v1818 = vpop.permute.xlu0 %1817
    %1827 = vrot.lane.b32.xlu0 %v485, 32
    %v1828 = vpop.permute.xlu0 %1827
    %1829 = vrot.lane.b32.xlu0 %v488, 32
    %v1830 = vpop.permute.xlu0 %1829
    %1831 = vrot.lane.b32.xlu0 %v493, 32
    %v1832 = vpop.permute.xlu0 %1831
    %1833 = vrot.lane.b32.xlu0 %v496, 32
    %v1834 = vpop.permute.xlu0 %1833
    %1835 = vrot.lane.b32.xlu0 %v501, 32
    %v1836 = vpop.permute.xlu0 %1835
    %1837 = vrot.lane.b32.xlu0 %v504, 32
    %v1838 = vpop.permute.xlu0 %1837
    %1839 = vrot.lane.b32.xlu0 %v509, 32
    %v1840 = vpop.permute.xlu0 %1839
    %1841 = vrot.lane.b32.xlu0 %v512, 32
    %v1842 = vpop.permute.xlu0 %1841
    %v1851 = vcombine.low %v485, %v1804
    %v1852 = vcombine.high %v485, %v1804
    %v1854 = vunpack.c.l.s4 1983009808
    %v1855 = vunpack.c.0.s8 %v1854
    %v1856 = vlaneseq
    %v1857 = vshrl.u32 %v1856, 7
    %v1858 = vsub.s32 %v1855, %v1857
    %v1859 = vrot.slane %v1851, %v1858
    %v1861 = vunpack.c.l.s4 1983009808
    %v1862 = vunpack.c.0.s8 %v1861
    %v1863 = vlaneseq
    %v1864 = vshrl.u32 %v1863, 7
    %v1865 = vsub.s32 %v1862, %v1864
    %v1866 = vrot.slane %v1852, %v1865
    %v1867 = vcombine.low %v1780, %v1828
    %v1868 = vcombine.high %v1780, %v1828
    %v1870 = vunpack.c.l.s4 1983009808
    %v1871 = vunpack.c.0.s8 %v1870
    %v1872 = vlaneseq
    %v1873 = vshrl.u32 %v1872, 7
    %v1874 = vsub.s32 %v1871, %v1873
    %v1875 = vrot.slane %v1867, %v1874
    %v1877 = vunpack.c.l.s4 1983009808
    %v1878 = vunpack.c.0.s8 %v1877
    %v1879 = vlaneseq
    %v1880 = vshrl.u32 %v1879, 7
    %v1881 = vsub.s32 %v1878, %v1880
    %v1882 = vrot.slane %v1868, %v1881
    %v1883 = vcombine.low %v1859, %v1875
    %v1884 = vcombine.high %v1859, %v1875
    %v1886 = vunpack.c.l.s4 1934713408
    %v1887 = vunpack.c.0.s8 %v1886
    %v1888 = vlaneseq
    %v1889 = vshrl.u32 %v1888, 7
    %v1890 = vsub.s32 %v1887, %v1889
    %v1891 = vrot.slane %v1883, %v1890
    %v1893 = vunpack.c.l.s4 1934713408
    %v1894 = vunpack.c.0.s8 %v1893
    %v1895 = vlaneseq
    %v1896 = vshrl.u32 %v1895, 7
    %v1897 = vsub.s32 %v1894, %v1896
    %v1898 = vrot.slane %v1884, %v1897
    %v1899 = vcombine.low %v1866, %v1882
    %v1900 = vcombine.high %v1866, %v1882
    %v1902 = vunpack.c.l.s4 1934713408
    %v1903 = vunpack.c.0.s8 %v1902
    %v1904 = vlaneseq
    %v1905 = vshrl.u32 %v1904, 7
    %v1906 = vsub.s32 %v1903, %v1905
    %v1907 = vrot.slane %v1899, %v1906
    %v1909 = vunpack.c.l.s4 1934713408
    %v1910 = vunpack.c.0.s8 %v1909
    %v1911 = vlaneseq
    %v1912 = vshrl.u32 %v1911, 7
    %v1913 = vsub.s32 %v1910, %v1912
    %v1914 = vrot.slane %v1900, %v1913
    %v1915 = vcombine.high %v1891, 0.0
    %v1916 = vcombine.high %v1898, 0.0
    %v1917 = vcombine.high %v1907, 0.0
    %v1918 = vcombine.high %v1914, 0.0
    %v1919 = vcombine.low %v488, %v1806
    %v1920 = vcombine.high %v488, %v1806
    %v1922 = vunpack.c.l.s4 1983009808
    %v1923 = vunpack.c.0.s8 %v1922
    %v1924 = vlaneseq
    %v1925 = vshrl.u32 %v1924, 7
    %v1926 = vsub.s32 %v1923, %v1925
    %v1927 = vrot.slane %v1919, %v1926
    %v1929 = vunpack.c.l.s4 1983009808
    %v1930 = vunpack.c.0.s8 %v1929
    %v1931 = vlaneseq
    %v1932 = vshrl.u32 %v1931, 7
    %v1933 = vsub.s32 %v1930, %v1932
    %v1934 = vrot.slane %v1920, %v1933
    %v1935 = vcombine.low %v1782, %v1830
    %v1936 = vcombine.high %v1782, %v1830
    %v1938 = vunpack.c.l.s4 1983009808
    %v1939 = vunpack.c.0.s8 %v1938
    %v1940 = vlaneseq
    %v1941 = vshrl.u32 %v1940, 7
    %v1942 = vsub.s32 %v1939, %v1941
    %v1943 = vrot.slane %v1935, %v1942
    %v1945 = vunpack.c.l.s4 1983009808
    %v1946 = vunpack.c.0.s8 %v1945
    %v1947 = vlaneseq
    %v1948 = vshrl.u32 %v1947, 7
    %v1949 = vsub.s32 %v1946, %v1948
    %v1950 = vrot.slane %v1936, %v1949
    %v1951 = vcombine.low %v1927, %v1943
    %v1952 = vcombine.high %v1927, %v1943
    %v1954 = vunpack.c.l.s4 1934713408
    %v1955 = vunpack.c.0.s8 %v1954
    %v1956 = vlaneseq
    %v1957 = vshrl.u32 %v1956, 7
    %v1958 = vsub.s32 %v1955, %v1957
    %v1959 = vrot.slane %v1951, %v1958
    %v1961 = vunpack.c.l.s4 1934713408
    %v1962 = vunpack.c.0.s8 %v1961
    %v1963 = vlaneseq
    %v1964 = vshrl.u32 %v1963, 7
    %v1965 = vsub.s32 %v1962, %v1964
    %v1966 = vrot.slane %v1952, %v1965
    %v1967 = vcombine.low %v1934, %v1950
    %v1968 = vcombine.high %v1934, %v1950
    %v1970 = vunpack.c.l.s4 1934713408
    %v1971 = vunpack.c.0.s8 %v1970
    %v1972 = vlaneseq
    %v1973 = vshrl.u32 %v1972, 7
    %v1974 = vsub.s32 %v1971, %v1973
    %v1975 = vrot.slane %v1967, %v1974
    %v1977 = vunpack.c.l.s4 1934713408
    %v1978 = vunpack.c.0.s8 %v1977
    %v1979 = vlaneseq
    %v1980 = vshrl.u32 %v1979, 7
    %v1981 = vsub.s32 %v1978, %v1980
    %v1982 = vrot.slane %v1968, %v1981
    %v1983 = vcombine.high %v1959, 0.0
    %v1984 = vcombine.high %v1966, 0.0
    %v1985 = vcombine.high %v1975, 0.0
    %v1986 = vcombine.high %v1982, 0.0
    %v1987 = vcombine.low %v493, %v1808
    %v1988 = vcombine.high %v493, %v1808
    %v1990 = vunpack.c.l.s4 1983009808
    %v1991 = vunpack.c.0.s8 %v1990
    %v1992 = vlaneseq
    %v1993 = vshrl.u32 %v1992, 7
    %v1994 = vsub.s32 %v1991, %v1993
    %v1995 = vrot.slane %v1987, %v1994
    %v1997 = vunpack.c.l.s4 1983009808
    %v1998 = vunpack.c.0.s8 %v1997
    %v1999 = vlaneseq
    %v2000 = vshrl.u32 %v1999, 7
    %v2001 = vsub.s32 %v1998, %v2000
    %v2002 = vrot.slane %v1988, %v2001
    %v2003 = vcombine.low %v1784, %v1832
    %v2004 = vcombine.high %v1784, %v1832
    %v2006 = vunpack.c.l.s4 1983009808
    %v2007 = vunpack.c.0.s8 %v2006
    %v2008 = vlaneseq
    %v2009 = vshrl.u32 %v2008, 7
    %v2010 = vsub.s32 %v2007, %v2009
    %v2011 = vrot.slane %v2003, %v2010
    %v2013 = vunpack.c.l.s4 1983009808
    %v2014 = vunpack.c.0.s8 %v2013
    %v2015 = vlaneseq
    %v2016 = vshrl.u32 %v2015, 7
    %v2017 = vsub.s32 %v2014, %v2016
    %v2018 = vrot.slane %v2004, %v2017
    %v2019 = vcombine.low %v1995, %v2011
    %v2020 = vcombine.high %v1995, %v2011
    %v2022 = vunpack.c.l.s4 1934713408
    %v2023 = vunpack.c.0.s8 %v2022
    %v2024 = vlaneseq
    %v2025 = vshrl.u32 %v2024, 7
    %v2026 = vsub.s32 %v2023, %v2025
    %v2027 = vrot.slane %v2019, %v2026
    %v2029 = vunpack.c.l.s4 1934713408
    %v2030 = vunpack.c.0.s8 %v2029
    %v2031 = vlaneseq
    %v2032 = vshrl.u32 %v2031, 7
    %v2033 = vsub.s32 %v2030, %v2032
    %v2034 = vrot.slane %v2020, %v2033
    %v2035 = vcombine.low %v2002, %v2018
    %v2036 = vcombine.high %v2002, %v2018
    %v2038 = vunpack.c.l.s4 1934713408
    %v2039 = vunpack.c.0.s8 %v2038
    %v2040 = vlaneseq
    %v2041 = vshrl.u32 %v2040, 7
    %v2042 = vsub.s32 %v2039, %v2041
    %v2043 = vrot.slane %v2035, %v2042
    %v2045 = vunpack.c.l.s4 1934713408
    %v2046 = vunpack.c.0.s8 %v2045
    %v2047 = vlaneseq
    %v2048 = vshrl.u32 %v2047, 7
    %v2049 = vsub.s32 %v2046, %v2048
    %v2050 = vrot.slane %v2036, %v2049
    %v2051 = vcombine.high %v2027, 0.0
    %v2052 = vcombine.high %v2034, 0.0
    %v2053 = vcombine.high %v2043, 0.0
    %v2054 = vcombine.high %v2050, 0.0
    %v2055 = vcombine.low %v496, %v1810
    %v2056 = vcombine.high %v496, %v1810
    %v2058 = vunpack.c.l.s4 1983009808
    %v2059 = vunpack.c.0.s8 %v2058
    %v2060 = vlaneseq
    %v2061 = vshrl.u32 %v2060, 7
    %v2062 = vsub.s32 %v2059, %v2061
    %v2063 = vrot.slane %v2055, %v2062
    %v2065 = vunpack.c.l.s4 1983009808
    %v2066 = vunpack.c.0.s8 %v2065
    %v2067 = vlaneseq
    %v2068 = vshrl.u32 %v2067, 7
    %v2069 = vsub.s32 %v2066, %v2068
    %v2070 = vrot.slane %v2056, %v2069
    %v2071 = vcombine.low %v1786, %v1834
    %v2072 = vcombine.high %v1786, %v1834
    %v2074 = vunpack.c.l.s4 1983009808
    %v2075 = vunpack.c.0.s8 %v2074
    %v2076 = vlaneseq
    %v2077 = vshrl.u32 %v2076, 7
    %v2078 = vsub.s32 %v2075, %v2077
    %v2079 = vrot.slane %v2071, %v2078
    %v2081 = vunpack.c.l.s4 1983009808
    %v2082 = vunpack.c.0.s8 %v2081
    %v2083 = vlaneseq
    %v2084 = vshrl.u32 %v2083, 7
    %v2085 = vsub.s32 %v2082, %v2084
    %v2086 = vrot.slane %v2072, %v2085
    %v2087 = vcombine.low %v2063, %v2079
    %v2088 = vcombine.high %v2063, %v2079
    %v2090 = vunpack.c.l.s4 1934713408
    %v2091 = vunpack.c.0.s8 %v2090
    %v2092 = vlaneseq
    %v2093 = vshrl.u32 %v2092, 7
    %v2094 = vsub.s32 %v2091, %v2093
    %v2095 = vrot.slane %v2087, %v2094
    %v2097 = vunpack.c.l.s4 1934713408
    %v2098 = vunpack.c.0.s8 %v2097
    %v2099 = vlaneseq
    %v2100 = vshrl.u32 %v2099, 7
    %v2101 = vsub.s32 %v2098, %v2100
    %v2102 = vrot.slane %v2088, %v2101
    %v2103 = vcombine.low %v2070, %v2086
    %v2104 = vcombine.high %v2070, %v2086
    %v2106 = vunpack.c.l.s4 1934713408
    %v2107 = vunpack.c.0.s8 %v2106
    %v2108 = vlaneseq
    %v2109 = vshrl.u32 %v2108, 7
    %v2110 = vsub.s32 %v2107, %v2109
    %v2111 = vrot.slane %v2103, %v2110
    %v2113 = vunpack.c.l.s4 1934713408
    %v2114 = vunpack.c.0.s8 %v2113
    %v2115 = vlaneseq
    %v2116 = vshrl.u32 %v2115, 7
    %v2117 = vsub.s32 %v2114, %v2116
    %v2118 = vrot.slane %v2104, %v2117
    %v2119 = vcombine.high %v2095, 0.0
    %v2120 = vcombine.high %v2102, 0.0
    %v2121 = vcombine.high %v2111, 0.0
    %v2122 = vcombine.high %v2118, 0.0
    %v2123 = vcombine.low %v501, %v1812
    %v2124 = vcombine.high %v501, %v1812
    %v2126 = vunpack.c.l.s4 1983009808
    %v2127 = vunpack.c.0.s8 %v2126
    %v2128 = vlaneseq
    %v2129 = vshrl.u32 %v2128, 7
    %v2130 = vsub.s32 %v2127, %v2129
    %v2131 = vrot.slane %v2123, %v2130
    %v2133 = vunpack.c.l.s4 1983009808
    %v2134 = vunpack.c.0.s8 %v2133
    %v2135 = vlaneseq
    %v2136 = vshrl.u32 %v2135, 7
    %v2137 = vsub.s32 %v2134, %v2136
    %v2138 = vrot.slane %v2124, %v2137
    %v2139 = vcombine.low %v1788, %v1836
    %v2140 = vcombine.high %v1788, %v1836
    %v2142 = vunpack.c.l.s4 1983009808
    %v2143 = vunpack.c.0.s8 %v2142
    %v2144 = vlaneseq
    %v2145 = vshrl.u32 %v2144, 7
    %v2146 = vsub.s32 %v2143, %v2145
    %v2147 = vrot.slane %v2139, %v2146
    %v2149 = vunpack.c.l.s4 1983009808
    %v2150 = vunpack.c.0.s8 %v2149
    %v2151 = vlaneseq
    %v2152 = vshrl.u32 %v2151, 7
    %v2153 = vsub.s32 %v2150, %v2152
    %v2154 = vrot.slane %v2140, %v2153
    %v2155 = vcombine.low %v2131, %v2147
    %v2156 = vcombine.high %v2131, %v2147
    %v2158 = vunpack.c.l.s4 1934713408
    %v2159 = vunpack.c.0.s8 %v2158
    %v2160 = vlaneseq
    %v2161 = vshrl.u32 %v2160, 7
    %v2162 = vsub.s32 %v2159, %v2161
    %v2163 = vrot.slane %v2155, %v2162
    %v2165 = vunpack.c.l.s4 1934713408
    %v2166 = vunpack.c.0.s8 %v2165
    %v2167 = vlaneseq
    %v2168 = vshrl.u32 %v2167, 7
    %v2169 = vsub.s32 %v2166, %v2168
    %v2170 = vrot.slane %v2156, %v2169
    %v2171 = vcombine.low %v2138, %v2154
    %v2172 = vcombine.high %v2138, %v2154
    %v2174 = vunpack.c.l.s4 1934713408
    %v2175 = vunpack.c.0.s8 %v2174
    %v2176 = vlaneseq
    %v2177 = vshrl.u32 %v2176, 7
    %v2178 = vsub.s32 %v2175, %v2177
    %v2179 = vrot.slane %v2171, %v2178
    %v2181 = vunpack.c.l.s4 1934713408
    %v2182 = vunpack.c.0.s8 %v2181
    %v2183 = vlaneseq
    %v2184 = vshrl.u32 %v2183, 7
    %v2185 = vsub.s32 %v2182, %v2184
    %v2186 = vrot.slane %v2172, %v2185
    %v2187 = vcombine.high %v2163, 0.0
    %v2188 = vcombine.high %v2170, 0.0
    %v2189 = vcombine.high %v2179, 0.0
    %v2190 = vcombine.high %v2186, 0.0
    %v2191 = vcombine.low %v504, %v1814
    %v2192 = vcombine.high %v504, %v1814
    %v2194 = vunpack.c.l.s4 1983009808
    %v2195 = vunpack.c.0.s8 %v2194
    %v2196 = vlaneseq
    %v2197 = vshrl.u32 %v2196, 7
    %v2198 = vsub.s32 %v2195, %v2197
    %v2199 = vrot.slane %v2191, %v2198
    %v2201 = vunpack.c.l.s4 1983009808
    %v2202 = vunpack.c.0.s8 %v2201
    %v2203 = vlaneseq
    %v2204 = vshrl.u32 %v2203, 7
    %v2205 = vsub.s32 %v2202, %v2204
    %v2206 = vrot.slane %v2192, %v2205
    %v2207 = vcombine.low %v1790, %v1838
    %v2208 = vcombine.high %v1790, %v1838
    %v2210 = vunpack.c.l.s4 1983009808
    %v2211 = vunpack.c.0.s8 %v2210
    %v2212 = vlaneseq
    %v2213 = vshrl.u32 %v2212, 7
    %v2214 = vsub.s32 %v2211, %v2213
    %v2215 = vrot.slane %v2207, %v2214
    %v2217 = vunpack.c.l.s4 1983009808
    %v2218 = vunpack.c.0.s8 %v2217
    %v2219 = vlaneseq
    %v2220 = vshrl.u32 %v2219, 7
    %v2221 = vsub.s32 %v2218, %v2220
    %v2222 = vrot.slane %v2208, %v2221
    %v2223 = vcombine.low %v2199, %v2215
    %v2224 = vcombine.high %v2199, %v2215
    %v2226 = vunpack.c.l.s4 1934713408
    %v2227 = vunpack.c.0.s8 %v2226
    %v2228 = vlaneseq
    %v2229 = vshrl.u32 %v2228, 7
    %v2230 = vsub.s32 %v2227, %v2229
    %v2231 = vrot.slane %v2223, %v2230
    %v2233 = vunpack.c.l.s4 1934713408
    %v2234 = vunpack.c.0.s8 %v2233
    %v2235 = vlaneseq
    %v2236 = vshrl.u32 %v2235, 7
    %v2237 = vsub.s32 %v2234, %v2236
    %v2238 = vrot.slane %v2224, %v2237
    %v2239 = vcombine.low %v2206, %v2222
    %v2240 = vcombine.high %v2206, %v2222
    %v2242 = vunpack.c.l.s4 1934713408
    %v2243 = vunpack.c.0.s8 %v2242
    %v2244 = vlaneseq
    %v2245 = vshrl.u32 %v2244, 7
    %v2246 = vsub.s32 %v2243, %v2245
    %v2247 = vrot.slane %v2239, %v2246
    %v2249 = vunpack.c.l.s4 1934713408
    %v2250 = vunpack.c.0.s8 %v2249
    %v2251 = vlaneseq
    %v2252 = vshrl.u32 %v2251, 7
    %v2253 = vsub.s32 %v2250, %v2252
    %v2254 = vrot.slane %v2240, %v2253
    %v2255 = vcombine.high %v2231, 0.0
    %v2256 = vcombine.high %v2238, 0.0
    %v2257 = vcombine.high %v2247, 0.0
    %v2258 = vcombine.high %v2254, 0.0
    %v2259 = vcombine.low %v509, %v1816
    %v2260 = vcombine.high %v509, %v1816
    %v2262 = vunpack.c.l.s4 1983009808
    %v2263 = vunpack.c.0.s8 %v2262
    %v2264 = vlaneseq
    %v2265 = vshrl.u32 %v2264, 7
    %v2266 = vsub.s32 %v2263, %v2265
    %v2267 = vrot.slane %v2259, %v2266
    %v2269 = vunpack.c.l.s4 1983009808
    %v2270 = vunpack.c.0.s8 %v2269
    %v2271 = vlaneseq
    %v2272 = vshrl.u32 %v2271, 7
    %v2273 = vsub.s32 %v2270, %v2272
    %v2274 = vrot.slane %v2260, %v2273
    %v2275 = vcombine.low %v1792, %v1840
    %v2276 = vcombine.high %v1792, %v1840
    %v2278 = vunpack.c.l.s4 1983009808
    %v2279 = vunpack.c.0.s8 %v2278
    %v2280 = vlaneseq
    %v2281 = vshrl.u32 %v2280, 7
    %v2282 = vsub.s32 %v2279, %v2281
    %v2283 = vrot.slane %v2275, %v2282
    %v2285 = vunpack.c.l.s4 1983009808
    %v2286 = vunpack.c.0.s8 %v2285
    %v2287 = vlaneseq
    %v2288 = vshrl.u32 %v2287, 7
    %v2289 = vsub.s32 %v2286, %v2288
    %v2290 = vrot.slane %v2276, %v2289
    %v2291 = vcombine.low %v2267, %v2283
    %v2292 = vcombine.high %v2267, %v2283
    %v2294 = vunpack.c.l.s4 1934713408
    %v2295 = vunpack.c.0.s8 %v2294
    %v2296 = vlaneseq
    %v2297 = vshrl.u32 %v2296, 7
    %v2298 = vsub.s32 %v2295, %v2297
    %v2299 = vrot.slane %v2291, %v2298
    %v2301 = vunpack.c.l.s4 1934713408
    %v2302 = vunpack.c.0.s8 %v2301
    %v2303 = vlaneseq
    %v2304 = vshrl.u32 %v2303, 7
    %v2305 = vsub.s32 %v2302, %v2304
    %v2306 = vrot.slane %v2292, %v2305
    %v2307 = vcombine.low %v2274, %v2290
    %v2308 = vcombine.high %v2274, %v2290
    %v2310 = vunpack.c.l.s4 1934713408
    %v2311 = vunpack.c.0.s8 %v2310
    %v2312 = vlaneseq
    %v2313 = vshrl.u32 %v2312, 7
    %v2314 = vsub.s32 %v2311, %v2313
    %v2315 = vrot.slane %v2307, %v2314
    %v2317 = vunpack.c.l.s4 1934713408
    %v2318 = vunpack.c.0.s8 %v2317
    %v2319 = vlaneseq
    %v2320 = vshrl.u32 %v2319, 7
    %v2321 = vsub.s32 %v2318, %v2320
    %v2322 = vrot.slane %v2308, %v2321
    %v2323 = vcombine.high %v2299, 0.0
    %v2324 = vcombine.high %v2306, 0.0
    %v2325 = vcombine.high %v2315, 0.0
    %v2326 = vcombine.high %v2322, 0.0
    %v2327 = vcombine.low %v512, %v1818
    %v2328 = vcombine.high %v512, %v1818
    %v2330 = vunpack.c.l.s4 1983009808
    %v2331 = vunpack.c.0.s8 %v2330
    %v2332 = vlaneseq
    %v2333 = vshrl.u32 %v2332, 7
    %v2334 = vsub.s32 %v2331, %v2333
    %v2335 = vrot.slane %v2327, %v2334
    %v2337 = vunpack.c.l.s4 1983009808
    %v2338 = vunpack.c.0.s8 %v2337
    %v2339 = vlaneseq
    %v2340 = vshrl.u32 %v2339, 7
    %v2341 = vsub.s32 %v2338, %v2340
    %v2342 = vrot.slane %v2328, %v2341
    %v2343 = vcombine.low %v1794, %v1842
    %v2344 = vcombine.high %v1794, %v1842
    %v2346 = vunpack.c.l.s4 1983009808
    %v2347 = vunpack.c.0.s8 %v2346
    %v2348 = vlaneseq
    %v2349 = vshrl.u32 %v2348, 7
    %v2350 = vsub.s32 %v2347, %v2349
    %v2351 = vrot.slane %v2343, %v2350
    %v2353 = vunpack.c.l.s4 1983009808
    %v2354 = vunpack.c.0.s8 %v2353
    %v2355 = vlaneseq
    %v2356 = vshrl.u32 %v2355, 7
    %v2357 = vsub.s32 %v2354, %v2356
    %v2358 = vrot.slane %v2344, %v2357
    %v2359 = vcombine.low %v2335, %v2351
    %v2360 = vcombine.high %v2335, %v2351
    %v2362 = vunpack.c.l.s4 1934713408
    %v2363 = vunpack.c.0.s8 %v2362
    %v2364 = vlaneseq
    %v2365 = vshrl.u32 %v2364, 7
    %v2366 = vsub.s32 %v2363, %v2365
    %v2367 = vrot.slane %v2359, %v2366
    %v2369 = vunpack.c.l.s4 1934713408
    %v2370 = vunpack.c.0.s8 %v2369
    %v2371 = vlaneseq
    %v2372 = vshrl.u32 %v2371, 7
    %v2373 = vsub.s32 %v2370, %v2372
    %v2374 = vrot.slane %v2360, %v2373
    %v2375 = vcombine.low %v2342, %v2358
    %v2376 = vcombine.high %v2342, %v2358
    %v2378 = vunpack.c.l.s4 1934713408
    %v2379 = vunpack.c.0.s8 %v2378
    %v2380 = vlaneseq
    %v2381 = vshrl.u32 %v2380, 7
    %v2382 = vsub.s32 %v2379, %v2381
    %v2383 = vrot.slane %v2375, %v2382
    %v2385 = vunpack.c.l.s4 1934713408
    %v2386 = vunpack.c.0.s8 %v2385
    %v2387 = vlaneseq
    %v2388 = vshrl.u32 %v2387, 7
    %v2389 = vsub.s32 %v2386, %v2388
    %v2390 = vrot.slane %v2376, %v2389
    %v2391 = vcombine.high %v2367, 0.0
    %v2392 = vcombine.high %v2374, 0.0
    %v2393 = vcombine.high %v2383, 0.0
    %v2394 = vcombine.high %v2390, 0.0
    %v2395 = vcombine.low %v643, %v650
    %v2397 = vunpack.c.l.s4 1983009808
    %v2398 = vunpack.c.0.s8 %v2397
    %v2399 = vlaneseq
    %v2400 = vshrl.u32 %v2399, 7
    %v2401 = vsub.s32 %v2398, %v2400
    %v2402 = vrot.slane %v2395, %v2401
    %v2403 = vcombine.low %v667, %v668
    %v2405 = vunpack.c.l.s4 1983009808
    %v2406 = vunpack.c.0.s8 %v2405
    %v2407 = vlaneseq
    %v2408 = vshrl.u32 %v2407, 7
    %v2409 = vsub.s32 %v2406, %v2408
    %v2410 = vrot.slane %v2403, %v2409
    %v2411 = vcombine.low %v659, %v666
    %v2413 = vunpack.c.l.s4 1983009808
    %v2414 = vunpack.c.0.s8 %v2413
    %v2415 = vlaneseq
    %v2416 = vshrl.u32 %v2415, 7
    %v2417 = vsub.s32 %v2414, %v2416
    %v2418 = vrot.slane %v2411, %v2417
    %v2419 = vcombine.low %v669, %v670
    %v2421 = vunpack.c.l.s4 1983009808
    %v2422 = vunpack.c.0.s8 %v2421
    %v2423 = vlaneseq
    %v2424 = vshrl.u32 %v2423, 7
    %v2425 = vsub.s32 %v2422, %v2424
    %v2426 = vrot.slane %v2419, %v2425
    %v2427 = vcombine.low %v2402, %v2410
    %v2428 = vcombine.high %v2402, %v2410
    %v2430 = vunpack.c.l.s4 1934713408
    %v2431 = vunpack.c.0.s8 %v2430
    %v2432 = vlaneseq
    %v2433 = vshrl.u32 %v2432, 7
    %v2434 = vsub.s32 %v2431, %v2433
    %v2435 = vrot.slane %v2427, %v2434
    %v2437 = vunpack.c.l.s4 1934713408
    %v2438 = vunpack.c.0.s8 %v2437
    %v2439 = vlaneseq
    %v2440 = vshrl.u32 %v2439, 7
    %v2441 = vsub.s32 %v2438, %v2440
    %v2442 = vrot.slane %v2428, %v2441
    %v2443 = vcombine.low %v2418, %v2426
    %v2444 = vcombine.high %v2418, %v2426
    %v2446 = vunpack.c.l.s4 1934713408
    %v2447 = vunpack.c.0.s8 %v2446
    %v2448 = vlaneseq
    %v2449 = vshrl.u32 %v2448, 7
    %v2450 = vsub.s32 %v2447, %v2449
    %v2451 = vrot.slane %v2443, %v2450
    %v2453 = vunpack.c.l.s4 1934713408
    %v2454 = vunpack.c.0.s8 %v2453
    %v2455 = vlaneseq
    %v2456 = vshrl.u32 %v2455, 7
    %v2457 = vsub.s32 %v2454, %v2456
    %v2458 = vrot.slane %v2444, %v2457
    %v2459 = vcombine.low %v2435, %v2451
    %v2460 = vcombine.high %v2435, %v2451
    %v2461 = vcombine.low %v2442, %v2458
    %v2462 = vcombine.high %v2442, %v2458
    %v2463 = vcombine.low %v711, %v718
    %v2465 = vunpack.c.l.s4 1983009808
    %v2466 = vunpack.c.0.s8 %v2465
    %v2467 = vlaneseq
    %v2468 = vshrl.u32 %v2467, 7
    %v2469 = vsub.s32 %v2466, %v2468
    %v2470 = vrot.slane %v2463, %v2469
    %v2471 = vcombine.low %v735, %v736
    %v2473 = vunpack.c.l.s4 1983009808
    %v2474 = vunpack.c.0.s8 %v2473
    %v2475 = vlaneseq
    %v2476 = vshrl.u32 %v2475, 7
    %v2477 = vsub.s32 %v2474, %v2476
    %v2478 = vrot.slane %v2471, %v2477
    %v2479 = vcombine.low %v727, %v734
    %v2481 = vunpack.c.l.s4 1983009808
    %v2482 = vunpack.c.0.s8 %v2481
    %v2483 = vlaneseq
    %v2484 = vshrl.u32 %v2483, 7
    %v2485 = vsub.s32 %v2482, %v2484
    %v2486 = vrot.slane %v2479, %v2485
    %v2487 = vcombine.low %v737, %v738
    %v2489 = vunpack.c.l.s4 1983009808
    %v2490 = vunpack.c.0.s8 %v2489
    %v2491 = vlaneseq
    %v2492 = vshrl.u32 %v2491, 7
    %v2493 = vsub.s32 %v2490, %v2492
    %v2494 = vrot.slane %v2487, %v2493
    %v2495 = vcombine.low %v2470, %v2478
    %v2496 = vcombine.high %v2470, %v2478
    %v2498 = vunpack.c.l.s4 1934713408
    %v2499 = vunpack.c.0.s8 %v2498
    %v2500 = vlaneseq
    %v2501 = vshrl.u32 %v2500, 7
    %v2502 = vsub.s32 %v2499, %v2501
    %v2503 = vrot.slane %v2495, %v2502
    %v2505 = vunpack.c.l.s4 1934713408
    %v2506 = vunpack.c.0.s8 %v2505
    %v2507 = vlaneseq
    %v2508 = vshrl.u32 %v2507, 7
    %v2509 = vsub.s32 %v2506, %v2508
    %v2510 = vrot.slane %v2496, %v2509
    %v2511 = vcombine.low %v2486, %v2494
    %v2512 = vcombine.high %v2486, %v2494
    %v2514 = vunpack.c.l.s4 1934713408
    %v2515 = vunpack.c.0.s8 %v2514
    %v2516 = vlaneseq
    %v2517 = vshrl.u32 %v2516, 7
    %v2518 = vsub.s32 %v2515, %v2517
    %v2519 = vrot.slane %v2511, %v2518
    %v2521 = vunpack.c.l.s4 1934713408
    %v2522 = vunpack.c.0.s8 %v2521
    %v2523 = vlaneseq
    %v2524 = vshrl.u32 %v2523, 7
    %v2525 = vsub.s32 %v2522, %v2524
    %v2526 = vrot.slane %v2512, %v2525
    %v2527 = vcombine.low %v2503, %v2519
    %v2528 = vcombine.high %v2503, %v2519
    %v2529 = vcombine.low %v2510, %v2526
    %v2530 = vcombine.high %v2510, %v2526
    %v2531 = vcombine.low %v779, %v786
    %v2533 = vunpack.c.l.s4 1983009808
    %v2534 = vunpack.c.0.s8 %v2533
    %v2535 = vlaneseq
    %v2536 = vshrl.u32 %v2535, 7
    %v2537 = vsub.s32 %v2534, %v2536
    %v2538 = vrot.slane %v2531, %v2537
    %v2539 = vcombine.low %v803, %v804
    %v2541 = vunpack.c.l.s4 1983009808
    %v2542 = vunpack.c.0.s8 %v2541
    %v2543 = vlaneseq
    %v2544 = vshrl.u32 %v2543, 7
    %v2545 = vsub.s32 %v2542, %v2544
    %v2546 = vrot.slane %v2539, %v2545
    %v2547 = vcombine.low %v795, %v802
    %v2549 = vunpack.c.l.s4 1983009808
    %v2550 = vunpack.c.0.s8 %v2549
    %v2551 = vlaneseq
    %v2552 = vshrl.u32 %v2551, 7
    %v2553 = vsub.s32 %v2550, %v2552
    %v2554 = vrot.slane %v2547, %v2553
    %v2555 = vcombine.low %v805, %v806
    %v2557 = vunpack.c.l.s4 1983009808
    %v2558 = vunpack.c.0.s8 %v2557
    %v2559 = vlaneseq
    %v2560 = vshrl.u32 %v2559, 7
    %v2561 = vsub.s32 %v2558, %v2560
    %v2562 = vrot.slane %v2555, %v2561
    %v2563 = vcombine.low %v2538, %v2546
    %v2564 = vcombine.high %v2538, %v2546
    %v2566 = vunpack.c.l.s4 1934713408
    %v2567 = vunpack.c.0.s8 %v2566
    %v2568 = vlaneseq
    %v2569 = vshrl.u32 %v2568, 7
    %v2570 = vsub.s32 %v2567, %v2569
    %v2571 = vrot.slane %v2563, %v2570
    %v2573 = vunpack.c.l.s4 1934713408
    %v2574 = vunpack.c.0.s8 %v2573
    %v2575 = vlaneseq
    %v2576 = vshrl.u32 %v2575, 7
    %v2577 = vsub.s32 %v2574, %v2576
    %v2578 = vrot.slane %v2564, %v2577
    %v2579 = vcombine.low %v2554, %v2562
    %v2580 = vcombine.high %v2554, %v2562
    %v2582 = vunpack.c.l.s4 1934713408
    %v2583 = vunpack.c.0.s8 %v2582
    %v2584 = vlaneseq
    %v2585 = vshrl.u32 %v2584, 7
    %v2586 = vsub.s32 %v2583, %v2585
    %v2587 = vrot.slane %v2579, %v2586
    %v2589 = vunpack.c.l.s4 1934713408
    %v2590 = vunpack.c.0.s8 %v2589
    %v2591 = vlaneseq
    %v2592 = vshrl.u32 %v2591, 7
    %v2593 = vsub.s32 %v2590, %v2592
    %v2594 = vrot.slane %v2580, %v2593
    %v2595 = vcombine.low %v2571, %v2587
    %v2596 = vcombine.high %v2571, %v2587
    %v2597 = vcombine.low %v2578, %v2594
    %v2598 = vcombine.high %v2578, %v2594
    %v2599 = vcombine.low %v847, %v854
    %v2601 = vunpack.c.l.s4 1983009808
    %v2602 = vunpack.c.0.s8 %v2601
    %v2603 = vlaneseq
    %v2604 = vshrl.u32 %v2603, 7
    %v2605 = vsub.s32 %v2602, %v2604
    %v2606 = vrot.slane %v2599, %v2605
    %v2607 = vcombine.low %v871, %v872
    %v2609 = vunpack.c.l.s4 1983009808
    %v2610 = vunpack.c.0.s8 %v2609
    %v2611 = vlaneseq
    %v2612 = vshrl.u32 %v2611, 7
    %v2613 = vsub.s32 %v2610, %v2612
    %v2614 = vrot.slane %v2607, %v2613
    %v2615 = vcombine.low %v863, %v870
    %v2617 = vunpack.c.l.s4 1983009808
    %v2618 = vunpack.c.0.s8 %v2617
    %v2619 = vlaneseq
    %v2620 = vshrl.u32 %v2619, 7
    %v2621 = vsub.s32 %v2618, %v2620
    %v2622 = vrot.slane %v2615, %v2621
    %v2623 = vcombine.low %v873, %v874
    %v2625 = vunpack.c.l.s4 1983009808
    %v2626 = vunpack.c.0.s8 %v2625
    %v2627 = vlaneseq
    %v2628 = vshrl.u32 %v2627, 7
    %v2629 = vsub.s32 %v2626, %v2628
    %v2630 = vrot.slane %v2623, %v2629
    %v2631 = vcombine.low %v2606, %v2614
    %v2632 = vcombine.high %v2606, %v2614
    %v2634 = vunpack.c.l.s4 1934713408
    %v2635 = vunpack.c.0.s8 %v2634
    %v2636 = vlaneseq
    %v2637 = vshrl.u32 %v2636, 7
    %v2638 = vsub.s32 %v2635, %v2637
    %v2639 = vrot.slane %v2631, %v2638
    %v2641 = vunpack.c.l.s4 1934713408
    %v2642 = vunpack.c.0.s8 %v2641
    %v2643 = vlaneseq
    %v2644 = vshrl.u32 %v2643, 7
    %v2645 = vsub.s32 %v2642, %v2644
    %v2646 = vrot.slane %v2632, %v2645
    %v2647 = vcombine.low %v2622, %v2630
    %v2648 = vcombine.high %v2622, %v2630
    %v2650 = vunpack.c.l.s4 1934713408
    %v2651 = vunpack.c.0.s8 %v2650
    %v2652 = vlaneseq
    %v2653 = vshrl.u32 %v2652, 7
    %v2654 = vsub.s32 %v2651, %v2653
    %v2655 = vrot.slane %v2647, %v2654
    %v2657 = vunpack.c.l.s4 1934713408
    %v2658 = vunpack.c.0.s8 %v2657
    %v2659 = vlaneseq
    %v2660 = vshrl.u32 %v2659, 7
    %v2661 = vsub.s32 %v2658, %v2660
    %v2662 = vrot.slane %v2648, %v2661
    %v2663 = vcombine.low %v2639, %v2655
    %v2664 = vcombine.high %v2639, %v2655
    %v2665 = vcombine.low %v2646, %v2662
    %v2666 = vcombine.high %v2646, %v2662
    %v2667 = vcombine.low %v915, %v922
    %v2669 = vunpack.c.l.s4 1983009808
    %v2670 = vunpack.c.0.s8 %v2669
    %v2671 = vlaneseq
    %v2672 = vshrl.u32 %v2671, 7
    %v2673 = vsub.s32 %v2670, %v2672
    %v2674 = vrot.slane %v2667, %v2673
    %v2675 = vcombine.low %v939, %v940
    %v2677 = vunpack.c.l.s4 1983009808
    %v2678 = vunpack.c.0.s8 %v2677
    %v2679 = vlaneseq
    %v2680 = vshrl.u32 %v2679, 7
    %v2681 = vsub.s32 %v2678, %v2680
    %v2682 = vrot.slane %v2675, %v2681
    %v2683 = vcombine.low %v931, %v938
    %v2685 = vunpack.c.l.s4 1983009808
    %v2686 = vunpack.c.0.s8 %v2685
    %v2687 = vlaneseq
    %v2688 = vshrl.u32 %v2687, 7
    %v2689 = vsub.s32 %v2686, %v2688
    %v2690 = vrot.slane %v2683, %v2689
    %v2691 = vcombine.low %v941, %v942
    %v2693 = vunpack.c.l.s4 1983009808
    %v2694 = vunpack.c.0.s8 %v2693
    %v2695 = vlaneseq
    %v2696 = vshrl.u32 %v2695, 7
    %v2697 = vsub.s32 %v2694, %v2696
    %v2698 = vrot.slane %v2691, %v2697
    %v2699 = vcombine.low %v2674, %v2682
    %v2700 = vcombine.high %v2674, %v2682
    %v2702 = vunpack.c.l.s4 1934713408
    %v2703 = vunpack.c.0.s8 %v2702
    %v2704 = vlaneseq
    %v2705 = vshrl.u32 %v2704, 7
    %v2706 = vsub.s32 %v2703, %v2705
    %v2707 = vrot.slane %v2699, %v2706
    %v2709 = vunpack.c.l.s4 1934713408
    %v2710 = vunpack.c.0.s8 %v2709
    %v2711 = vlaneseq
    %v2712 = vshrl.u32 %v2711, 7
    %v2713 = vsub.s32 %v2710, %v2712
    %v2714 = vrot.slane %v2700, %v2713
    %v2715 = vcombine.low %v2690, %v2698
    %v2716 = vcombine.high %v2690, %v2698
    %v2718 = vunpack.c.l.s4 1934713408
    %v2719 = vunpack.c.0.s8 %v2718
    %v2720 = vlaneseq
    %v2721 = vshrl.u32 %v2720, 7
    %v2722 = vsub.s32 %v2719, %v2721
    %v2723 = vrot.slane %v2715, %v2722
    %v2725 = vunpack.c.l.s4 1934713408
    %v2726 = vunpack.c.0.s8 %v2725
    %v2727 = vlaneseq
    %v2728 = vshrl.u32 %v2727, 7
    %v2729 = vsub.s32 %v2726, %v2728
    %v2730 = vrot.slane %v2716, %v2729
    %v2731 = vcombine.low %v2707, %v2723
    %v2732 = vcombine.high %v2707, %v2723
    %v2733 = vcombine.low %v2714, %v2730
    %v2734 = vcombine.high %v2714, %v2730
    %v2735 = vcombine.low %v983, %v990
    %v2737 = vunpack.c.l.s4 1983009808
    %v2738 = vunpack.c.0.s8 %v2737
    %v2739 = vlaneseq
    %v2740 = vshrl.u32 %v2739, 7
    %v2741 = vsub.s32 %v2738, %v2740
    %v2742 = vrot.slane %v2735, %v2741
    %v2743 = vcombine.low %v1007, %v1008
    %v2745 = vunpack.c.l.s4 1983009808
    %v2746 = vunpack.c.0.s8 %v2745
    %v2747 = vlaneseq
    %v2748 = vshrl.u32 %v2747, 7
    %v2749 = vsub.s32 %v2746, %v2748
    %v2750 = vrot.slane %v2743, %v2749
    %v2751 = vcombine.low %v999, %v1006
    %v2753 = vunpack.c.l.s4 1983009808
    %v2754 = vunpack.c.0.s8 %v2753
    %v2755 = vlaneseq
    %v2756 = vshrl.u32 %v2755, 7
    %v2757 = vsub.s32 %v2754, %v2756
    %v2758 = vrot.slane %v2751, %v2757
    %v2759 = vcombine.low %v1009, %v1010
    %v2761 = vunpack.c.l.s4 1983009808
    %v2762 = vunpack.c.0.s8 %v2761
    %v2763 = vlaneseq
    %v2764 = vshrl.u32 %v2763, 7
    %v2765 = vsub.s32 %v2762, %v2764
    %v2766 = vrot.slane %v2759, %v2765
    %v2767 = vcombine.low %v2742, %v2750
    %v2768 = vcombine.high %v2742, %v2750
    %v2770 = vunpack.c.l.s4 1934713408
    %v2771 = vunpack.c.0.s8 %v2770
    %v2772 = vlaneseq
    %v2773 = vshrl.u32 %v2772, 7
    %v2774 = vsub.s32 %v2771, %v2773
    %v2775 = vrot.slane %v2767, %v2774
    %v2777 = vunpack.c.l.s4 1934713408
    %v2778 = vunpack.c.0.s8 %v2777
    %v2779 = vlaneseq
    %v2780 = vshrl.u32 %v2779, 7
    %v2781 = vsub.s32 %v2778, %v2780
    %v2782 = vrot.slane %v2768, %v2781
    %v2783 = vcombine.low %v2758, %v2766
    %v2784 = vcombine.high %v2758, %v2766
    %v2786 = vunpack.c.l.s4 1934713408
    %v2787 = vunpack.c.0.s8 %v2786
    %v2788 = vlaneseq
    %v2789 = vshrl.u32 %v2788, 7
    %v2790 = vsub.s32 %v2787, %v2789
    %v2791 = vrot.slane %v2783, %v2790
    %v2793 = vunpack.c.l.s4 1934713408
    %v2794 = vunpack.c.0.s8 %v2793
    %v2795 = vlaneseq
    %v2796 = vshrl.u32 %v2795, 7
    %v2797 = vsub.s32 %v2794, %v2796
    %v2798 = vrot.slane %v2784, %v2797
    %v2799 = vcombine.low %v2775, %v2791
    %v2800 = vcombine.high %v2775, %v2791
    %v2801 = vcombine.low %v2782, %v2798
    %v2802 = vcombine.high %v2782, %v2798
    %v2803 = vcombine.low %v1051, %v1058
    %v2805 = vunpack.c.l.s4 1983009808
    %v2806 = vunpack.c.0.s8 %v2805
    %v2807 = vlaneseq
    %v2808 = vshrl.u32 %v2807, 7
    %v2809 = vsub.s32 %v2806, %v2808
    %v2810 = vrot.slane %v2803, %v2809
    %v2811 = vcombine.low %v1075, %v1076
    %v2813 = vunpack.c.l.s4 1983009808
    %v2814 = vunpack.c.0.s8 %v2813
    %v2815 = vlaneseq
    %v2816 = vshrl.u32 %v2815, 7
    %v2817 = vsub.s32 %v2814, %v2816
    %v2818 = vrot.slane %v2811, %v2817
    %v2819 = vcombine.low %v1067, %v1074
    %v2821 = vunpack.c.l.s4 1983009808
    %v2822 = vunpack.c.0.s8 %v2821
    %v2823 = vlaneseq
    %v2824 = vshrl.u32 %v2823, 7
    %v2825 = vsub.s32 %v2822, %v2824
    %v2826 = vrot.slane %v2819, %v2825
    %v2827 = vcombine.low %v1077, %v1078
    %v2829 = vunpack.c.l.s4 1983009808
    %v2830 = vunpack.c.0.s8 %v2829
    %v2831 = vlaneseq
    %v2832 = vshrl.u32 %v2831, 7
    %v2833 = vsub.s32 %v2830, %v2832
    %v2834 = vrot.slane %v2827, %v2833
    %v2835 = vcombine.low %v2810, %v2818
    %v2836 = vcombine.high %v2810, %v2818
    %v2838 = vunpack.c.l.s4 1934713408
    %v2839 = vunpack.c.0.s8 %v2838
    %v2840 = vlaneseq
    %v2841 = vshrl.u32 %v2840, 7
    %v2842 = vsub.s32 %v2839, %v2841
    %v2843 = vrot.slane %v2835, %v2842
    %v2845 = vunpack.c.l.s4 1934713408
    %v2846 = vunpack.c.0.s8 %v2845
    %v2847 = vlaneseq
    %v2848 = vshrl.u32 %v2847, 7
    %v2849 = vsub.s32 %v2846, %v2848
    %v2850 = vrot.slane %v2836, %v2849
    %v2851 = vcombine.low %v2826, %v2834
    %v2852 = vcombine.high %v2826, %v2834
    %v2854 = vunpack.c.l.s4 1934713408
    %v2855 = vunpack.c.0.s8 %v2854
    %v2856 = vlaneseq
    %v2857 = vshrl.u32 %v2856, 7
    %v2858 = vsub.s32 %v2855, %v2857
    %v2859 = vrot.slane %v2851, %v2858
    %v2861 = vunpack.c.l.s4 1934713408
    %v2862 = vunpack.c.0.s8 %v2861
    %v2863 = vlaneseq
    %v2864 = vshrl.u32 %v2863, 7
    %v2865 = vsub.s32 %v2862, %v2864
    %v2866 = vrot.slane %v2852, %v2865
    %v2867 = vcombine.low %v2843, %v2859
    %v2868 = vcombine.high %v2843, %v2859
    %v2869 = vcombine.low %v2850, %v2866
    %v2870 = vcombine.high %v2850, %v2866
    %v2871 = vcombine.low %v1119, %v1126
    %v2873 = vunpack.c.l.s4 1983009808
    %v2874 = vunpack.c.0.s8 %v2873
    %v2875 = vlaneseq
    %v2876 = vshrl.u32 %v2875, 7
    %v2877 = vsub.s32 %v2874, %v2876
    %v2878 = vrot.slane %v2871, %v2877
    %v2879 = vcombine.low %v1143, %v1144
    %v2881 = vunpack.c.l.s4 1983009808
    %v2882 = vunpack.c.0.s8 %v2881
    %v2883 = vlaneseq
    %v2884 = vshrl.u32 %v2883, 7
    %v2885 = vsub.s32 %v2882, %v2884
    %v2886 = vrot.slane %v2879, %v2885
    %v2887 = vcombine.low %v1135, %v1142
    %v2889 = vunpack.c.l.s4 1983009808
    %v2890 = vunpack.c.0.s8 %v2889
    %v2891 = vlaneseq
    %v2892 = vshrl.u32 %v2891, 7
    %v2893 = vsub.s32 %v2890, %v2892
    %v2894 = vrot.slane %v2887, %v2893
    %v2895 = vcombine.low %v1145, %v1146
    %v2897 = vunpack.c.l.s4 1983009808
    %v2898 = vunpack.c.0.s8 %v2897
    %v2899 = vlaneseq
    %v2900 = vshrl.u32 %v2899, 7
    %v2901 = vsub.s32 %v2898, %v2900
    %v2902 = vrot.slane %v2895, %v2901
    %v2903 = vcombine.low %v2878, %v2886
    %v2904 = vcombine.high %v2878, %v2886
    %v2906 = vunpack.c.l.s4 1934713408
    %v2907 = vunpack.c.0.s8 %v2906
    %v2908 = vlaneseq
    %v2909 = vshrl.u32 %v2908, 7
    %v2910 = vsub.s32 %v2907, %v2909
    %v2911 = vrot.slane %v2903, %v2910
    %v2913 = vunpack.c.l.s4 1934713408
    %v2914 = vunpack.c.0.s8 %v2913
    %v2915 = vlaneseq
    %v2916 = vshrl.u32 %v2915, 7
    %v2917 = vsub.s32 %v2914, %v2916
    %v2918 = vrot.slane %v2904, %v2917
    %v2919 = vcombine.low %v2894, %v2902
    %v2920 = vcombine.high %v2894, %v2902
    %v2922 = vunpack.c.l.s4 1934713408
    %v2923 = vunpack.c.0.s8 %v2922
    %v2924 = vlaneseq
    %v2925 = vshrl.u32 %v2924, 7
    %v2926 = vsub.s32 %v2923, %v2925
    %v2927 = vrot.slane %v2919, %v2926
    %v2929 = vunpack.c.l.s4 1934713408
    %v2930 = vunpack.c.0.s8 %v2929
    %v2931 = vlaneseq
    %v2932 = vshrl.u32 %v2931, 7
    %v2933 = vsub.s32 %v2930, %v2932
    %v2934 = vrot.slane %v2920, %v2933
    %v2935 = vcombine.low %v2911, %v2927
    %v2936 = vcombine.high %v2911, %v2927
    %v2937 = vcombine.low %v2918, %v2934
    %v2938 = vcombine.high %v2918, %v2934
    %v2939 = vpack.c.bf16 %v2527, %v2459
    %v2940 = vpack.c.bf16 %v2528, %v2460
    %v2941 = vpack.c.bf16 %v2529, %v2461
    %v2942 = vpack.c.bf16 %v2530, %v2462
    %v2943 = vpack.c.bf16 %v2663, %v2595
    %v2944 = vpack.c.bf16 %v2664, %v2596
    %v2945 = vpack.c.bf16 %v2665, %v2597
    %v2946 = vpack.c.bf16 %v2666, %v2598
    %v2947 = vpack.c.bf16 %v2799, %v2731
    %v2948 = vpack.c.bf16 %v2800, %v2732
    %v2949 = vpack.c.bf16 %v2801, %v2733
    %v2950 = vpack.c.bf16 %v2802, %v2734
    %v2951 = vpack.c.bf16 %v2935, %v2867
    %v2952 = vpack.c.bf16 %v2936, %v2868
    %v2953 = vpack.c.bf16 %v2937, %v2869
    %v2954 = vpack.c.bf16 %v2938, %v2870
    %v2955 = vcombine.low %v1267, %v1274
    %v2957 = vunpack.c.l.s4 1983009808
    %v2958 = vunpack.c.0.s8 %v2957
    %v2959 = vlaneseq
    %v2960 = vshrl.u32 %v2959, 7
    %v2961 = vsub.s32 %v2958, %v2960
    %v2962 = vrot.slane %v2955, %v2961
    %v2963 = vcombine.low %v1291, %v1292
    %v2965 = vunpack.c.l.s4 1983009808
    %v2966 = vunpack.c.0.s8 %v2965
    %v2967 = vlaneseq
    %v2968 = vshrl.u32 %v2967, 7
    %v2969 = vsub.s32 %v2966, %v2968
    %v2970 = vrot.slane %v2963, %v2969
    %v2971 = vcombine.low %v1283, %v1290
    %v2973 = vunpack.c.l.s4 1983009808
    %v2974 = vunpack.c.0.s8 %v2973
    %v2975 = vlaneseq
    %v2976 = vshrl.u32 %v2975, 7
    %v2977 = vsub.s32 %v2974, %v2976
    %v2978 = vrot.slane %v2971, %v2977
    %v2979 = vcombine.low %v1293, %v1294
    %v2981 = vunpack.c.l.s4 1983009808
    %v2982 = vunpack.c.0.s8 %v2981
    %v2983 = vlaneseq
    %v2984 = vshrl.u32 %v2983, 7
    %v2985 = vsub.s32 %v2982, %v2984
    %v2986 = vrot.slane %v2979, %v2985
    %v2987 = vcombine.low %v2962, %v2970
    %v2988 = vcombine.high %v2962, %v2970
    %v2990 = vunpack.c.l.s4 1934713408
    %v2991 = vunpack.c.0.s8 %v2990
    %v2992 = vlaneseq
    %v2993 = vshrl.u32 %v2992, 7
    %v2994 = vsub.s32 %v2991, %v2993
    %v2995 = vrot.slane %v2987, %v2994
    %v2997 = vunpack.c.l.s4 1934713408
    %v2998 = vunpack.c.0.s8 %v2997
    %v2999 = vlaneseq
    %v3000 = vshrl.u32 %v2999, 7
    %v3001 = vsub.s32 %v2998, %v3000
    %v3002 = vrot.slane %v2988, %v3001
    %v3003 = vcombine.low %v2978, %v2986
    %v3004 = vcombine.high %v2978, %v2986
    %v3006 = vunpack.c.l.s4 1934713408
    %v3007 = vunpack.c.0.s8 %v3006
    %v3008 = vlaneseq
    %v3009 = vshrl.u32 %v3008, 7
    %v3010 = vsub.s32 %v3007, %v3009
    %v3011 = vrot.slane %v3003, %v3010
    %v3013 = vunpack.c.l.s4 1934713408
    %v3014 = vunpack.c.0.s8 %v3013
    %v3015 = vlaneseq
    %v3016 = vshrl.u32 %v3015, 7
    %v3017 = vsub.s32 %v3014, %v3016
    %v3018 = vrot.slane %v3004, %v3017
    %v3019 = vcombine.low %v2995, %v3011
    %v3020 = vcombine.high %v2995, %v3011
    %v3021 = vcombine.low %v3002, %v3018
    %v3022 = vcombine.high %v3002, %v3018
    %v3023 = vcombine.low %v1335, %v1342
    %v3025 = vunpack.c.l.s4 1983009808
    %v3026 = vunpack.c.0.s8 %v3025
    %v3027 = vlaneseq
    %v3028 = vshrl.u32 %v3027, 7
    %v3029 = vsub.s32 %v3026, %v3028
    %v3030 = vrot.slane %v3023, %v3029
    %v3031 = vcombine.low %v1359, %v1360
    %v3033 = vunpack.c.l.s4 1983009808
    %v3034 = vunpack.c.0.s8 %v3033
    %v3035 = vlaneseq
    %v3036 = vshrl.u32 %v3035, 7
    %v3037 = vsub.s32 %v3034, %v3036
    %v3038 = vrot.slane %v3031, %v3037
    %v3039 = vcombine.low %v1351, %v1358
    %v3041 = vunpack.c.l.s4 1983009808
    %v3042 = vunpack.c.0.s8 %v3041
    %v3043 = vlaneseq
    %v3044 = vshrl.u32 %v3043, 7
    %v3045 = vsub.s32 %v3042, %v3044
    %v3046 = vrot.slane %v3039, %v3045
    %v3047 = vcombine.low %v1361, %v1362
    %v3049 = vunpack.c.l.s4 1983009808
    %v3050 = vunpack.c.0.s8 %v3049
    %v3051 = vlaneseq
    %v3052 = vshrl.u32 %v3051, 7
    %v3053 = vsub.s32 %v3050, %v3052
    %v3054 = vrot.slane %v3047, %v3053
    %v3055 = vcombine.low %v3030, %v3038
    %v3056 = vcombine.high %v3030, %v3038
    %v3058 = vunpack.c.l.s4 1934713408
    %v3059 = vunpack.c.0.s8 %v3058
    %v3060 = vlaneseq
    %v3061 = vshrl.u32 %v3060, 7
    %v3062 = vsub.s32 %v3059, %v3061
    %v3063 = vrot.slane %v3055, %v3062
    %v3065 = vunpack.c.l.s4 1934713408
    %v3066 = vunpack.c.0.s8 %v3065
    %v3067 = vlaneseq
    %v3068 = vshrl.u32 %v3067, 7
    %v3069 = vsub.s32 %v3066, %v3068
    %v3070 = vrot.slane %v3056, %v3069
    %v3071 = vcombine.low %v3046, %v3054
    %v3072 = vcombine.high %v3046, %v3054
    %v3074 = vunpack.c.l.s4 1934713408
    %v3075 = vunpack.c.0.s8 %v3074
    %v3076 = vlaneseq
    %v3077 = vshrl.u32 %v3076, 7
    %v3078 = vsub.s32 %v3075, %v3077
    %v3079 = vrot.slane %v3071, %v3078
    %v3081 = vunpack.c.l.s4 1934713408
    %v3082 = vunpack.c.0.s8 %v3081
    %v3083 = vlaneseq
    %v3084 = vshrl.u32 %v3083, 7
    %v3085 = vsub.s32 %v3082, %v3084
    %v3086 = vrot.slane %v3072, %v3085
    %v3087 = vcombine.low %v3063, %v3079
    %v3088 = vcombine.high %v3063, %v3079
    %v3089 = vcombine.low %v3070, %v3086
    %v3090 = vcombine.high %v3070, %v3086
    %v3091 = vcombine.low %v1403, %v1410
    %v3093 = vunpack.c.l.s4 1983009808
    %v3094 = vunpack.c.0.s8 %v3093
    %v3095 = vlaneseq
    %v3096 = vshrl.u32 %v3095, 7
    %v3097 = vsub.s32 %v3094, %v3096
    %v3098 = vrot.slane %v3091, %v3097
    %v3099 = vcombine.low %v1427, %v1428
    %v3101 = vunpack.c.l.s4 1983009808
    %v3102 = vunpack.c.0.s8 %v3101
    %v3103 = vlaneseq
    %v3104 = vshrl.u32 %v3103, 7
    %v3105 = vsub.s32 %v3102, %v3104
    %v3106 = vrot.slane %v3099, %v3105
    %v3107 = vcombine.low %v1419, %v1426
    %v3109 = vunpack.c.l.s4 1983009808
    %v3110 = vunpack.c.0.s8 %v3109
    %v3111 = vlaneseq
    %v3112 = vshrl.u32 %v3111, 7
    %v3113 = vsub.s32 %v3110, %v3112
    %v3114 = vrot.slane %v3107, %v3113
    %v3115 = vcombine.low %v1429, %v1430
    %v3117 = vunpack.c.l.s4 1983009808
    %v3118 = vunpack.c.0.s8 %v3117
    %v3119 = vlaneseq
    %v3120 = vshrl.u32 %v3119, 7
    %v3121 = vsub.s32 %v3118, %v3120
    %v3122 = vrot.slane %v3115, %v3121
    %v3123 = vcombine.low %v3098, %v3106
    %v3124 = vcombine.high %v3098, %v3106
    %v3126 = vunpack.c.l.s4 1934713408
    %v3127 = vunpack.c.0.s8 %v3126
    %v3128 = vlaneseq
    %v3129 = vshrl.u32 %v3128, 7
    %v3130 = vsub.s32 %v3127, %v3129
    %v3131 = vrot.slane %v3123, %v3130
    %v3133 = vunpack.c.l.s4 1934713408
    %v3134 = vunpack.c.0.s8 %v3133
    %v3135 = vlaneseq
    %v3136 = vshrl.u32 %v3135, 7
    %v3137 = vsub.s32 %v3134, %v3136
    %v3138 = vrot.slane %v3124, %v3137
    %v3139 = vcombine.low %v3114, %v3122
    %v3140 = vcombine.high %v3114, %v3122
    %v3142 = vunpack.c.l.s4 1934713408
    %v3143 = vunpack.c.0.s8 %v3142
    %v3144 = vlaneseq
    %v3145 = vshrl.u32 %v3144, 7
    %v3146 = vsub.s32 %v3143, %v3145
    %v3147 = vrot.slane %v3139, %v3146
    %v3149 = vunpack.c.l.s4 1934713408
    %v3150 = vunpack.c.0.s8 %v3149
    %v3151 = vlaneseq
    %v3152 = vshrl.u32 %v3151, 7
    %v3153 = vsub.s32 %v3150, %v3152
    %v3154 = vrot.slane %v3140, %v3153
    %v3155 = vcombine.low %v3131, %v3147
    %v3156 = vcombine.high %v3131, %v3147
    %v3157 = vcombine.low %v3138, %v3154
    %v3158 = vcombine.high %v3138, %v3154
    %v3159 = vcombine.low %v1471, %v1478
    %v3161 = vunpack.c.l.s4 1983009808
    %v3162 = vunpack.c.0.s8 %v3161
    %v3163 = vlaneseq
    %v3164 = vshrl.u32 %v3163, 7
    %v3165 = vsub.s32 %v3162, %v3164
    %v3166 = vrot.slane %v3159, %v3165
    %v3167 = vcombine.low %v1495, %v1496
    %v3169 = vunpack.c.l.s4 1983009808
    %v3170 = vunpack.c.0.s8 %v3169
    %v3171 = vlaneseq
    %v3172 = vshrl.u32 %v3171, 7
    %v3173 = vsub.s32 %v3170, %v3172
    %v3174 = vrot.slane %v3167, %v3173
    %v3175 = vcombine.low %v1487, %v1494
    %v3177 = vunpack.c.l.s4 1983009808
    %v3178 = vunpack.c.0.s8 %v3177
    %v3179 = vlaneseq
    %v3180 = vshrl.u32 %v3179, 7
    %v3181 = vsub.s32 %v3178, %v3180
    %v3182 = vrot.slane %v3175, %v3181
    %v3183 = vcombine.low %v1497, %v1498
    %v3185 = vunpack.c.l.s4 1983009808
    %v3186 = vunpack.c.0.s8 %v3185
    %v3187 = vlaneseq
    %v3188 = vshrl.u32 %v3187, 7
    %v3189 = vsub.s32 %v3186, %v3188
    %v3190 = vrot.slane %v3183, %v3189
    %v3191 = vcombine.low %v3166, %v3174
    %v3192 = vcombine.high %v3166, %v3174
    %v3194 = vunpack.c.l.s4 1934713408
    %v3195 = vunpack.c.0.s8 %v3194
    %v3196 = vlaneseq
    %v3197 = vshrl.u32 %v3196, 7
    %v3198 = vsub.s32 %v3195, %v3197
    %v3199 = vrot.slane %v3191, %v3198
    %v3201 = vunpack.c.l.s4 1934713408
    %v3202 = vunpack.c.0.s8 %v3201
    %v3203 = vlaneseq
    %v3204 = vshrl.u32 %v3203, 7
    %v3205 = vsub.s32 %v3202, %v3204
    %v3206 = vrot.slane %v3192, %v3205
    %v3207 = vcombine.low %v3182, %v3190
    %v3208 = vcombine.high %v3182, %v3190
    %v3210 = vunpack.c.l.s4 1934713408
    %v3211 = vunpack.c.0.s8 %v3210
    %v3212 = vlaneseq
    %v3213 = vshrl.u32 %v3212, 7
    %v3214 = vsub.s32 %v3211, %v3213
    %v3215 = vrot.slane %v3207, %v3214
    %v3217 = vunpack.c.l.s4 1934713408
    %v3218 = vunpack.c.0.s8 %v3217
    %v3219 = vlaneseq
    %v3220 = vshrl.u32 %v3219, 7
    %v3221 = vsub.s32 %v3218, %v3220
    %v3222 = vrot.slane %v3208, %v3221
    %v3223 = vcombine.low %v3199, %v3215
    %v3224 = vcombine.high %v3199, %v3215
    %v3225 = vcombine.low %v3206, %v3222
    %v3226 = vcombine.high %v3206, %v3222
    %v3227 = vcombine.low %v1539, %v1546
    %v3229 = vunpack.c.l.s4 1983009808
    %v3230 = vunpack.c.0.s8 %v3229
    %v3231 = vlaneseq
    %v3232 = vshrl.u32 %v3231, 7
    %v3233 = vsub.s32 %v3230, %v3232
    %v3234 = vrot.slane %v3227, %v3233
    %v3235 = vcombine.low %v1563, %v1564
    %v3237 = vunpack.c.l.s4 1983009808
    %v3238 = vunpack.c.0.s8 %v3237
    %v3239 = vlaneseq
    %v3240 = vshrl.u32 %v3239, 7
    %v3241 = vsub.s32 %v3238, %v3240
    %v3242 = vrot.slane %v3235, %v3241
    %v3243 = vcombine.low %v1555, %v1562
    %v3245 = vunpack.c.l.s4 1983009808
    %v3246 = vunpack.c.0.s8 %v3245
    %v3247 = vlaneseq
    %v3248 = vshrl.u32 %v3247, 7
    %v3249 = vsub.s32 %v3246, %v3248
    %v3250 = vrot.slane %v3243, %v3249
    %v3251 = vcombine.low %v1565, %v1566
    %v3253 = vunpack.c.l.s4 1983009808
    %v3254 = vunpack.c.0.s8 %v3253
    %v3255 = vlaneseq
    %v3256 = vshrl.u32 %v3255, 7
    %v3257 = vsub.s32 %v3254, %v3256
    %v3258 = vrot.slane %v3251, %v3257
    %v3259 = vcombine.low %v3234, %v3242
    %v3260 = vcombine.high %v3234, %v3242
    %v3262 = vunpack.c.l.s4 1934713408
    %v3263 = vunpack.c.0.s8 %v3262
    %v3264 = vlaneseq
    %v3265 = vshrl.u32 %v3264, 7
    %v3266 = vsub.s32 %v3263, %v3265
    %v3267 = vrot.slane %v3259, %v3266
    %v3269 = vunpack.c.l.s4 1934713408
    %v3270 = vunpack.c.0.s8 %v3269
    %v3271 = vlaneseq
    %v3272 = vshrl.u32 %v3271, 7
    %v3273 = vsub.s32 %v3270, %v3272
    %v3274 = vrot.slane %v3260, %v3273
    %v3275 = vcombine.low %v3250, %v3258
    %v3276 = vcombine.high %v3250, %v3258
    %v3278 = vunpack.c.l.s4 1934713408
    %v3279 = vunpack.c.0.s8 %v3278
    %v3280 = vlaneseq
    %v3281 = vshrl.u32 %v3280, 7
    %v3282 = vsub.s32 %v3279, %v3281
    %v3283 = vrot.slane %v3275, %v3282
    %v3285 = vunpack.c.l.s4 1934713408
    %v3286 = vunpack.c.0.s8 %v3285
    %v3287 = vlaneseq
    %v3288 = vshrl.u32 %v3287, 7
    %v3289 = vsub.s32 %v3286, %v3288
    %v3290 = vrot.slane %v3276, %v3289
    %v3291 = vcombine.low %v3267, %v3283
    %v3292 = vcombine.high %v3267, %v3283
    %v3293 = vcombine.low %v3274, %v3290
    %v3294 = vcombine.high %v3274, %v3290
    %v3295 = vcombine.low %v1607, %v1614
    %v3297 = vunpack.c.l.s4 1983009808
    %v3298 = vunpack.c.0.s8 %v3297
    %v3299 = vlaneseq
    %v3300 = vshrl.u32 %v3299, 7
    %v3301 = vsub.s32 %v3298, %v3300
    %v3302 = vrot.slane %v3295, %v3301
    %v3303 = vcombine.low %v1631, %v1632
    %v3305 = vunpack.c.l.s4 1983009808
    %v3306 = vunpack.c.0.s8 %v3305
    %v3307 = vlaneseq
    %v3308 = vshrl.u32 %v3307, 7
    %v3309 = vsub.s32 %v3306, %v3308
    %v3310 = vrot.slane %v3303, %v3309
    %v3311 = vcombine.low %v1623, %v1630
    %v3313 = vunpack.c.l.s4 1983009808
    %v3314 = vunpack.c.0.s8 %v3313
    %v3315 = vlaneseq
    %v3316 = vshrl.u32 %v3315, 7
    %v3317 = vsub.s32 %v3314, %v3316
    %v3318 = vrot.slane %v3311, %v3317
    %v3319 = vcombine.low %v1633, %v1634
    %v3321 = vunpack.c.l.s4 1983009808
    %v3322 = vunpack.c.0.s8 %v3321
    %v3323 = vlaneseq
    %v3324 = vshrl.u32 %v3323, 7
    %v3325 = vsub.s32 %v3322, %v3324
    %v3326 = vrot.slane %v3319, %v3325
    %v3327 = vcombine.low %v3302, %v3310
    %v3328 = vcombine.high %v3302, %v3310
    %v3330 = vunpack.c.l.s4 1934713408
    %v3331 = vunpack.c.0.s8 %v3330
    %v3332 = vlaneseq
    %v3333 = vshrl.u32 %v3332, 7
    %v3334 = vsub.s32 %v3331, %v3333
    %v3335 = vrot.slane %v3327, %v3334
    %v3337 = vunpack.c.l.s4 1934713408
    %v3338 = vunpack.c.0.s8 %v3337
    %v3339 = vlaneseq
    %v3340 = vshrl.u32 %v3339, 7
    %v3341 = vsub.s32 %v3338, %v3340
    %v3342 = vrot.slane %v3328, %v3341
    %v3343 = vcombine.low %v3318, %v3326
    %v3344 = vcombine.high %v3318, %v3326
    %v3346 = vunpack.c.l.s4 1934713408
    %v3347 = vunpack.c.0.s8 %v3346
    %v3348 = vlaneseq
    %v3349 = vshrl.u32 %v3348, 7
    %v3350 = vsub.s32 %v3347, %v3349
    %v3351 = vrot.slane %v3343, %v3350
    %v3353 = vunpack.c.l.s4 1934713408
    %v3354 = vunpack.c.0.s8 %v3353
    %v3355 = vlaneseq
    %v3356 = vshrl.u32 %v3355, 7
    %v3357 = vsub.s32 %v3354, %v3356
    %v3358 = vrot.slane %v3344, %v3357
    %v3359 = vcombine.low %v3335, %v3351
    %v3360 = vcombine.high %v3335, %v3351
    %v3361 = vcombine.low %v3342, %v3358
    %v3362 = vcombine.high %v3342, %v3358
    %v3363 = vcombine.low %v1675, %v1682
    %v3365 = vunpack.c.l.s4 1983009808
    %v3366 = vunpack.c.0.s8 %v3365
    %v3367 = vlaneseq
    %v3368 = vshrl.u32 %v3367, 7
    %v3369 = vsub.s32 %v3366, %v3368
    %v3370 = vrot.slane %v3363, %v3369
    %v3371 = vcombine.low %v1699, %v1700
    %v3373 = vunpack.c.l.s4 1983009808
    %v3374 = vunpack.c.0.s8 %v3373
    %v3375 = vlaneseq
    %v3376 = vshrl.u32 %v3375, 7
    %v3377 = vsub.s32 %v3374, %v3376
    %v3378 = vrot.slane %v3371, %v3377
    %v3379 = vcombine.low %v1691, %v1698
    %v3381 = vunpack.c.l.s4 1983009808
    %v3382 = vunpack.c.0.s8 %v3381
    %v3383 = vlaneseq
    %v3384 = vshrl.u32 %v3383, 7
    %v3385 = vsub.s32 %v3382, %v3384
    %v3386 = vrot.slane %v3379, %v3385
    %v3387 = vcombine.low %v1701, %v1702
    %v3389 = vunpack.c.l.s4 1983009808
    %v3390 = vunpack.c.0.s8 %v3389
    %v3391 = vlaneseq
    %v3392 = vshrl.u32 %v3391, 7
    %v3393 = vsub.s32 %v3390, %v3392
    %v3394 = vrot.slane %v3387, %v3393
    %v3395 = vcombine.low %v3370, %v3378
    %v3396 = vcombine.high %v3370, %v3378
    %v3398 = vunpack.c.l.s4 1934713408
    %v3399 = vunpack.c.0.s8 %v3398
    %v3400 = vlaneseq
    %v3401 = vshrl.u32 %v3400, 7
    %v3402 = vsub.s32 %v3399, %v3401
    %v3403 = vrot.slane %v3395, %v3402
    %v3405 = vunpack.c.l.s4 1934713408
    %v3406 = vunpack.c.0.s8 %v3405
    %v3407 = vlaneseq
    %v3408 = vshrl.u32 %v3407, 7
    %v3409 = vsub.s32 %v3406, %v3408
    %v3410 = vrot.slane %v3396, %v3409
    %v3411 = vcombine.low %v3386, %v3394
    %v3412 = vcombine.high %v3386, %v3394
    %v3414 = vunpack.c.l.s4 1934713408
    %v3415 = vunpack.c.0.s8 %v3414
    %v3416 = vlaneseq
    %v3417 = vshrl.u32 %v3416, 7
    %v3418 = vsub.s32 %v3415, %v3417
    %v3419 = vrot.slane %v3411, %v3418
    %v3421 = vunpack.c.l.s4 1934713408
    %v3422 = vunpack.c.0.s8 %v3421
    %v3423 = vlaneseq
    %v3424 = vshrl.u32 %v3423, 7
    %v3425 = vsub.s32 %v3422, %v3424
    %v3426 = vrot.slane %v3412, %v3425
    %v3427 = vcombine.low %v3403, %v3419
    %v3428 = vcombine.high %v3403, %v3419
    %v3429 = vcombine.low %v3410, %v3426
    %v3430 = vcombine.high %v3410, %v3426
    %v3431 = vcombine.low %v1743, %v1750
    %v3433 = vunpack.c.l.s4 1983009808
    %v3434 = vunpack.c.0.s8 %v3433
    %v3435 = vlaneseq
    %v3436 = vshrl.u32 %v3435, 7
    %v3437 = vsub.s32 %v3434, %v3436
    %v3438 = vrot.slane %v3431, %v3437
    %v3439 = vcombine.low %v1767, %v1768
    %v3441 = vunpack.c.l.s4 1983009808
    %v3442 = vunpack.c.0.s8 %v3441
    %v3443 = vlaneseq
    %v3444 = vshrl.u32 %v3443, 7
    %v3445 = vsub.s32 %v3442, %v3444
    %v3446 = vrot.slane %v3439, %v3445
    %v3447 = vcombine.low %v1759, %v1766
    %v3449 = vunpack.c.l.s4 1983009808
    %v3450 = vunpack.c.0.s8 %v3449
    %v3451 = vlaneseq
    %v3452 = vshrl.u32 %v3451, 7
    %v3453 = vsub.s32 %v3450, %v3452
    %v3454 = vrot.slane %v3447, %v3453
    %v3455 = vcombine.low %v1769, %v1770
    %v3457 = vunpack.c.l.s4 1983009808
    %v3458 = vunpack.c.0.s8 %v3457
    %v3459 = vlaneseq
    %v3460 = vshrl.u32 %v3459, 7
    %v3461 = vsub.s32 %v3458, %v3460
    %v3462 = vrot.slane %v3455, %v3461
    %v3463 = vcombine.low %v3438, %v3446
    %v3464 = vcombine.high %v3438, %v3446
    %v3466 = vunpack.c.l.s4 1934713408
    %v3467 = vunpack.c.0.s8 %v3466
    %v3468 = vlaneseq
    %v3469 = vshrl.u32 %v3468, 7
    %v3470 = vsub.s32 %v3467, %v3469
    %v3471 = vrot.slane %v3463, %v3470
    %v3473 = vunpack.c.l.s4 1934713408
    %v3474 = vunpack.c.0.s8 %v3473
    %v3475 = vlaneseq
    %v3476 = vshrl.u32 %v3475, 7
    %v3477 = vsub.s32 %v3474, %v3476
    %v3478 = vrot.slane %v3464, %v3477
    %v3479 = vcombine.low %v3454, %v3462
    %v3480 = vcombine.high %v3454, %v3462
    %v3482 = vunpack.c.l.s4 1934713408
    %v3483 = vunpack.c.0.s8 %v3482
    %v3484 = vlaneseq
    %v3485 = vshrl.u32 %v3484, 7
    %v3486 = vsub.s32 %v3483, %v3485
    %v3487 = vrot.slane %v3479, %v3486
    %v3489 = vunpack.c.l.s4 1934713408
    %v3490 = vunpack.c.0.s8 %v3489
    %v3491 = vlaneseq
    %v3492 = vshrl.u32 %v3491, 7
    %v3493 = vsub.s32 %v3490, %v3492
    %v3494 = vrot.slane %v3480, %v3493
    %v3495 = vcombine.low %v3471, %v3487
    %v3496 = vcombine.high %v3471, %v3487
    %v3497 = vcombine.low %v3478, %v3494
    %v3498 = vcombine.high %v3478, %v3494
    %v3499 = vpack.c.bf16 %v3087, %v3019
    %v3500 = vpack.c.bf16 %v3088, %v3020
    %v3501 = vpack.c.bf16 %v3089, %v3021
    %v3502 = vpack.c.bf16 %v3090, %v3022
    %v3503 = vpack.c.bf16 %v3223, %v3155
    %v3504 = vpack.c.bf16 %v3224, %v3156
    %v3505 = vpack.c.bf16 %v3225, %v3157
    %v3506 = vpack.c.bf16 %v3226, %v3158
    %v3507 = vpack.c.bf16 %v3359, %v3291
    %v3508 = vpack.c.bf16 %v3360, %v3292
    %v3509 = vpack.c.bf16 %v3361, %v3293
    %v3510 = vpack.c.bf16 %v3362, %v3294
    %v3511 = vpack.c.bf16 %v3495, %v3427
    %v3512 = vpack.c.bf16 %v3496, %v3428
    %v3513 = vpack.c.bf16 %v3497, %v3429
    %v3514 = vpack.c.bf16 %v3498, %v3430
    %v3515 = vcombine.low %v1891, %v1898
    %v3517 = vunpack.c.l.s4 1983009808
    %v3518 = vunpack.c.0.s8 %v3517
    %v3519 = vlaneseq
    %v3520 = vshrl.u32 %v3519, 7
    %v3521 = vsub.s32 %v3518, %v3520
    %v3522 = vrot.slane %v3515, %v3521
    %v3523 = vcombine.low %v1915, %v1916
    %v3525 = vunpack.c.l.s4 1983009808
    %v3526 = vunpack.c.0.s8 %v3525
    %v3527 = vlaneseq
    %v3528 = vshrl.u32 %v3527, 7
    %v3529 = vsub.s32 %v3526, %v3528
    %v3530 = vrot.slane %v3523, %v3529
    %v3531 = vcombine.low %v1907, %v1914
    %v3533 = vunpack.c.l.s4 1983009808
    %v3534 = vunpack.c.0.s8 %v3533
    %v3535 = vlaneseq
    %v3536 = vshrl.u32 %v3535, 7
    %v3537 = vsub.s32 %v3534, %v3536
    %v3538 = vrot.slane %v3531, %v3537
    %v3539 = vcombine.low %v1917, %v1918
    %v3541 = vunpack.c.l.s4 1983009808
    %v3542 = vunpack.c.0.s8 %v3541
    %v3543 = vlaneseq
    %v3544 = vshrl.u32 %v3543, 7
    %v3545 = vsub.s32 %v3542, %v3544
    %v3546 = vrot.slane %v3539, %v3545
    %v3547 = vcombine.low %v3522, %v3530
    %v3548 = vcombine.high %v3522, %v3530
    %v3550 = vunpack.c.l.s4 1934713408
    %v3551 = vunpack.c.0.s8 %v3550
    %v3552 = vlaneseq
    %v3553 = vshrl.u32 %v3552, 7
    %v3554 = vsub.s32 %v3551, %v3553
    %v3555 = vrot.slane %v3547, %v3554
    %v3557 = vunpack.c.l.s4 1934713408
    %v3558 = vunpack.c.0.s8 %v3557
    %v3559 = vlaneseq
    %v3560 = vshrl.u32 %v3559, 7
    %v3561 = vsub.s32 %v3558, %v3560
    %v3562 = vrot.slane %v3548, %v3561
    %v3563 = vcombine.low %v3538, %v3546
    %v3564 = vcombine.high %v3538, %v3546
    %v3566 = vunpack.c.l.s4 1934713408
    %v3567 = vunpack.c.0.s8 %v3566
    %v3568 = vlaneseq
    %v3569 = vshrl.u32 %v3568, 7
    %v3570 = vsub.s32 %v3567, %v3569
    %v3571 = vrot.slane %v3563, %v3570
    %v3573 = vunpack.c.l.s4 1934713408
    %v3574 = vunpack.c.0.s8 %v3573
    %v3575 = vlaneseq
    %v3576 = vshrl.u32 %v3575, 7
    %v3577 = vsub.s32 %v3574, %v3576
    %v3578 = vrot.slane %v3564, %v3577
    %v3579 = vcombine.low %v3555, %v3571
    %v3580 = vcombine.high %v3555, %v3571
    %v3581 = vcombine.low %v3562, %v3578
    %v3582 = vcombine.high %v3562, %v3578
    %v3583 = vcombine.low %v1959, %v1966
    %v3585 = vunpack.c.l.s4 1983009808
    %v3586 = vunpack.c.0.s8 %v3585
    %v3587 = vlaneseq
    %v3588 = vshrl.u32 %v3587, 7
    %v3589 = vsub.s32 %v3586, %v3588
    %v3590 = vrot.slane %v3583, %v3589
    %v3591 = vcombine.low %v1983, %v1984
    %v3593 = vunpack.c.l.s4 1983009808
    %v3594 = vunpack.c.0.s8 %v3593
    %v3595 = vlaneseq
    %v3596 = vshrl.u32 %v3595, 7
    %v3597 = vsub.s32 %v3594, %v3596
    %v3598 = vrot.slane %v3591, %v3597
    %v3599 = vcombine.low %v1975, %v1982
    %v3601 = vunpack.c.l.s4 1983009808
    %v3602 = vunpack.c.0.s8 %v3601
    %v3603 = vlaneseq
    %v3604 = vshrl.u32 %v3603, 7
    %v3605 = vsub.s32 %v3602, %v3604
    %v3606 = vrot.slane %v3599, %v3605
    %v3607 = vcombine.low %v1985, %v1986
    %v3609 = vunpack.c.l.s4 1983009808
    %v3610 = vunpack.c.0.s8 %v3609
    %v3611 = vlaneseq
    %v3612 = vshrl.u32 %v3611, 7
    %v3613 = vsub.s32 %v3610, %v3612
    %v3614 = vrot.slane %v3607, %v3613
    %v3615 = vcombine.low %v3590, %v3598
    %v3616 = vcombine.high %v3590, %v3598
    %v3618 = vunpack.c.l.s4 1934713408
    %v3619 = vunpack.c.0.s8 %v3618
    %v3620 = vlaneseq
    %v3621 = vshrl.u32 %v3620, 7
    %v3622 = vsub.s32 %v3619, %v3621
    %v3623 = vrot.slane %v3615, %v3622
    %v3625 = vunpack.c.l.s4 1934713408
    %v3626 = vunpack.c.0.s8 %v3625
    %v3627 = vlaneseq
    %v3628 = vshrl.u32 %v3627, 7
    %v3629 = vsub.s32 %v3626, %v3628
    %v3630 = vrot.slane %v3616, %v3629
    %v3631 = vcombine.low %v3606, %v3614
    %v3632 = vcombine.high %v3606, %v3614
    %v3634 = vunpack.c.l.s4 1934713408
    %v3635 = vunpack.c.0.s8 %v3634
    %v3636 = vlaneseq
    %v3637 = vshrl.u32 %v3636, 7
    %v3638 = vsub.s32 %v3635, %v3637
    %v3639 = vrot.slane %v3631, %v3638
    %v3641 = vunpack.c.l.s4 1934713408
    %v3642 = vunpack.c.0.s8 %v3641
    %v3643 = vlaneseq
    %v3644 = vshrl.u32 %v3643, 7
    %v3645 = vsub.s32 %v3642, %v3644
    %v3646 = vrot.slane %v3632, %v3645
    %v3647 = vcombine.low %v3623, %v3639
    %v3648 = vcombine.high %v3623, %v3639
    %v3649 = vcombine.low %v3630, %v3646
    %v3650 = vcombine.high %v3630, %v3646
    %v3651 = vcombine.low %v2027, %v2034
    %v3653 = vunpack.c.l.s4 1983009808
    %v3654 = vunpack.c.0.s8 %v3653
    %v3655 = vlaneseq
    %v3656 = vshrl.u32 %v3655, 7
    %v3657 = vsub.s32 %v3654, %v3656
    %v3658 = vrot.slane %v3651, %v3657
    %v3659 = vcombine.low %v2051, %v2052
    %v3661 = vunpack.c.l.s4 1983009808
    %v3662 = vunpack.c.0.s8 %v3661
    %v3663 = vlaneseq
    %v3664 = vshrl.u32 %v3663, 7
    %v3665 = vsub.s32 %v3662, %v3664
    %v3666 = vrot.slane %v3659, %v3665
    %v3667 = vcombine.low %v2043, %v2050
    %v3669 = vunpack.c.l.s4 1983009808
    %v3670 = vunpack.c.0.s8 %v3669
    %v3671 = vlaneseq
    %v3672 = vshrl.u32 %v3671, 7
    %v3673 = vsub.s32 %v3670, %v3672
    %v3674 = vrot.slane %v3667, %v3673
    %v3675 = vcombine.low %v2053, %v2054
    %v3677 = vunpack.c.l.s4 1983009808
    %v3678 = vunpack.c.0.s8 %v3677
    %v3679 = vlaneseq
    %v3680 = vshrl.u32 %v3679, 7
    %v3681 = vsub.s32 %v3678, %v3680
    %v3682 = vrot.slane %v3675, %v3681
    %v3683 = vcombine.low %v3658, %v3666
    %v3684 = vcombine.high %v3658, %v3666
    %v3686 = vunpack.c.l.s4 1934713408
    %v3687 = vunpack.c.0.s8 %v3686
    %v3688 = vlaneseq
    %v3689 = vshrl.u32 %v3688, 7
    %v3690 = vsub.s32 %v3687, %v3689
    %v3691 = vrot.slane %v3683, %v3690
    %v3693 = vunpack.c.l.s4 1934713408
    %v3694 = vunpack.c.0.s8 %v3693
    %v3695 = vlaneseq
    %v3696 = vshrl.u32 %v3695, 7
    %v3697 = vsub.s32 %v3694, %v3696
    %v3698 = vrot.slane %v3684, %v3697
    %v3699 = vcombine.low %v3674, %v3682
    %v3700 = vcombine.high %v3674, %v3682
    %v3702 = vunpack.c.l.s4 1934713408
    %v3703 = vunpack.c.0.s8 %v3702
    %v3704 = vlaneseq
    %v3705 = vshrl.u32 %v3704, 7
    %v3706 = vsub.s32 %v3703, %v3705
    %v3707 = vrot.slane %v3699, %v3706
    %v3709 = vunpack.c.l.s4 1934713408
    %v3710 = vunpack.c.0.s8 %v3709
    %v3711 = vlaneseq
    %v3712 = vshrl.u32 %v3711, 7
    %v3713 = vsub.s32 %v3710, %v3712
    %v3714 = vrot.slane %v3700, %v3713
    %v3715 = vcombine.low %v3691, %v3707
    %v3716 = vcombine.high %v3691, %v3707
    %v3717 = vcombine.low %v3698, %v3714
    %v3718 = vcombine.high %v3698, %v3714
    %v3719 = vcombine.low %v2095, %v2102
    %v3721 = vunpack.c.l.s4 1983009808
    %v3722 = vunpack.c.0.s8 %v3721
    %v3723 = vlaneseq
    %v3724 = vshrl.u32 %v3723, 7
    %v3725 = vsub.s32 %v3722, %v3724
    %v3726 = vrot.slane %v3719, %v3725
    %v3727 = vcombine.low %v2119, %v2120
    %v3729 = vunpack.c.l.s4 1983009808
    %v3730 = vunpack.c.0.s8 %v3729
    %v3731 = vlaneseq
    %v3732 = vshrl.u32 %v3731, 7
    %v3733 = vsub.s32 %v3730, %v3732
    %v3734 = vrot.slane %v3727, %v3733
    %v3735 = vcombine.low %v2111, %v2118
    %v3737 = vunpack.c.l.s4 1983009808
    %v3738 = vunpack.c.0.s8 %v3737
    %v3739 = vlaneseq
    %v3740 = vshrl.u32 %v3739, 7
    %v3741 = vsub.s32 %v3738, %v3740
    %v3742 = vrot.slane %v3735, %v3741
    %v3743 = vcombine.low %v2121, %v2122
    %v3745 = vunpack.c.l.s4 1983009808
    %v3746 = vunpack.c.0.s8 %v3745
    %v3747 = vlaneseq
    %v3748 = vshrl.u32 %v3747, 7
    %v3749 = vsub.s32 %v3746, %v3748
    %v3750 = vrot.slane %v3743, %v3749
    %v3751 = vcombine.low %v3726, %v3734
    %v3752 = vcombine.high %v3726, %v3734
    %v3754 = vunpack.c.l.s4 1934713408
    %v3755 = vunpack.c.0.s8 %v3754
    %v3756 = vlaneseq
    %v3757 = vshrl.u32 %v3756, 7
    %v3758 = vsub.s32 %v3755, %v3757
    %v3759 = vrot.slane %v3751, %v3758
    %v3761 = vunpack.c.l.s4 1934713408
    %v3762 = vunpack.c.0.s8 %v3761
    %v3763 = vlaneseq
    %v3764 = vshrl.u32 %v3763, 7
    %v3765 = vsub.s32 %v3762, %v3764
    %v3766 = vrot.slane %v3752, %v3765
    %v3767 = vcombine.low %v3742, %v3750
    %v3768 = vcombine.high %v3742, %v3750
    %v3770 = vunpack.c.l.s4 1934713408
    %v3771 = vunpack.c.0.s8 %v3770
    %v3772 = vlaneseq
    %v3773 = vshrl.u32 %v3772, 7
    %v3774 = vsub.s32 %v3771, %v3773
    %v3775 = vrot.slane %v3767, %v3774
    %v3777 = vunpack.c.l.s4 1934713408
    %v3778 = vunpack.c.0.s8 %v3777
    %v3779 = vlaneseq
    %v3780 = vshrl.u32 %v3779, 7
    %v3781 = vsub.s32 %v3778, %v3780
    %v3782 = vrot.slane %v3768, %v3781
    %v3783 = vcombine.low %v3759, %v3775
    %v3784 = vcombine.high %v3759, %v3775
    %v3785 = vcombine.low %v3766, %v3782
    %v3786 = vcombine.high %v3766, %v3782
    %v3787 = vcombine.low %v2163, %v2170
    %v3789 = vunpack.c.l.s4 1983009808
    %v3790 = vunpack.c.0.s8 %v3789
    %v3791 = vlaneseq
    %v3792 = vshrl.u32 %v3791, 7
    %v3793 = vsub.s32 %v3790, %v3792
    %v3794 = vrot.slane %v3787, %v3793
    %v3795 = vcombine.low %v2187, %v2188
    %v3797 = vunpack.c.l.s4 1983009808
    %v3798 = vunpack.c.0.s8 %v3797
    %v3799 = vlaneseq
    %v3800 = vshrl.u32 %v3799, 7
    %v3801 = vsub.s32 %v3798, %v3800
    %v3802 = vrot.slane %v3795, %v3801
    %v3803 = vcombine.low %v2179, %v2186
    %v3805 = vunpack.c.l.s4 1983009808
    %v3806 = vunpack.c.0.s8 %v3805
    %v3807 = vlaneseq
    %v3808 = vshrl.u32 %v3807, 7
    %v3809 = vsub.s32 %v3806, %v3808
    %v3810 = vrot.slane %v3803, %v3809
    %v3811 = vcombine.low %v2189, %v2190
    %v3813 = vunpack.c.l.s4 1983009808
    %v3814 = vunpack.c.0.s8 %v3813
    %v3815 = vlaneseq
    %v3816 = vshrl.u32 %v3815, 7
    %v3817 = vsub.s32 %v3814, %v3816
    %v3818 = vrot.slane %v3811, %v3817
    %v3819 = vcombine.low %v3794, %v3802
    %v3820 = vcombine.high %v3794, %v3802
    %v3822 = vunpack.c.l.s4 1934713408
    %v3823 = vunpack.c.0.s8 %v3822
    %v3824 = vlaneseq
    %v3825 = vshrl.u32 %v3824, 7
    %v3826 = vsub.s32 %v3823, %v3825
    %v3827 = vrot.slane %v3819, %v3826
    %v3829 = vunpack.c.l.s4 1934713408
    %v3830 = vunpack.c.0.s8 %v3829
    %v3831 = vlaneseq
    %v3832 = vshrl.u32 %v3831, 7
    %v3833 = vsub.s32 %v3830, %v3832
    %v3834 = vrot.slane %v3820, %v3833
    %v3835 = vcombine.low %v3810, %v3818
    %v3836 = vcombine.high %v3810, %v3818
    %v3838 = vunpack.c.l.s4 1934713408
    %v3839 = vunpack.c.0.s8 %v3838
    %v3840 = vlaneseq
    %v3841 = vshrl.u32 %v3840, 7
    %v3842 = vsub.s32 %v3839, %v3841
    %v3843 = vrot.slane %v3835, %v3842
    %v3845 = vunpack.c.l.s4 1934713408
    %v3846 = vunpack.c.0.s8 %v3845
    %v3847 = vlaneseq
    %v3848 = vshrl.u32 %v3847, 7
    %v3849 = vsub.s32 %v3846, %v3848
    %v3850 = vrot.slane %v3836, %v3849
    %v3851 = vcombine.low %v3827, %v3843
    %v3852 = vcombine.high %v3827, %v3843
    %v3853 = vcombine.low %v3834, %v3850
    %v3854 = vcombine.high %v3834, %v3850
    %v3855 = vcombine.low %v2231, %v2238
    %v3857 = vunpack.c.l.s4 1983009808
    %v3858 = vunpack.c.0.s8 %v3857
    %v3859 = vlaneseq
    %v3860 = vshrl.u32 %v3859, 7
    %v3861 = vsub.s32 %v3858, %v3860
    %v3862 = vrot.slane %v3855, %v3861
    %v3863 = vcombine.low %v2255, %v2256
    %v3865 = vunpack.c.l.s4 1983009808
    %v3866 = vunpack.c.0.s8 %v3865
    %v3867 = vlaneseq
    %v3868 = vshrl.u32 %v3867, 7
    %v3869 = vsub.s32 %v3866, %v3868
    %v3870 = vrot.slane %v3863, %v3869
    %v3871 = vcombine.low %v2247, %v2254
    %v3873 = vunpack.c.l.s4 1983009808
    %v3874 = vunpack.c.0.s8 %v3873
    %v3875 = vlaneseq
    %v3876 = vshrl.u32 %v3875, 7
    %v3877 = vsub.s32 %v3874, %v3876
    %v3878 = vrot.slane %v3871, %v3877
    %v3879 = vcombine.low %v2257, %v2258
    %v3881 = vunpack.c.l.s4 1983009808
    %v3882 = vunpack.c.0.s8 %v3881
    %v3883 = vlaneseq
    %v3884 = vshrl.u32 %v3883, 7
    %v3885 = vsub.s32 %v3882, %v3884
    %v3886 = vrot.slane %v3879, %v3885
    %v3887 = vcombine.low %v3862, %v3870
    %v3888 = vcombine.high %v3862, %v3870
    %v3890 = vunpack.c.l.s4 1934713408
    %v3891 = vunpack.c.0.s8 %v3890
    %v3892 = vlaneseq
    %v3893 = vshrl.u32 %v3892, 7
    %v3894 = vsub.s32 %v3891, %v3893
    %v3895 = vrot.slane %v3887, %v3894
    %v3897 = vunpack.c.l.s4 1934713408
    %v3898 = vunpack.c.0.s8 %v3897
    %v3899 = vlaneseq
    %v3900 = vshrl.u32 %v3899, 7
    %v3901 = vsub.s32 %v3898, %v3900
    %v3902 = vrot.slane %v3888, %v3901
    %v3903 = vcombine.low %v3878, %v3886
    %v3904 = vcombine.high %v3878, %v3886
    %v3906 = vunpack.c.l.s4 1934713408
    %v3907 = vunpack.c.0.s8 %v3906
    %v3908 = vlaneseq
    %v3909 = vshrl.u32 %v3908, 7
    %v3910 = vsub.s32 %v3907, %v3909
    %v3911 = vrot.slane %v3903, %v3910
    %v3913 = vunpack.c.l.s4 1934713408
    %v3914 = vunpack.c.0.s8 %v3913
    %v3915 = vlaneseq
    %v3916 = vshrl.u32 %v3915, 7
    %v3917 = vsub.s32 %v3914, %v3916
    %v3918 = vrot.slane %v3904, %v3917
    %v3919 = vcombine.low %v3895, %v3911
    %v3920 = vcombine.high %v3895, %v3911
    %v3921 = vcombine.low %v3902, %v3918
    %v3922 = vcombine.high %v3902, %v3918
    %v3923 = vcombine.low %v2299, %v2306
    %v3925 = vunpack.c.l.s4 1983009808
    %v3926 = vunpack.c.0.s8 %v3925
    %v3927 = vlaneseq
    %v3928 = vshrl.u32 %v3927, 7
    %v3929 = vsub.s32 %v3926, %v3928
    %v3930 = vrot.slane %v3923, %v3929
    %v3931 = vcombine.low %v2323, %v2324
    %v3933 = vunpack.c.l.s4 1983009808
    %v3934 = vunpack.c.0.s8 %v3933
    %v3935 = vlaneseq
    %v3936 = vshrl.u32 %v3935, 7
    %v3937 = vsub.s32 %v3934, %v3936
    %v3938 = vrot.slane %v3931, %v3937
    %v3939 = vcombine.low %v2315, %v2322
    %v3941 = vunpack.c.l.s4 1983009808
    %v3942 = vunpack.c.0.s8 %v3941
    %v3943 = vlaneseq
    %v3944 = vshrl.u32 %v3943, 7
    %v3945 = vsub.s32 %v3942, %v3944
    %v3946 = vrot.slane %v3939, %v3945
    %v3947 = vcombine.low %v2325, %v2326
    %v3949 = vunpack.c.l.s4 1983009808
    %v3950 = vunpack.c.0.s8 %v3949
    %v3951 = vlaneseq
    %v3952 = vshrl.u32 %v3951, 7
    %v3953 = vsub.s32 %v3950, %v3952
    %v3954 = vrot.slane %v3947, %v3953
    %v3955 = vcombine.low %v3930, %v3938
    %v3956 = vcombine.high %v3930, %v3938
    %v3958 = vunpack.c.l.s4 1934713408
    %v3959 = vunpack.c.0.s8 %v3958
    %v3960 = vlaneseq
    %v3961 = vshrl.u32 %v3960, 7
    %v3962 = vsub.s32 %v3959, %v3961
    %v3963 = vrot.slane %v3955, %v3962
    %v3965 = vunpack.c.l.s4 1934713408
    %v3966 = vunpack.c.0.s8 %v3965
    %v3967 = vlaneseq
    %v3968 = vshrl.u32 %v3967, 7
    %v3969 = vsub.s32 %v3966, %v3968
    %v3970 = vrot.slane %v3956, %v3969
    %v3971 = vcombine.low %v3946, %v3954
    %v3972 = vcombine.high %v3946, %v3954
    %v3974 = vunpack.c.l.s4 1934713408
    %v3975 = vunpack.c.0.s8 %v3974
    %v3976 = vlaneseq
    %v3977 = vshrl.u32 %v3976, 7
    %v3978 = vsub.s32 %v3975, %v3977
    %v3979 = vrot.slane %v3971, %v3978
    %v3981 = vunpack.c.l.s4 1934713408
    %v3982 = vunpack.c.0.s8 %v3981
    %v3983 = vlaneseq
    %v3984 = vshrl.u32 %v3983, 7
    %v3985 = vsub.s32 %v3982, %v3984
    %v3986 = vrot.slane %v3972, %v3985
    %v3987 = vcombine.low %v3963, %v3979
    %v3988 = vcombine.high %v3963, %v3979
    %v3989 = vcombine.low %v3970, %v3986
    %v3990 = vcombine.high %v3970, %v3986
    %v3991 = vcombine.low %v2367, %v2374
    %v3993 = vunpack.c.l.s4 1983009808
    %v3994 = vunpack.c.0.s8 %v3993
    %v3995 = vlaneseq
    %v3996 = vshrl.u32 %v3995, 7
    %v3997 = vsub.s32 %v3994, %v3996
    %v3998 = vrot.slane %v3991, %v3997
    %v3999 = vcombine.low %v2391, %v2392
    %v4001 = vunpack.c.l.s4 1983009808
    %v4002 = vunpack.c.0.s8 %v4001
    %v4003 = vlaneseq
    %v4004 = vshrl.u32 %v4003, 7
    %v4005 = vsub.s32 %v4002, %v4004
    %v4006 = vrot.slane %v3999, %v4005
    %v4007 = vcombine.low %v2383, %v2390
    %v4009 = vunpack.c.l.s4 1983009808
    %v4010 = vunpack.c.0.s8 %v4009
    %v4011 = vlaneseq
    %v4012 = vshrl.u32 %v4011, 7
    %v4013 = vsub.s32 %v4010, %v4012
    %v4014 = vrot.slane %v4007, %v4013
    %v4015 = vcombine.low %v2393, %v2394
    %v4017 = vunpack.c.l.s4 1983009808
    %v4018 = vunpack.c.0.s8 %v4017
    %v4019 = vlaneseq
    %v4020 = vshrl.u32 %v4019, 7
    %v4021 = vsub.s32 %v4018, %v4020
    %v4022 = vrot.slane %v4015, %v4021
    %v4023 = vcombine.low %v3998, %v4006
    %v4024 = vcombine.high %v3998, %v4006
    %v4026 = vunpack.c.l.s4 1934713408
    %v4027 = vunpack.c.0.s8 %v4026
    %v4028 = vlaneseq
    %v4029 = vshrl.u32 %v4028, 7
    %v4030 = vsub.s32 %v4027, %v4029
    %v4031 = vrot.slane %v4023, %v4030
    %v4033 = vunpack.c.l.s4 1934713408
    %v4034 = vunpack.c.0.s8 %v4033
    %v4035 = vlaneseq
    %v4036 = vshrl.u32 %v4035, 7
    %v4037 = vsub.s32 %v4034, %v4036
    %v4038 = vrot.slane %v4024, %v4037
    %v4039 = vcombine.low %v4014, %v4022
    %v4040 = vcombine.high %v4014, %v4022
    %v4042 = vunpack.c.l.s4 1934713408
    %v4043 = vunpack.c.0.s8 %v4042
    %v4044 = vlaneseq
    %v4045 = vshrl.u32 %v4044, 7
    %v4046 = vsub.s32 %v4043, %v4045
    %v4047 = vrot.slane %v4039, %v4046
    %v4049 = vunpack.c.l.s4 1934713408
    %v4050 = vunpack.c.0.s8 %v4049
    %v4051 = vlaneseq
    %v4052 = vshrl.u32 %v4051, 7
    %v4053 = vsub.s32 %v4050, %v4052
    %v4054 = vrot.slane %v4040, %v4053
    %v4055 = vcombine.low %v4031, %v4047
    %v4056 = vcombine.high %v4031, %v4047
    %v4057 = vcombine.low %v4038, %v4054
    %v4058 = vcombine.high %v4038, %v4054
    %v4059 = vpack.c.bf16 %v3647, %v3579
    %v4060 = vpack.c.bf16 %v3648, %v3580
    %v4061 = vpack.c.bf16 %v3649, %v3581
    %v4062 = vpack.c.bf16 %v3650, %v3582
    %v4063 = vpack.c.bf16 %v3783, %v3715
    %v4064 = vpack.c.bf16 %v3784, %v3716
    %v4065 = vpack.c.bf16 %v3785, %v3717
    %v4066 = vpack.c.bf16 %v3786, %v3718
    %v4067 = vpack.c.bf16 %v3919, %v3851
    %v4068 = vpack.c.bf16 %v3920, %v3852
    %v4069 = vpack.c.bf16 %v3921, %v3853
    %v4070 = vpack.c.bf16 %v3922, %v3854
    %v4071 = vpack.c.bf16 %v4055, %v3987
    %v4072 = vpack.c.bf16 %v4056, %v3988
    %v4073 = vpack.c.bf16 %v4057, %v3989
    %v4074 = vpack.c.bf16 %v4058, %v3990
    %vm4075 = vcmask 261120
    %v4077 = vsel %vm4075, %v2939, 0
    %v4080 = vsel %vm4075, %v3499, 0
    %4082 = vmatprep.subr.bf16.mxu0 0
    %4083 = vmatpush1.bf16.xpose.msra.mxu0 %v4080
    %4084 = vmatprep.subr.bf16.mxu0 0
    %4085 = vmatpush1.bf16.xpose.msra.mxu0 0
    %4086 = vmatprep.subr.bf16.mxu0 0
    %4087 = vmatpush1.bf16.xpose.msra.mxu0 0
    %4088 = vmatprep.subr.bf16.mxu0 0
    %4089 = vmatpush1.bf16.xpose.msra.mxu0 0
    %4090 = vmatprep.subr.bf16.mxu0 0
    %4091 = vmatpush1.bf16.xpose.msra.mxu0 0
    %4092 = vmatprep.subr.bf16.mxu0 0
    %4093 = vmatpush1.bf16.xpose.msra.mxu0 0
    %4094 = vmatprep.subr.bf16.mxu0 0
    %4095 = vmatpush1.bf16.xpose.msra.mxu0 0
    %4096 = vmatprep.subr.bf16.mxu0 0
    %4097 = vmatpush1.bf16.xpose.msra.mxu0 0
    %4098 = vmatprep.subr.bf16.mxu0 0
    %4099 = vmatpush1.bf16.xpose.msra.mxu0 0
    %4100 = vmatprep.subr.bf16.mxu0 0
    %4101 = vmatpush1.bf16.xpose.msra.mxu0 0
    %4102 = vmatprep.subr.bf16.mxu0 0
    %4103 = vmatpush1.bf16.xpose.msra.mxu0 0
    %4104 = vmatprep.subr.bf16.mxu0 0
    %4105 = vmatpush1.bf16.xpose.msra.mxu0 0
    %4106 = vmatprep.subr.bf16.mxu0 0
    %4107 = vmatpush1.bf16.xpose.msra.mxu0 0
    %4108 = vmatprep.subr.bf16.mxu0 0
    %4109 = vmatpush1.bf16.xpose.msra.mxu0 0
    %4110 = vmatprep.subr.bf16.mxu0 0
    %4111 = vmatpush1.bf16.xpose.msra.mxu0 0
    %4112 = vmatprep.subr.bf16.mxu0 0
    %4113 = vmatpush1.bf16.xpose.msra.mxu0 0
    %4114 = vmatprep.mubr.bf16.mxu0 0
    %4115 = vmatmul.mubr.bf16.gmra.mrb[0].mxu0 %v4077
    %v4116 = vpop.f32.mrb[0].mxu0
    %v4117 = vadd.f32 0.0, %v4116
    %v4118 = vpop.f32.mrb[0].mxu0
    %v4119 = vpop.f32.mrb[0].mxu0
    %v4120 = vadd.f32 0.0, %v4119
    %v4121 = vpop.f32.mrb[0].mxu0
    %4122 = vdwg.mxu0
    %v4124 = vsel %vm4075, %v2940, 0
    %v4127 = vsel %vm4075, %v3500, 0
    %4129 = vmatprep.subr.bf16.mxu0 0
    %4130 = vmatpush1.bf16.xpose.msra.mxu0 %v4127
    %4131 = vmatprep.subr.bf16.mxu0 0
    %4132 = vmatpush1.bf16.xpose.msra.mxu0 0
    %4133 = vmatprep.subr.bf16.mxu0 0
    %4134 = vmatpush1.bf16.xpose.msra.mxu0 0
    %4135 = vmatprep.subr.bf16.mxu0 0
    %4136 = vmatpush1.bf16.xpose.msra.mxu0 0
    %4137 = vmatprep.subr.bf16.mxu0 0
    %4138 = vmatpush1.bf16.xpose.msra.mxu0 0
    %4139 = vmatprep.subr.bf16.mxu0 0
    %4140 = vmatpush1.bf16.xpose.msra.mxu0 0
    %4141 = vmatprep.subr.bf16.mxu0 0
    %4142 = vmatpush1.bf16.xpose.msra.mxu0 0
    %4143 = vmatprep.subr.bf16.mxu0 0
    %4144 = vmatpush1.bf16.xpose.msra.mxu0 0
    %4145 = vmatprep.subr.bf16.mxu0 0
    %4146 = vmatpush1.bf16.xpose.msra.mxu0 0
    %4147 = vmatprep.subr.bf16.mxu0 0
    %4148 = vmatpush1.bf16.xpose.msra.mxu0 0
    %4149 = vmatprep.subr.bf16.mxu0 0
    %4150 = vmatpush1.bf16.xpose.msra.mxu0 0
    %4151 = vmatprep.subr.bf16.mxu0 0
    %4152 = vmatpush1.bf16.xpose.msra.mxu0 0
    %4153 = vmatprep.subr.bf16.mxu0 0
    %4154 = vmatpush1.bf16.xpose.msra.mxu0 0
    %4155 = vmatprep.subr.bf16.mxu0 0
    %4156 = vmatpush1.bf16.xpose.msra.mxu0 0
    %4157 = vmatprep.subr.bf16.mxu0 0
    %4158 = vmatpush1.bf16.xpose.msra.mxu0 0
    %4159 = vmatprep.subr.bf16.mxu0 0
    %4160 = vmatpush1.bf16.xpose.msra.mxu0 0
    %4161 = vmatprep.mubr.bf16.mxu0 0
    %4162 = vmatmul.mubr.bf16.gmra.mrb[0].mxu0 %v4124
    %v4163 = vpop.f32.mrb[0].mxu0
    %v4164 = vadd.f32 0.0, %v4163
    %v4165 = vpop.f32.mrb[0].mxu0
    %v4166 = vpop.f32.mrb[0].mxu0
    %v4167 = vadd.f32 0.0, %v4166
    %v4168 = vpop.f32.mrb[0].mxu0
    %4169 = vdwg.mxu0
    %v4171 = vsel %vm4075, %v2941, 0
    %v4174 = vsel %vm4075, %v3501, 0
    %4176 = vmatprep.subr.bf16.mxu0 0
    %4177 = vmatpush1.bf16.xpose.msra.mxu0 %v4174
    %4178 = vmatprep.subr.bf16.mxu0 0
    %4179 = vmatpush1.bf16.xpose.msra.mxu0 0
    %4180 = vmatprep.subr.bf16.mxu0 0
    %4181 = vmatpush1.bf16.xpose.msra.mxu0 0
    %4182 = vmatprep.subr.bf16.mxu0 0
    %4183 = vmatpush1.bf16.xpose.msra.mxu0 0
    %4184 = vmatprep.subr.bf16.mxu0 0
    %4185 = vmatpush1.bf16.xpose.msra.mxu0 0
    %4186 = vmatprep.subr.bf16.mxu0 0
    %4187 = vmatpush1.bf16.xpose.msra.mxu0 0
    %4188 = vmatprep.subr.bf16.mxu0 0
    %4189 = vmatpush1.bf16.xpose.msra.mxu0 0
    %4190 = vmatprep.subr.bf16.mxu0 0
    %4191 = vmatpush1.bf16.xpose.msra.mxu0 0
    %4192 = vmatprep.subr.bf16.mxu0 0
    %4193 = vmatpush1.bf16.xpose.msra.mxu0 0
    %4194 = vmatprep.subr.bf16.mxu0 0
    %4195 = vmatpush1.bf16.xpose.msra.mxu0 0
    %4196 = vmatprep.subr.bf16.mxu0 0
    %4197 = vmatpush1.bf16.xpose.msra.mxu0 0
    %4198 = vmatprep.subr.bf16.mxu0 0
    %4199 = vmatpush1.bf16.xpose.msra.mxu0 0
    %4200 = vmatprep.subr.bf16.mxu0 0
    %4201 = vmatpush1.bf16.xpose.msra.mxu0 0
    %4202 = vmatprep.subr.bf16.mxu0 0
    %4203 = vmatpush1.bf16.xpose.msra.mxu0 0
    %4204 = vmatprep.subr.bf16.mxu0 0
    %4205 = vmatpush1.bf16.xpose.msra.mxu0 0
    %4206 = vmatprep.subr.bf16.mxu0 0
    %4207 = vmatpush1.bf16.xpose.msra.mxu0 0
    %4208 = vmatprep.mubr.bf16.mxu0 0
    %4209 = vmatmul.mubr.bf16.gmra.mrb[0].mxu0 %v4171
    %v4210 = vpop.f32.mrb[0].mxu0
    %v4211 = vadd.f32 0.0, %v4210
    %v4212 = vpop.f32.mrb[0].mxu0
    %v4213 = vpop.f32.mrb[0].mxu0
    %v4214 = vadd.f32 0.0, %v4213
    %v4215 = vpop.f32.mrb[0].mxu0
    %4216 = vdwg.mxu0
    %v4218 = vsel %vm4075, %v2942, 0
    %v4221 = vsel %vm4075, %v3502, 0
    %4223 = vmatprep.subr.bf16.mxu0 0
    %4224 = vmatpush1.bf16.xpose.msra.mxu0 %v4221
    %4225 = vmatprep.subr.bf16.mxu0 0
    %4226 = vmatpush1.bf16.xpose.msra.mxu0 0
    %4227 = vmatprep.subr.bf16.mxu0 0
    %4228 = vmatpush1.bf16.xpose.msra.mxu0 0
    %4229 = vmatprep.subr.bf16.mxu0 0
    %4230 = vmatpush1.bf16.xpose.msra.mxu0 0
    %4231 = vmatprep.subr.bf16.mxu0 0
    %4232 = vmatpush1.bf16.xpose.msra.mxu0 0
    %4233 = vmatprep.subr.bf16.mxu0 0
    %4234 = vmatpush1.bf16.xpose.msra.mxu0 0
    %4235 = vmatprep.subr.bf16.mxu0 0
    %4236 = vmatpush1.bf16.xpose.msra.mxu0 0
    %4237 = vmatprep.subr.bf16.mxu0 0
    %4238 = vmatpush1.bf16.xpose.msra.mxu0 0
    %4239 = vmatprep.subr.bf16.mxu0 0
    %4240 = vmatpush1.bf16.xpose.msra.mxu0 0
    %4241 = vmatprep.subr.bf16.mxu0 0
    %4242 = vmatpush1.bf16.xpose.msra.mxu0 0
    %4243 = vmatprep.subr.bf16.mxu0 0
    %4244 = vmatpush1.bf16.xpose.msra.mxu0 0
    %4245 = vmatprep.subr.bf16.mxu0 0
    %4246 = vmatpush1.bf16.xpose.msra.mxu0 0
    %4247 = vmatprep.subr.bf16.mxu0 0
    %4248 = vmatpush1.bf16.xpose.msra.mxu0 0
    %4249 = vmatprep.subr.bf16.mxu0 0
    %4250 = vmatpush1.bf16.xpose.msra.mxu0 0
    %4251 = vmatprep.subr.bf16.mxu0 0
    %4252 = vmatpush1.bf16.xpose.msra.mxu0 0
    %4253 = vmatprep.subr.bf16.mxu0 0
    %4254 = vmatpush1.bf16.xpose.msra.mxu0 0
    %4255 = vmatprep.mubr.bf16.mxu0 0
    %4256 = vmatmul.mubr.bf16.gmra.mrb[0].mxu0 %v4218
    %v4257 = vpop.f32.mrb[0].mxu0
    %v4258 = vadd.f32 0.0, %v4257
    %v4259 = vpop.f32.mrb[0].mxu0
    %v4260 = vpop.f32.mrb[0].mxu0
    %v4261 = vadd.f32 0.0, %v4260
    %v4262 = vpop.f32.mrb[0].mxu0
    %4263 = vdwg.mxu0
    %v4265 = vsel %vm4075, %v2943, 0
    %v4268 = vsel %vm4075, %v3503, 0
    %4270 = vmatprep.subr.bf16.mxu0 0
    %4271 = vmatpush1.bf16.xpose.msra.mxu0 %v4268
    %4272 = vmatprep.subr.bf16.mxu0 0
    %4273 = vmatpush1.bf16.xpose.msra.mxu0 0
    %4274 = vmatprep.subr.bf16.mxu0 0
    %4275 = vmatpush1.bf16.xpose.msra.mxu0 0
    %4276 = vmatprep.subr.bf16.mxu0 0
    %4277 = vmatpush1.bf16.xpose.msra.mxu0 0
    %4278 = vmatprep.subr.bf16.mxu0 0
    %4279 = vmatpush1.bf16.xpose.msra.mxu0 0
    %4280 = vmatprep.subr.bf16.mxu0 0
    %4281 = vmatpush1.bf16.xpose.msra.mxu0 0
    %4282 = vmatprep.subr.bf16.mxu0 0
    %4283 = vmatpush1.bf16.xpose.msra.mxu0 0
    %4284 = vmatprep.subr.bf16.mxu0 0
    %4285 = vmatpush1.bf16.xpose.msra.mxu0 0
    %4286 = vmatprep.subr.bf16.mxu0 0
    %4287 = vmatpush1.bf16.xpose.msra.mxu0 0
    %4288 = vmatprep.subr.bf16.mxu0 0
    %4289 = vmatpush1.bf16.xpose.msra.mxu0 0
    %4290 = vmatprep.subr.bf16.mxu0 0
    %4291 = vmatpush1.bf16.xpose.msra.mxu0 0
    %4292 = vmatprep.subr.bf16.mxu0 0
    %4293 = vmatpush1.bf16.xpose.msra.mxu0 0
    %4294 = vmatprep.subr.bf16.mxu0 0
    %4295 = vmatpush1.bf16.xpose.msra.mxu0 0
    %4296 = vmatprep.subr.bf16.mxu0 0
    %4297 = vmatpush1.bf16.xpose.msra.mxu0 0
    %4298 = vmatprep.subr.bf16.mxu0 0
    %4299 = vmatpush1.bf16.xpose.msra.mxu0 0
    %4300 = vmatprep.subr.bf16.mxu0 0
    %4301 = vmatpush1.bf16.xpose.msra.mxu0 0
    %4302 = vmatprep.mubr.bf16.mxu0 0
    %4303 = vmatmul.mubr.bf16.gmra.mrb[0].mxu0 %v4265
    %v4304 = vpop.f32.mrb[0].mxu0
    %v4305 = vadd.f32 0.0, %v4304
    %v4306 = vpop.f32.mrb[0].mxu0
    %v4307 = vpop.f32.mrb[0].mxu0
    %v4308 = vadd.f32 0.0, %v4307
    %v4309 = vpop.f32.mrb[0].mxu0
    %4310 = vdwg.mxu0
    %v4312 = vsel %vm4075, %v2944, 0
    %v4315 = vsel %vm4075, %v3504, 0
    %4317 = vmatprep.subr.bf16.mxu0 0
    %4318 = vmatpush1.bf16.xpose.msra.mxu0 %v4315
    %4319 = vmatprep.subr.bf16.mxu0 0
    %4320 = vmatpush1.bf16.xpose.msra.mxu0 0
    %4321 = vmatprep.subr.bf16.mxu0 0
    %4322 = vmatpush1.bf16.xpose.msra.mxu0 0
    %4323 = vmatprep.subr.bf16.mxu0 0
    %4324 = vmatpush1.bf16.xpose.msra.mxu0 0
    %4325 = vmatprep.subr.bf16.mxu0 0
    %4326 = vmatpush1.bf16.xpose.msra.mxu0 0
    %4327 = vmatprep.subr.bf16.mxu0 0
    %4328 = vmatpush1.bf16.xpose.msra.mxu0 0
    %4329 = vmatprep.subr.bf16.mxu0 0
    %4330 = vmatpush1.bf16.xpose.msra.mxu0 0
    %4331 = vmatprep.subr.bf16.mxu0 0
    %4332 = vmatpush1.bf16.xpose.msra.mxu0 0
    %4333 = vmatprep.subr.bf16.mxu0 0
    %4334 = vmatpush1.bf16.xpose.msra.mxu0 0
    %4335 = vmatprep.subr.bf16.mxu0 0
    %4336 = vmatpush1.bf16.xpose.msra.mxu0 0
    %4337 = vmatprep.subr.bf16.mxu0 0
    %4338 = vmatpush1.bf16.xpose.msra.mxu0 0
    %4339 = vmatprep.subr.bf16.mxu0 0
    %4340 = vmatpush1.bf16.xpose.msra.mxu0 0
    %4341 = vmatprep.subr.bf16.mxu0 0
    %4342 = vmatpush1.bf16.xpose.msra.mxu0 0
    %4343 = vmatprep.subr.bf16.mxu0 0
    %4344 = vmatpush1.bf16.xpose.msra.mxu0 0
    %4345 = vmatprep.subr.bf16.mxu0 0
    %4346 = vmatpush1.bf16.xpose.msra.mxu0 0
    %4347 = vmatprep.subr.bf16.mxu0 0
    %4348 = vmatpush1.bf16.xpose.msra.mxu0 0
    %4349 = vmatprep.mubr.bf16.mxu0 0
    %4350 = vmatmul.mubr.bf16.gmra.mrb[0].mxu0 %v4312
    %v4351 = vpop.f32.mrb[0].mxu0
    %v4352 = vadd.f32 0.0, %v4351
    %v4353 = vpop.f32.mrb[0].mxu0
    %v4354 = vpop.f32.mrb[0].mxu0
    %v4355 = vadd.f32 0.0, %v4354
    %v4356 = vpop.f32.mrb[0].mxu0
    %4357 = vdwg.mxu0
    %v4359 = vsel %vm4075, %v2945, 0
    %v4362 = vsel %vm4075, %v3505, 0
    %4364 = vmatprep.subr.bf16.mxu0 0
    %4365 = vmatpush1.bf16.xpose.msra.mxu0 %v4362
    %4366 = vmatprep.subr.bf16.mxu0 0
    %4367 = vmatpush1.bf16.xpose.msra.mxu0 0
    %4368 = vmatprep.subr.bf16.mxu0 0
    %4369 = vmatpush1.bf16.xpose.msra.mxu0 0
    %4370 = vmatprep.subr.bf16.mxu0 0
    %4371 = vmatpush1.bf16.xpose.msra.mxu0 0
    %4372 = vmatprep.subr.bf16.mxu0 0
    %4373 = vmatpush1.bf16.xpose.msra.mxu0 0
    %4374 = vmatprep.subr.bf16.mxu0 0
    %4375 = vmatpush1.bf16.xpose.msra.mxu0 0
    %4376 = vmatprep.subr.bf16.mxu0 0
    %4377 = vmatpush1.bf16.xpose.msra.mxu0 0
    %4378 = vmatprep.subr.bf16.mxu0 0
    %4379 = vmatpush1.bf16.xpose.msra.mxu0 0
    %4380 = vmatprep.subr.bf16.mxu0 0
    %4381 = vmatpush1.bf16.xpose.msra.mxu0 0
    %4382 = vmatprep.subr.bf16.mxu0 0
    %4383 = vmatpush1.bf16.xpose.msra.mxu0 0
    %4384 = vmatprep.subr.bf16.mxu0 0
    %4385 = vmatpush1.bf16.xpose.msra.mxu0 0
    %4386 = vmatprep.subr.bf16.mxu0 0
    %4387 = vmatpush1.bf16.xpose.msra.mxu0 0
    %4388 = vmatprep.subr.bf16.mxu0 0
    %4389 = vmatpush1.bf16.xpose.msra.mxu0 0
    %4390 = vmatprep.subr.bf16.mxu0 0
    %4391 = vmatpush1.bf16.xpose.msra.mxu0 0
    %4392 = vmatprep.subr.bf16.mxu0 0
    %4393 = vmatpush1.bf16.xpose.msra.mxu0 0
    %4394 = vmatprep.subr.bf16.mxu0 0
    %4395 = vmatpush1.bf16.xpose.msra.mxu0 0
    %4396 = vmatprep.mubr.bf16.mxu0 0
    %4397 = vmatmul.mubr.bf16.gmra.mrb[0].mxu0 %v4359
    %v4398 = vpop.f32.mrb[0].mxu0
    %v4399 = vadd.f32 0.0, %v4398
    %v4400 = vpop.f32.mrb[0].mxu0
    %v4401 = vpop.f32.mrb[0].mxu0
    %v4402 = vadd.f32 0.0, %v4401
    %v4403 = vpop.f32.mrb[0].mxu0
    %4404 = vdwg.mxu0
    %v4406 = vsel %vm4075, %v2946, 0
    %v4409 = vsel %vm4075, %v3506, 0
    %4411 = vmatprep.subr.bf16.mxu0 0
    %4412 = vmatpush1.bf16.xpose.msra.mxu0 %v4409
    %4413 = vmatprep.subr.bf16.mxu0 0
    %4414 = vmatpush1.bf16.xpose.msra.mxu0 0
    %4415 = vmatprep.subr.bf16.mxu0 0
    %4416 = vmatpush1.bf16.xpose.msra.mxu0 0
    %4417 = vmatprep.subr.bf16.mxu0 0
    %4418 = vmatpush1.bf16.xpose.msra.mxu0 0
    %4419 = vmatprep.subr.bf16.mxu0 0
    %4420 = vmatpush1.bf16.xpose.msra.mxu0 0
    %4421 = vmatprep.subr.bf16.mxu0 0
    %4422 = vmatpush1.bf16.xpose.msra.mxu0 0
    %4423 = vmatprep.subr.bf16.mxu0 0
    %4424 = vmatpush1.bf16.xpose.msra.mxu0 0
    %4425 = vmatprep.subr.bf16.mxu0 0
    %4426 = vmatpush1.bf16.xpose.msra.mxu0 0
    %4427 = vmatprep.subr.bf16.mxu0 0
    %4428 = vmatpush1.bf16.xpose.msra.mxu0 0
    %4429 = vmatprep.subr.bf16.mxu0 0
    %4430 = vmatpush1.bf16.xpose.msra.mxu0 0
    %4431 = vmatprep.subr.bf16.mxu0 0
    %4432 = vmatpush1.bf16.xpose.msra.mxu0 0
    %4433 = vmatprep.subr.bf16.mxu0 0
    %4434 = vmatpush1.bf16.xpose.msra.mxu0 0
    %4435 = vmatprep.subr.bf16.mxu0 0
    %4436 = vmatpush1.bf16.xpose.msra.mxu0 0
    %4437 = vmatprep.subr.bf16.mxu0 0
    %4438 = vmatpush1.bf16.xpose.msra.mxu0 0
    %4439 = vmatprep.subr.bf16.mxu0 0
    %4440 = vmatpush1.bf16.xpose.msra.mxu0 0
    %4441 = vmatprep.subr.bf16.mxu0 0
    %4442 = vmatpush1.bf16.xpose.msra.mxu0 0
    %4443 = vmatprep.mubr.bf16.mxu0 0
    %4444 = vmatmul.mubr.bf16.gmra.mrb[0].mxu0 %v4406
    %v4445 = vpop.f32.mrb[0].mxu0
    %v4446 = vadd.f32 0.0, %v4445
    %v4447 = vpop.f32.mrb[0].mxu0
    %v4448 = vpop.f32.mrb[0].mxu0
    %v4449 = vadd.f32 0.0, %v4448
    %v4450 = vpop.f32.mrb[0].mxu0
    %4451 = vdwg.mxu0
    %v4453 = vsel %vm4075, %v2947, 0
    %v4456 = vsel %vm4075, %v3507, 0
    %4458 = vmatprep.subr.bf16.mxu0 0
    %4459 = vmatpush1.bf16.xpose.msra.mxu0 %v4456
    %4460 = vmatprep.subr.bf16.mxu0 0
    %4461 = vmatpush1.bf16.xpose.msra.mxu0 0
    %4462 = vmatprep.subr.bf16.mxu0 0
    %4463 = vmatpush1.bf16.xpose.msra.mxu0 0
    %4464 = vmatprep.subr.bf16.mxu0 0
    %4465 = vmatpush1.bf16.xpose.msra.mxu0 0
    %4466 = vmatprep.subr.bf16.mxu0 0
    %4467 = vmatpush1.bf16.xpose.msra.mxu0 0
    %4468 = vmatprep.subr.bf16.mxu0 0
    %4469 = vmatpush1.bf16.xpose.msra.mxu0 0
    %4470 = vmatprep.subr.bf16.mxu0 0
    %4471 = vmatpush1.bf16.xpose.msra.mxu0 0
    %4472 = vmatprep.subr.bf16.mxu0 0
    %4473 = vmatpush1.bf16.xpose.msra.mxu0 0
    %4474 = vmatprep.subr.bf16.mxu0 0
    %4475 = vmatpush1.bf16.xpose.msra.mxu0 0
    %4476 = vmatprep.subr.bf16.mxu0 0
    %4477 = vmatpush1.bf16.xpose.msra.mxu0 0
    %4478 = vmatprep.subr.bf16.mxu0 0
    %4479 = vmatpush1.bf16.xpose.msra.mxu0 0
    %4480 = vmatprep.subr.bf16.mxu0 0
    %4481 = vmatpush1.bf16.xpose.msra.mxu0 0
    %4482 = vmatprep.subr.bf16.mxu0 0
    %4483 = vmatpush1.bf16.xpose.msra.mxu0 0
    %4484 = vmatprep.subr.bf16.mxu0 0
    %4485 = vmatpush1.bf16.xpose.msra.mxu0 0
    %4486 = vmatprep.subr.bf16.mxu0 0
    %4487 = vmatpush1.bf16.xpose.msra.mxu0 0
    %4488 = vmatprep.subr.bf16.mxu0 0
    %4489 = vmatpush1.bf16.xpose.msra.mxu0 0
    %4490 = vmatprep.mubr.bf16.mxu0 0
    %4491 = vmatmul.mubr.bf16.gmra.mrb[0].mxu0 %v4453
    %v4492 = vpop.f32.mrb[0].mxu0
    %v4493 = vadd.f32 0.0, %v4492
    %v4494 = vpop.f32.mrb[0].mxu0
    %v4495 = vpop.f32.mrb[0].mxu0
    %v4496 = vadd.f32 0.0, %v4495
    %v4497 = vpop.f32.mrb[0].mxu0
    %4498 = vdwg.mxu0
    %v4500 = vsel %vm4075, %v2948, 0
    %v4503 = vsel %vm4075, %v3508, 0
    %4505 = vmatprep.subr.bf16.mxu0 0
    %4506 = vmatpush1.bf16.xpose.msra.mxu0 %v4503
    %4507 = vmatprep.subr.bf16.mxu0 0
    %4508 = vmatpush1.bf16.xpose.msra.mxu0 0
    %4509 = vmatprep.subr.bf16.mxu0 0
    %4510 = vmatpush1.bf16.xpose.msra.mxu0 0
    %4511 = vmatprep.subr.bf16.mxu0 0
    %4512 = vmatpush1.bf16.xpose.msra.mxu0 0
    %4513 = vmatprep.subr.bf16.mxu0 0
    %4514 = vmatpush1.bf16.xpose.msra.mxu0 0
    %4515 = vmatprep.subr.bf16.mxu0 0
    %4516 = vmatpush1.bf16.xpose.msra.mxu0 0
    %4517 = vmatprep.subr.bf16.mxu0 0
    %4518 = vmatpush1.bf16.xpose.msra.mxu0 0
    %4519 = vmatprep.subr.bf16.mxu0 0
    %4520 = vmatpush1.bf16.xpose.msra.mxu0 0
    %4521 = vmatprep.subr.bf16.mxu0 0
    %4522 = vmatpush1.bf16.xpose.msra.mxu0 0
    %4523 = vmatprep.subr.bf16.mxu0 0
    %4524 = vmatpush1.bf16.xpose.msra.mxu0 0
    %4525 = vmatprep.subr.bf16.mxu0 0
    %4526 = vmatpush1.bf16.xpose.msra.mxu0 0
    %4527 = vmatprep.subr.bf16.mxu0 0
    %4528 = vmatpush1.bf16.xpose.msra.mxu0 0
    %4529 = vmatprep.subr.bf16.mxu0 0
    %4530 = vmatpush1.bf16.xpose.msra.mxu0 0
    %4531 = vmatprep.subr.bf16.mxu0 0
    %4532 = vmatpush1.bf16.xpose.msra.mxu0 0
    %4533 = vmatprep.subr.bf16.mxu0 0
    %4534 = vmatpush1.bf16.xpose.msra.mxu0 0
    %4535 = vmatprep.subr.bf16.mxu0 0
    %4536 = vmatpush1.bf16.xpose.msra.mxu0 0
    %4537 = vmatprep.mubr.bf16.mxu0 0
    %4538 = vmatmul.mubr.bf16.gmra.mrb[0].mxu0 %v4500
    %v4539 = vpop.f32.mrb[0].mxu0
    %v4540 = vadd.f32 0.0, %v4539
    %v4541 = vpop.f32.mrb[0].mxu0
    %v4542 = vpop.f32.mrb[0].mxu0
    %v4543 = vadd.f32 0.0, %v4542
    %v4544 = vpop.f32.mrb[0].mxu0
    %4545 = vdwg.mxu0
    %v4547 = vsel %vm4075, %v2949, 0
    %v4550 = vsel %vm4075, %v3509, 0
    %4552 = vmatprep.subr.bf16.mxu0 0
    %4553 = vmatpush1.bf16.xpose.msra.mxu0 %v4550
    %4554 = vmatprep.subr.bf16.mxu0 0
    %4555 = vmatpush1.bf16.xpose.msra.mxu0 0
    %4556 = vmatprep.subr.bf16.mxu0 0
    %4557 = vmatpush1.bf16.xpose.msra.mxu0 0
    %4558 = vmatprep.subr.bf16.mxu0 0
    %4559 = vmatpush1.bf16.xpose.msra.mxu0 0
    %4560 = vmatprep.subr.bf16.mxu0 0
    %4561 = vmatpush1.bf16.xpose.msra.mxu0 0
    %4562 = vmatprep.subr.bf16.mxu0 0
    %4563 = vmatpush1.bf16.xpose.msra.mxu0 0
    %4564 = vmatprep.subr.bf16.mxu0 0
    %4565 = vmatpush1.bf16.xpose.msra.mxu0 0
    %4566 = vmatprep.subr.bf16.mxu0 0
    %4567 = vmatpush1.bf16.xpose.msra.mxu0 0
    %4568 = vmatprep.subr.bf16.mxu0 0
    %4569 = vmatpush1.bf16.xpose.msra.mxu0 0
    %4570 = vmatprep.subr.bf16.mxu0 0
    %4571 = vmatpush1.bf16.xpose.msra.mxu0 0
    %4572 = vmatprep.subr.bf16.mxu0 0
    %4573 = vmatpush1.bf16.xpose.msra.mxu0 0
    %4574 = vmatprep.subr.bf16.mxu0 0
    %4575 = vmatpush1.bf16.xpose.msra.mxu0 0
    %4576 = vmatprep.subr.bf16.mxu0 0
    %4577 = vmatpush1.bf16.xpose.msra.mxu0 0
    %4578 = vmatprep.subr.bf16.mxu0 0
    %4579 = vmatpush1.bf16.xpose.msra.mxu0 0
    %4580 = vmatprep.subr.bf16.mxu0 0
    %4581 = vmatpush1.bf16.xpose.msra.mxu0 0
    %4582 = vmatprep.subr.bf16.mxu0 0
    %4583 = vmatpush1.bf16.xpose.msra.mxu0 0
    %4584 = vmatprep.mubr.bf16.mxu0 0
    %4585 = vmatmul.mubr.bf16.gmra.mrb[0].mxu0 %v4547
    %v4586 = vpop.f32.mrb[0].mxu0
    %v4587 = vadd.f32 0.0, %v4586
    %v4588 = vpop.f32.mrb[0].mxu0
    %v4589 = vpop.f32.mrb[0].mxu0
    %v4590 = vadd.f32 0.0, %v4589
    %v4591 = vpop.f32.mrb[0].mxu0
    %4592 = vdwg.mxu0
    %v4594 = vsel %vm4075, %v2950, 0
    %v4597 = vsel %vm4075, %v3510, 0
    %4599 = vmatprep.subr.bf16.mxu0 0
    %4600 = vmatpush1.bf16.xpose.msra.mxu0 %v4597
    %4601 = vmatprep.subr.bf16.mxu0 0
    %4602 = vmatpush1.bf16.xpose.msra.mxu0 0
    %4603 = vmatprep.subr.bf16.mxu0 0
    %4604 = vmatpush1.bf16.xpose.msra.mxu0 0
    %4605 = vmatprep.subr.bf16.mxu0 0
    %4606 = vmatpush1.bf16.xpose.msra.mxu0 0
    %4607 = vmatprep.subr.bf16.mxu0 0
    %4608 = vmatpush1.bf16.xpose.msra.mxu0 0
    %4609 = vmatprep.subr.bf16.mxu0 0
    %4610 = vmatpush1.bf16.xpose.msra.mxu0 0
    %4611 = vmatprep.subr.bf16.mxu0 0
    %4612 = vmatpush1.bf16.xpose.msra.mxu0 0
    %4613 = vmatprep.subr.bf16.mxu0 0
    %4614 = vmatpush1.bf16.xpose.msra.mxu0 0
    %4615 = vmatprep.subr.bf16.mxu0 0
    %4616 = vmatpush1.bf16.xpose.msra.mxu0 0
    %4617 = vmatprep.subr.bf16.mxu0 0
    %4618 = vmatpush1.bf16.xpose.msra.mxu0 0
    %4619 = vmatprep.subr.bf16.mxu0 0
    %4620 = vmatpush1.bf16.xpose.msra.mxu0 0
    %4621 = vmatprep.subr.bf16.mxu0 0
    %4622 = vmatpush1.bf16.xpose.msra.mxu0 0
    %4623 = vmatprep.subr.bf16.mxu0 0
    %4624 = vmatpush1.bf16.xpose.msra.mxu0 0
    %4625 = vmatprep.subr.bf16.mxu0 0
    %4626 = vmatpush1.bf16.xpose.msra.mxu0 0
    %4627 = vmatprep.subr.bf16.mxu0 0
    %4628 = vmatpush1.bf16.xpose.msra.mxu0 0
    %4629 = vmatprep.subr.bf16.mxu0 0
    %4630 = vmatpush1.bf16.xpose.msra.mxu0 0
    %4631 = vmatprep.mubr.bf16.mxu0 0
    %4632 = vmatmul.mubr.bf16.gmra.mrb[0].mxu0 %v4594
    %v4633 = vpop.f32.mrb[0].mxu0
    %v4634 = vadd.f32 0.0, %v4633
    %v4635 = vpop.f32.mrb[0].mxu0
    %v4636 = vpop.f32.mrb[0].mxu0
    %v4637 = vadd.f32 0.0, %v4636
    %v4638 = vpop.f32.mrb[0].mxu0
    %4639 = vdwg.mxu0
    %v4641 = vsel %vm4075, %v2951, 0
    %v4644 = vsel %vm4075, %v3511, 0
    %4646 = vmatprep.subr.bf16.mxu0 0
    %4647 = vmatpush1.bf16.xpose.msra.mxu0 %v4644
    %4648 = vmatprep.subr.bf16.mxu0 0
    %4649 = vmatpush1.bf16.xpose.msra.mxu0 0
    %4650 = vmatprep.subr.bf16.mxu0 0
    %4651 = vmatpush1.bf16.xpose.msra.mxu0 0
    %4652 = vmatprep.subr.bf16.mxu0 0
    %4653 = vmatpush1.bf16.xpose.msra.mxu0 0
    %4654 = vmatprep.subr.bf16.mxu0 0
    %4655 = vmatpush1.bf16.xpose.msra.mxu0 0
    %4656 = vmatprep.subr.bf16.mxu0 0
    %4657 = vmatpush1.bf16.xpose.msra.mxu0 0
    %4658 = vmatprep.subr.bf16.mxu0 0
    %4659 = vmatpush1.bf16.xpose.msra.mxu0 0
    %4660 = vmatprep.subr.bf16.mxu0 0
    %4661 = vmatpush1.bf16.xpose.msra.mxu0 0
    %4662 = vmatprep.subr.bf16.mxu0 0
    %4663 = vmatpush1.bf16.xpose.msra.mxu0 0
    %4664 = vmatprep.subr.bf16.mxu0 0
    %4665 = vmatpush1.bf16.xpose.msra.mxu0 0
    %4666 = vmatprep.subr.bf16.mxu0 0
    %4667 = vmatpush1.bf16.xpose.msra.mxu0 0
    %4668 = vmatprep.subr.bf16.mxu0 0
    %4669 = vmatpush1.bf16.xpose.msra.mxu0 0
    %4670 = vmatprep.subr.bf16.mxu0 0
    %4671 = vmatpush1.bf16.xpose.msra.mxu0 0
    %4672 = vmatprep.subr.bf16.mxu0 0
    %4673 = vmatpush1.bf16.xpose.msra.mxu0 0
    %4674 = vmatprep.subr.bf16.mxu0 0
    %4675 = vmatpush1.bf16.xpose.msra.mxu0 0
    %4676 = vmatprep.subr.bf16.mxu0 0
    %4677 = vmatpush1.bf16.xpose.msra.mxu0 0
    %4678 = vmatprep.mubr.bf16.mxu0 0
    %4679 = vmatmul.mubr.bf16.gmra.mrb[0].mxu0 %v4641
    %v4680 = vpop.f32.mrb[0].mxu0
    %v4681 = vadd.f32 0.0, %v4680
    %v4682 = vpop.f32.mrb[0].mxu0
    %v4683 = vpop.f32.mrb[0].mxu0
    %v4684 = vadd.f32 0.0, %v4683
    %v4685 = vpop.f32.mrb[0].mxu0
    %4686 = vdwg.mxu0
    %v4688 = vsel %vm4075, %v2952, 0
    %v4691 = vsel %vm4075, %v3512, 0
    %4693 = vmatprep.subr.bf16.mxu0 0
    %4694 = vmatpush1.bf16.xpose.msra.mxu0 %v4691
    %4695 = vmatprep.subr.bf16.mxu0 0
    %4696 = vmatpush1.bf16.xpose.msra.mxu0 0
    %4697 = vmatprep.subr.bf16.mxu0 0
    %4698 = vmatpush1.bf16.xpose.msra.mxu0 0
    %4699 = vmatprep.subr.bf16.mxu0 0
    %4700 = vmatpush1.bf16.xpose.msra.mxu0 0
    %4701 = vmatprep.subr.bf16.mxu0 0
    %4702 = vmatpush1.bf16.xpose.msra.mxu0 0
    %4703 = vmatprep.subr.bf16.mxu0 0
    %4704 = vmatpush1.bf16.xpose.msra.mxu0 0
    %4705 = vmatprep.subr.bf16.mxu0 0
    %4706 = vmatpush1.bf16.xpose.msra.mxu0 0
    %4707 = vmatprep.subr.bf16.mxu0 0
    %4708 = vmatpush1.bf16.xpose.msra.mxu0 0
    %4709 = vmatprep.subr.bf16.mxu0 0
    %4710 = vmatpush1.bf16.xpose.msra.mxu0 0
    %4711 = vmatprep.subr.bf16.mxu0 0
    %4712 = vmatpush1.bf16.xpose.msra.mxu0 0
    %4713 = vmatprep.subr.bf16.mxu0 0
    %4714 = vmatpush1.bf16.xpose.msra.mxu0 0
    %4715 = vmatprep.subr.bf16.mxu0 0
    %4716 = vmatpush1.bf16.xpose.msra.mxu0 0
    %4717 = vmatprep.subr.bf16.mxu0 0
    %4718 = vmatpush1.bf16.xpose.msra.mxu0 0
    %4719 = vmatprep.subr.bf16.mxu0 0
    %4720 = vmatpush1.bf16.xpose.msra.mxu0 0
    %4721 = vmatprep.subr.bf16.mxu0 0
    %4722 = vmatpush1.bf16.xpose.msra.mxu0 0
    %4723 = vmatprep.subr.bf16.mxu0 0
    %4724 = vmatpush1.bf16.xpose.msra.mxu0 0
    %4725 = vmatprep.mubr.bf16.mxu0 0
    %4726 = vmatmul.mubr.bf16.gmra.mrb[0].mxu0 %v4688
    %v4727 = vpop.f32.mrb[0].mxu0
    %v4728 = vadd.f32 0.0, %v4727
    %v4729 = vpop.f32.mrb[0].mxu0
    %v4730 = vpop.f32.mrb[0].mxu0
    %v4731 = vadd.f32 0.0, %v4730
    %v4732 = vpop.f32.mrb[0].mxu0
    %4733 = vdwg.mxu0
    %v4735 = vsel %vm4075, %v2953, 0
    %v4738 = vsel %vm4075, %v3513, 0
    %4740 = vmatprep.subr.bf16.mxu0 0
    %4741 = vmatpush1.bf16.xpose.msra.mxu0 %v4738
    %4742 = vmatprep.subr.bf16.mxu0 0
    %4743 = vmatpush1.bf16.xpose.msra.mxu0 0
    %4744 = vmatprep.subr.bf16.mxu0 0
    %4745 = vmatpush1.bf16.xpose.msra.mxu0 0
    %4746 = vmatprep.subr.bf16.mxu0 0
    %4747 = vmatpush1.bf16.xpose.msra.mxu0 0
    %4748 = vmatprep.subr.bf16.mxu0 0
    %4749 = vmatpush1.bf16.xpose.msra.mxu0 0
    %4750 = vmatprep.subr.bf16.mxu0 0
    %4751 = vmatpush1.bf16.xpose.msra.mxu0 0
    %4752 = vmatprep.subr.bf16.mxu0 0
    %4753 = vmatpush1.bf16.xpose.msra.mxu0 0
    %4754 = vmatprep.subr.bf16.mxu0 0
    %4755 = vmatpush1.bf16.xpose.msra.mxu0 0
    %4756 = vmatprep.subr.bf16.mxu0 0
    %4757 = vmatpush1.bf16.xpose.msra.mxu0 0
    %4758 = vmatprep.subr.bf16.mxu0 0
    %4759 = vmatpush1.bf16.xpose.msra.mxu0 0
    %4760 = vmatprep.subr.bf16.mxu0 0
    %4761 = vmatpush1.bf16.xpose.msra.mxu0 0
    %4762 = vmatprep.subr.bf16.mxu0 0
    %4763 = vmatpush1.bf16.xpose.msra.mxu0 0
    %4764 = vmatprep.subr.bf16.mxu0 0
    %4765 = vmatpush1.bf16.xpose.msra.mxu0 0
    %4766 = vmatprep.subr.bf16.mxu0 0
    %4767 = vmatpush1.bf16.xpose.msra.mxu0 0
    %4768 = vmatprep.subr.bf16.mxu0 0
    %4769 = vmatpush1.bf16.xpose.msra.mxu0 0
    %4770 = vmatprep.subr.bf16.mxu0 0
    %4771 = vmatpush1.bf16.xpose.msra.mxu0 0
    %4772 = vmatprep.mubr.bf16.mxu0 0
    %4773 = vmatmul.mubr.bf16.gmra.mrb[0].mxu0 %v4735
    %v4774 = vpop.f32.mrb[0].mxu0
    %v4775 = vadd.f32 0.0, %v4774
    %v4776 = vpop.f32.mrb[0].mxu0
    %v4777 = vpop.f32.mrb[0].mxu0
    %v4778 = vadd.f32 0.0, %v4777
    %v4779 = vpop.f32.mrb[0].mxu0
    %4780 = vdwg.mxu0
    %v4782 = vsel %vm4075, %v2954, 0
    %v4785 = vsel %vm4075, %v3514, 0
    %4787 = vmatprep.subr.bf16.mxu0 0
    %4788 = vmatpush1.bf16.xpose.msra.mxu0 %v4785
    %4789 = vmatprep.subr.bf16.mxu0 0
    %4790 = vmatpush1.bf16.xpose.msra.mxu0 0
    %4791 = vmatprep.subr.bf16.mxu0 0
    %4792 = vmatpush1.bf16.xpose.msra.mxu0 0
    %4793 = vmatprep.subr.bf16.mxu0 0
    %4794 = vmatpush1.bf16.xpose.msra.mxu0 0
    %4795 = vmatprep.subr.bf16.mxu0 0
    %4796 = vmatpush1.bf16.xpose.msra.mxu0 0
    %4797 = vmatprep.subr.bf16.mxu0 0
    %4798 = vmatpush1.bf16.xpose.msra.mxu0 0
    %4799 = vmatprep.subr.bf16.mxu0 0
    %4800 = vmatpush1.bf16.xpose.msra.mxu0 0
    %4801 = vmatprep.subr.bf16.mxu0 0
    %4802 = vmatpush1.bf16.xpose.msra.mxu0 0
    %4803 = vmatprep.subr.bf16.mxu0 0
    %4804 = vmatpush1.bf16.xpose.msra.mxu0 0
    %4805 = vmatprep.subr.bf16.mxu0 0
    %4806 = vmatpush1.bf16.xpose.msra.mxu0 0
    %4807 = vmatprep.subr.bf16.mxu0 0
    %4808 = vmatpush1.bf16.xpose.msra.mxu0 0
    %4809 = vmatprep.subr.bf16.mxu0 0
    %4810 = vmatpush1.bf16.xpose.msra.mxu0 0
    %4811 = vmatprep.subr.bf16.mxu0 0
    %4812 = vmatpush1.bf16.xpose.msra.mxu0 0
    %4813 = vmatprep.subr.bf16.mxu0 0
    %4814 = vmatpush1.bf16.xpose.msra.mxu0 0
    %4815 = vmatprep.subr.bf16.mxu0 0
    %4816 = vmatpush1.bf16.xpose.msra.mxu0 0
    %4817 = vmatprep.subr.bf16.mxu0 0
    %4818 = vmatpush1.bf16.xpose.msra.mxu0 0
    %4819 = vmatprep.mubr.bf16.mxu0 0
    %4820 = vmatmul.mubr.bf16.gmra.mrb[0].mxu0 %v4782
    %v4821 = vpop.f32.mrb[0].mxu0
    %v4822 = vadd.f32 0.0, %v4821
    %v4823 = vpop.f32.mrb[0].mxu0
    %v4824 = vpop.f32.mrb[0].mxu0
    %v4825 = vadd.f32 0.0, %v4824
    %v4826 = vpop.f32.mrb[0].mxu0
    %4827 = vdwg.mxu0
    %vm4828 = vcmask 130048
    %v4829 = vsel %vm4828, %v4117, -inf
    %4830 = vmax.xlane.f32.xlu0 %v4829
    %v4831 = vpop.xlane.xlu0 %4830
    %v4832 = vsel %vm4828, %v4120, -inf
    %4833 = vmax.xlane.f32.xlu0 %v4832
    %v4834 = vpop.xlane.xlu0 %4833
    %v4835 = vsel %vm4828, %v4164, -inf
    %4836 = vmax.xlane.f32.xlu0 %v4835
    %v4837 = vpop.xlane.xlu0 %4836
    %v4838 = vsel %vm4828, %v4167, -inf
    %4839 = vmax.xlane.f32.xlu0 %v4838
    %v4840 = vpop.xlane.xlu0 %4839
    %v4841 = vsel %vm4828, %v4211, -inf
    %4842 = vmax.xlane.f32.xlu0 %v4841
    %v4843 = vpop.xlane.xlu0 %4842
    %v4844 = vsel %vm4828, %v4214, -inf
    %4845 = vmax.xlane.f32.xlu0 %v4844
    %v4846 = vpop.xlane.xlu0 %4845
    %v4847 = vsel %vm4828, %v4258, -inf
    %4848 = vmax.xlane.f32.xlu0 %v4847
    %v4849 = vpop.xlane.xlu0 %4848
    %v4850 = vsel %vm4828, %v4261, -inf
    %4851 = vmax.xlane.f32.xlu0 %v4850
    %v4852 = vpop.xlane.xlu0 %4851
    %v4853 = vsel %vm4828, %v4305, -inf
    %4854 = vmax.xlane.f32.xlu0 %v4853
    %v4855 = vpop.xlane.xlu0 %4854
    %v4856 = vsel %vm4828, %v4308, -inf
    %4857 = vmax.xlane.f32.xlu0 %v4856
    %v4858 = vpop.xlane.xlu0 %4857
    %v4859 = vsel %vm4828, %v4352, -inf
    %4860 = vmax.xlane.f32.xlu0 %v4859
    %v4861 = vpop.xlane.xlu0 %4860
    %v4862 = vsel %vm4828, %v4355, -inf
    %4863 = vmax.xlane.f32.xlu0 %v4862
    %v4864 = vpop.xlane.xlu0 %4863
    %v4865 = vsel %vm4828, %v4399, -inf
    %4866 = vmax.xlane.f32.xlu0 %v4865
    %v4867 = vpop.xlane.xlu0 %4866
    %v4868 = vsel %vm4828, %v4402, -inf
    %4869 = vmax.xlane.f32.xlu0 %v4868
    %v4870 = vpop.xlane.xlu0 %4869
    %v4871 = vsel %vm4828, %v4446, -inf
    %4872 = vmax.xlane.f32.xlu0 %v4871
    %v4873 = vpop.xlane.xlu0 %4872
    %v4874 = vsel %vm4828, %v4449, -inf
    %4875 = vmax.xlane.f32.xlu0 %v4874
    %v4876 = vpop.xlane.xlu0 %4875
    %v4877 = vsel %vm4828, %v4493, -inf
    %4878 = vmax.xlane.f32.xlu0 %v4877
    %v4879 = vpop.xlane.xlu0 %4878
    %v4880 = vsel %vm4828, %v4496, -inf
    %4881 = vmax.xlane.f32.xlu0 %v4880
    %v4882 = vpop.xlane.xlu0 %4881
    %v4883 = vsel %vm4828, %v4540, -inf
    %4884 = vmax.xlane.f32.xlu0 %v4883
    %v4885 = vpop.xlane.xlu0 %4884
    %v4886 = vsel %vm4828, %v4543, -inf
    %4887 = vmax.xlane.f32.xlu0 %v4886
    %v4888 = vpop.xlane.xlu0 %4887
    %v4889 = vsel %vm4828, %v4587, -inf
    %4890 = vmax.xlane.f32.xlu0 %v4889
    %v4891 = vpop.xlane.xlu0 %4890
    %v4892 = vsel %vm4828, %v4590, -inf
    %4893 = vmax.xlane.f32.xlu0 %v4892
    %v4894 = vpop.xlane.xlu0 %4893
    %v4895 = vsel %vm4828, %v4634, -inf
    %4896 = vmax.xlane.f32.xlu0 %v4895
    %v4897 = vpop.xlane.xlu0 %4896
    %v4898 = vsel %vm4828, %v4637, -inf
    %4899 = vmax.xlane.f32.xlu0 %v4898
    %v4900 = vpop.xlane.xlu0 %4899
    %v4901 = vsel %vm4828, %v4681, -inf
    %4902 = vmax.xlane.f32.xlu0 %v4901
    %v4903 = vpop.xlane.xlu0 %4902
    %v4904 = vsel %vm4828, %v4684, -inf
    %4905 = vmax.xlane.f32.xlu0 %v4904
    %v4906 = vpop.xlane.xlu0 %4905
    %v4907 = vsel %vm4828, %v4728, -inf
    %4908 = vmax.xlane.f32.xlu0 %v4907
    %v4909 = vpop.xlane.xlu0 %4908
    %v4910 = vsel %vm4828, %v4731, -inf
    %4911 = vmax.xlane.f32.xlu0 %v4910
    %v4912 = vpop.xlane.xlu0 %4911
    %v4913 = vsel %vm4828, %v4775, -inf
    %4914 = vmax.xlane.f32.xlu0 %v4913
    %v4915 = vpop.xlane.xlu0 %4914
    %v4916 = vsel %vm4828, %v4778, -inf
    %4917 = vmax.xlane.f32.xlu0 %v4916
    %v4918 = vpop.xlane.xlu0 %4917
    %v4919 = vsel %vm4828, %v4822, -inf
    %4920 = vmax.xlane.f32.xlu0 %v4919
    %v4921 = vpop.xlane.xlu0 %4920
    %v4922 = vsel %vm4828, %v4825, -inf
    %4923 = vmax.xlane.f32.xlu0 %v4922
    %v4924 = vpop.xlane.xlu0 %4923
    %v4925 = vsub.f32 %v4117, %v4831
    %v4926 = vsub.f32 %v4120, %v4834
    %v4927 = vsub.f32 %v4164, %v4837
    %v4928 = vsub.f32 %v4167, %v4840
    %v4929 = vsub.f32 %v4211, %v4843
    %v4930 = vsub.f32 %v4214, %v4846
    %v4931 = vsub.f32 %v4258, %v4849
    %v4932 = vsub.f32 %v4261, %v4852
    %v4933 = vsub.f32 %v4305, %v4855
    %v4934 = vsub.f32 %v4308, %v4858
    %v4935 = vsub.f32 %v4352, %v4861
    %v4936 = vsub.f32 %v4355, %v4864
    %v4937 = vsub.f32 %v4399, %v4867
    %v4938 = vsub.f32 %v4402, %v4870
    %v4939 = vsub.f32 %v4446, %v4873
    %v4940 = vsub.f32 %v4449, %v4876
    %v4941 = vsub.f32 %v4493, %v4879
    %v4942 = vsub.f32 %v4496, %v4882
    %v4943 = vsub.f32 %v4540, %v4885
    %v4944 = vsub.f32 %v4543, %v4888
    %v4945 = vsub.f32 %v4587, %v4891
    %v4946 = vsub.f32 %v4590, %v4894
    %v4947 = vsub.f32 %v4634, %v4897
    %v4948 = vsub.f32 %v4637, %v4900
    %v4949 = vsub.f32 %v4681, %v4903
    %v4950 = vsub.f32 %v4684, %v4906
    %v4951 = vsub.f32 %v4728, %v4909
    %v4952 = vsub.f32 %v4731, %v4912
    %v4953 = vsub.f32 %v4775, %v4915
    %v4954 = vsub.f32 %v4778, %v4918
    %v4955 = vsub.f32 %v4822, %v4921
    %v4956 = vsub.f32 %v4825, %v4924
    %v4957 = vmul.f32 %v4925, 1.442695
    %v4958 = vpow.pop %v4957
    %v4959 = vmul.f32 %v4926, 1.442695
    %v4960 = vpow.pop %v4959
    %v4961 = vmul.f32 %v4927, 1.442695
    %v4962 = vpow.pop %v4961
    %v4963 = vmul.f32 %v4928, 1.442695
    %v4964 = vpow.pop %v4963
    %v4965 = vmul.f32 %v4929, 1.442695
    %v4966 = vpow.pop %v4965
    %v4967 = vmul.f32 %v4930, 1.442695
    %v4968 = vpow.pop %v4967
    %v4969 = vmul.f32 %v4931, 1.442695
    %v4970 = vpow.pop %v4969
    %v4971 = vmul.f32 %v4932, 1.442695
    %v4972 = vpow.pop %v4971
    %v4973 = vmul.f32 %v4933, 1.442695
    %v4974 = vpow.pop %v4973
    %v4975 = vmul.f32 %v4934, 1.442695
    %v4976 = vpow.pop %v4975
    %v4977 = vmul.f32 %v4935, 1.442695
    %v4978 = vpow.pop %v4977
    %v4979 = vmul.f32 %v4936, 1.442695
    %v4980 = vpow.pop %v4979
    %v4981 = vmul.f32 %v4937, 1.442695
    %v4982 = vpow.pop %v4981
    %v4983 = vmul.f32 %v4938, 1.442695
    %v4984 = vpow.pop %v4983
    %v4985 = vmul.f32 %v4939, 1.442695
    %v4986 = vpow.pop %v4985
    %v4987 = vmul.f32 %v4940, 1.442695
    %v4988 = vpow.pop %v4987
    %v4989 = vmul.f32 %v4941, 1.442695
    %v4990 = vpow.pop %v4989
    %v4991 = vmul.f32 %v4942, 1.442695
    %v4992 = vpow.pop %v4991
    %v4993 = vmul.f32 %v4943, 1.442695
    %v4994 = vpow.pop %v4993
    %v4995 = vmul.f32 %v4944, 1.442695
    %v4996 = vpow.pop %v4995
    %v4997 = vmul.f32 %v4945, 1.442695
    %v4998 = vpow.pop %v4997
    %v4999 = vmul.f32 %v4946, 1.442695
    %v5000 = vpow.pop %v4999
    %v5001 = vmul.f32 %v4947, 1.442695
    %v5002 = vpow.pop %v5001
    %v5003 = vmul.f32 %v4948, 1.442695
    %v5004 = vpow.pop %v5003
    %v5005 = vmul.f32 %v4949, 1.442695
    %v5006 = vpow.pop %v5005
    %v5007 = vmul.f32 %v4950, 1.442695
    %v5008 = vpow.pop %v5007
    %v5009 = vmul.f32 %v4951, 1.442695
    %v5010 = vpow.pop %v5009
    %v5011 = vmul.f32 %v4952, 1.442695
    %v5012 = vpow.pop %v5011
    %v5013 = vmul.f32 %v4953, 1.442695
    %v5014 = vpow.pop %v5013
    %v5015 = vmul.f32 %v4954, 1.442695
    %v5016 = vpow.pop %v5015
    %v5017 = vmul.f32 %v4955, 1.442695
    %v5018 = vpow.pop %v5017
    %v5019 = vmul.f32 %v4956, 1.442695
    %v5020 = vpow.pop %v5019
    %v5021 = vsel %vm4828, %v4958, 0.0
    %5022 = vadd.xlane.f32.xlu0 %v5021
    %v5023 = vpop.xlane.xlu0 %5022
    %v5024 = vsel %vm4828, %v4960, 0.0
    %5025 = vadd.xlane.f32.xlu0 %v5024
    %v5026 = vpop.xlane.xlu0 %5025
    %v5027 = vsel %vm4828, %v4962, 0.0
    %5028 = vadd.xlane.f32.xlu0 %v5027
    %v5029 = vpop.xlane.xlu0 %5028
    %v5030 = vsel %vm4828, %v4964, 0.0
    %5031 = vadd.xlane.f32.xlu0 %v5030
    %v5032 = vpop.xlane.xlu0 %5031
    %v5033 = vsel %vm4828, %v4966, 0.0
    %5034 = vadd.xlane.f32.xlu0 %v5033
    %v5035 = vpop.xlane.xlu0 %5034
    %v5036 = vsel %vm4828, %v4968, 0.0
    %5037 = vadd.xlane.f32.xlu0 %v5036
    %v5038 = vpop.xlane.xlu0 %5037
    %v5039 = vsel %vm4828, %v4970, 0.0
    %5040 = vadd.xlane.f32.xlu0 %v5039
    %v5041 = vpop.xlane.xlu0 %5040
    %v5042 = vsel %vm4828, %v4972, 0.0
    %5043 = vadd.xlane.f32.xlu0 %v5042
    %v5044 = vpop.xlane.xlu0 %5043
    %v5045 = vsel %vm4828, %v4974, 0.0
    %5046 = vadd.xlane.f32.xlu0 %v5045
    %v5047 = vpop.xlane.xlu0 %5046
    %v5048 = vsel %vm4828, %v4976, 0.0
    %5049 = vadd.xlane.f32.xlu0 %v5048
    %v5050 = vpop.xlane.xlu0 %5049
    %v5051 = vsel %vm4828, %v4978, 0.0
    %5052 = vadd.xlane.f32.xlu0 %v5051
    %v5053 = vpop.xlane.xlu0 %5052
    %v5054 = vsel %vm4828, %v4980, 0.0
    %5055 = vadd.xlane.f32.xlu0 %v5054
    %v5056 = vpop.xlane.xlu0 %5055
    %v5057 = vsel %vm4828, %v4982, 0.0
    %5058 = vadd.xlane.f32.xlu0 %v5057
    %v5059 = vpop.xlane.xlu0 %5058
    %v5060 = vsel %vm4828, %v4984, 0.0
    %5061 = vadd.xlane.f32.xlu0 %v5060
    %v5062 = vpop.xlane.xlu0 %5061
    %v5063 = vsel %vm4828, %v4986, 0.0
    %5064 = vadd.xlane.f32.xlu0 %v5063
    %v5065 = vpop.xlane.xlu0 %5064
    %v5066 = vsel %vm4828, %v4988, 0.0
    %5067 = vadd.xlane.f32.xlu0 %v5066
    %v5068 = vpop.xlane.xlu0 %5067
    %v5069 = vsel %vm4828, %v4990, 0.0
    %5070 = vadd.xlane.f32.xlu0 %v5069
    %v5071 = vpop.xlane.xlu0 %5070
    %v5072 = vsel %vm4828, %v4992, 0.0
    %5073 = vadd.xlane.f32.xlu0 %v5072
    %v5074 = vpop.xlane.xlu0 %5073
    %v5075 = vsel %vm4828, %v4994, 0.0
    %5076 = vadd.xlane.f32.xlu0 %v5075
    %v5077 = vpop.xlane.xlu0 %5076
    %v5078 = vsel %vm4828, %v4996, 0.0
    %5079 = vadd.xlane.f32.xlu0 %v5078
    %v5080 = vpop.xlane.xlu0 %5079
    %v5081 = vsel %vm4828, %v4998, 0.0
    %5082 = vadd.xlane.f32.xlu0 %v5081
    %v5083 = vpop.xlane.xlu0 %5082
    %v5084 = vsel %vm4828, %v5000, 0.0
    %5085 = vadd.xlane.f32.xlu0 %v5084
    %v5086 = vpop.xlane.xlu0 %5085
    %v5087 = vsel %vm4828, %v5002, 0.0
    %5088 = vadd.xlane.f32.xlu0 %v5087
    %v5089 = vpop.xlane.xlu0 %5088
    %v5090 = vsel %vm4828, %v5004, 0.0
    %5091 = vadd.xlane.f32.xlu0 %v5090
    %v5092 = vpop.xlane.xlu0 %5091
    %v5093 = vsel %vm4828, %v5006, 0.0
    %5094 = vadd.xlane.f32.xlu0 %v5093
    %v5095 = vpop.xlane.xlu0 %5094
    %v5096 = vsel %vm4828, %v5008, 0.0
    %5097 = vadd.xlane.f32.xlu0 %v5096
    %v5098 = vpop.xlane.xlu0 %5097
    %v5099 = vsel %vm4828, %v5010, 0.0
    %5100 = vadd.xlane.f32.xlu0 %v5099
    %v5101 = vpop.xlane.xlu0 %5100
    %v5102 = vsel %vm4828, %v5012, 0.0
    %5103 = vadd.xlane.f32.xlu0 %v5102
    %v5104 = vpop.xlane.xlu0 %5103
    %v5105 = vsel %vm4828, %v5014, 0.0
    %5106 = vadd.xlane.f32.xlu0 %v5105
    %v5107 = vpop.xlane.xlu0 %5106
    %v5108 = vsel %vm4828, %v5016, 0.0
    %5109 = vadd.xlane.f32.xlu0 %v5108
    %v5110 = vpop.xlane.xlu0 %5109
    %v5111 = vsel %vm4828, %v5018, 0.0
    %5112 = vadd.xlane.f32.xlu0 %v5111
    %v5113 = vpop.xlane.xlu0 %5112
    %v5114 = vsel %vm4828, %v5020, 0.0
    %5115 = vadd.xlane.f32.xlu0 %v5114
    %v5116 = vpop.xlane.xlu0 %5115
    %v5117 = vrcp.pop %v5023
    %v5118 = vrcp.pop %v5026
    %v5119 = vrcp.pop %v5029
    %v5120 = vrcp.pop %v5032
    %v5121 = vrcp.pop %v5035
    %v5122 = vrcp.pop %v5038
    %v5123 = vrcp.pop %v5041
    %v5124 = vrcp.pop %v5044
    %v5125 = vrcp.pop %v5047
    %v5126 = vrcp.pop %v5050
    %v5127 = vrcp.pop %v5053
    %v5128 = vrcp.pop %v5056
    %v5129 = vrcp.pop %v5059
    %v5130 = vrcp.pop %v5062
    %v5131 = vrcp.pop %v5065
    %v5132 = vrcp.pop %v5068
    %v5133 = vrcp.pop %v5071
    %v5134 = vrcp.pop %v5074
    %v5135 = vrcp.pop %v5077
    %v5136 = vrcp.pop %v5080
    %v5137 = vrcp.pop %v5083
    %v5138 = vrcp.pop %v5086
    %v5139 = vrcp.pop %v5089
    %v5140 = vrcp.pop %v5092
    %v5141 = vrcp.pop %v5095
    %v5142 = vrcp.pop %v5098
    %v5143 = vrcp.pop %v5101
    %v5144 = vrcp.pop %v5104
    %v5145 = vrcp.pop %v5107
    %v5146 = vrcp.pop %v5110
    %v5147 = vrcp.pop %v5113
    %v5148 = vrcp.pop %v5116
    %v5149 = vmul.f32 %v4958, %v5117
    %v5150 = vmul.f32 %v4960, %v5118
    %v5151 = vmul.f32 %v4962, %v5119
    %v5152 = vmul.f32 %v4964, %v5120
    %v5153 = vmul.f32 %v4966, %v5121
    %v5154 = vmul.f32 %v4968, %v5122
    %v5155 = vmul.f32 %v4970, %v5123
    %v5156 = vmul.f32 %v4972, %v5124
    %v5157 = vmul.f32 %v4974, %v5125
    %v5158 = vmul.f32 %v4976, %v5126
    %v5159 = vmul.f32 %v4978, %v5127
    %v5160 = vmul.f32 %v4980, %v5128
    %v5161 = vmul.f32 %v4982, %v5129
    %v5162 = vmul.f32 %v4984, %v5130
    %v5163 = vmul.f32 %v4986, %v5131
    %v5164 = vmul.f32 %v4988, %v5132
    %v5165 = vmul.f32 %v4990, %v5133
    %v5166 = vmul.f32 %v4992, %v5134
    %v5167 = vmul.f32 %v4994, %v5135
    %v5168 = vmul.f32 %v4996, %v5136
    %v5169 = vmul.f32 %v4998, %v5137
    %v5170 = vmul.f32 %v5000, %v5138
    %v5171 = vmul.f32 %v5002, %v5139
    %v5172 = vmul.f32 %v5004, %v5140
    %v5173 = vmul.f32 %v5006, %v5141
    %v5174 = vmul.f32 %v5008, %v5142
    %v5175 = vmul.f32 %v5010, %v5143
    %v5176 = vmul.f32 %v5012, %v5144
    %v5177 = vmul.f32 %v5014, %v5145
    %v5178 = vmul.f32 %v5016, %v5146
    %v5179 = vmul.f32 %v5018, %v5147
    %v5180 = vmul.f32 %v5020, %v5148
    %v5181 = vpack.c.bf16 %v5150, %v5149
    %v5182 = vpack.c.bf16 %v5152, %v5151
    %v5183 = vpack.c.bf16 %v5154, %v5153
    %v5184 = vpack.c.bf16 %v5156, %v5155
    %v5185 = vpack.c.bf16 %v5158, %v5157
    %v5186 = vpack.c.bf16 %v5160, %v5159
    %v5187 = vpack.c.bf16 %v5162, %v5161
    %v5188 = vpack.c.bf16 %v5164, %v5163
    %v5189 = vpack.c.bf16 %v5166, %v5165
    %v5190 = vpack.c.bf16 %v5168, %v5167
    %v5191 = vpack.c.bf16 %v5170, %v5169
    %v5192 = vpack.c.bf16 %v5172, %v5171
    %v5193 = vpack.c.bf16 %v5174, %v5173
    %v5194 = vpack.c.bf16 %v5176, %v5175
    %v5195 = vpack.c.bf16 %v5178, %v5177
    %v5196 = vpack.c.bf16 %v5180, %v5179
    %v5198 = vsel %vm4828, %v5181, 0
    %5200 = vmatprep.subr.bf16.mxu0 0
    %5201 = vmatpush1.bf16.msra.mxu0 %v4059
    %5202 = vmatprep.subr.bf16.mxu0 0
    %5203 = vmatpush1.bf16.msra.mxu0 0
    %5204 = vmatprep.subr.bf16.mxu0 0
    %5205 = vmatpush1.bf16.msra.mxu0 0
    %5206 = vmatprep.subr.bf16.mxu0 0
    %5207 = vmatpush1.bf16.msra.mxu0 0
    %5208 = vmatprep.subr.bf16.mxu0 0
    %5209 = vmatpush1.bf16.msra.mxu0 0
    %5210 = vmatprep.subr.bf16.mxu0 0
    %5211 = vmatpush1.bf16.msra.mxu0 0
    %5212 = vmatprep.subr.bf16.mxu0 0
    %5213 = vmatpush1.bf16.msra.mxu0 0
    %5214 = vmatprep.subr.bf16.mxu0 0
    %5215 = vmatpush1.bf16.msra.mxu0 0
    %5216 = vmatprep.subr.bf16.mxu0 0
    %5217 = vmatpush1.bf16.msra.mxu0 0
    %5218 = vmatprep.subr.bf16.mxu0 0
    %5219 = vmatpush1.bf16.msra.mxu0 0
    %5220 = vmatprep.subr.bf16.mxu0 0
    %5221 = vmatpush1.bf16.msra.mxu0 0
    %5222 = vmatprep.subr.bf16.mxu0 0
    %5223 = vmatpush1.bf16.msra.mxu0 0
    %5224 = vmatprep.subr.bf16.mxu0 0
    %5225 = vmatpush1.bf16.msra.mxu0 0
    %5226 = vmatprep.subr.bf16.mxu0 0
    %5227 = vmatpush1.bf16.msra.mxu0 0
    %5228 = vmatprep.subr.bf16.mxu0 0
    %5229 = vmatpush1.bf16.msra.mxu0 0
    %5230 = vmatprep.subr.bf16.mxu0 0
    %5231 = vmatpush1.bf16.msra.mxu0 0
    %5232 = vmatprep.mubr.bf16.mxu0 0
    %5233 = vmatmul.mubr.bf16.gmra.mrb[0].mxu0 %v5198
    %v5234 = vpop.f32.mrb[0].mxu0
    %v5235 = vadd.f32 0.0, %v5234
    %v5236 = vpop.f32.mrb[0].mxu0
    %v5237 = vpop.f32.mrb[0].mxu0
    %v5238 = vadd.f32 0.0, %v5237
    %v5239 = vpop.f32.mrb[0].mxu0
    %5240 = vdwg.mxu0
    %v5242 = vsel %vm4828, %v5182, 0
    %5244 = vmatprep.subr.bf16.mxu0 0
    %5245 = vmatpush1.bf16.msra.mxu0 %v4060
    %5246 = vmatprep.subr.bf16.mxu0 0
    %5247 = vmatpush1.bf16.msra.mxu0 0
    %5248 = vmatprep.subr.bf16.mxu0 0
    %5249 = vmatpush1.bf16.msra.mxu0 0
    %5250 = vmatprep.subr.bf16.mxu0 0
    %5251 = vmatpush1.bf16.msra.mxu0 0
    %5252 = vmatprep.subr.bf16.mxu0 0
    %5253 = vmatpush1.bf16.msra.mxu0 0
    %5254 = vmatprep.subr.bf16.mxu0 0
    %5255 = vmatpush1.bf16.msra.mxu0 0
    %5256 = vmatprep.subr.bf16.mxu0 0
    %5257 = vmatpush1.bf16.msra.mxu0 0
    %5258 = vmatprep.subr.bf16.mxu0 0
    %5259 = vmatpush1.bf16.msra.mxu0 0
    %5260 = vmatprep.subr.bf16.mxu0 0
    %5261 = vmatpush1.bf16.msra.mxu0 0
    %5262 = vmatprep.subr.bf16.mxu0 0
    %5263 = vmatpush1.bf16.msra.mxu0 0
    %5264 = vmatprep.subr.bf16.mxu0 0
    %5265 = vmatpush1.bf16.msra.mxu0 0
    %5266 = vmatprep.subr.bf16.mxu0 0
    %5267 = vmatpush1.bf16.msra.mxu0 0
    %5268 = vmatprep.subr.bf16.mxu0 0
    %5269 = vmatpush1.bf16.msra.mxu0 0
    %5270 = vmatprep.subr.bf16.mxu0 0
    %5271 = vmatpush1.bf16.msra.mxu0 0
    %5272 = vmatprep.subr.bf16.mxu0 0
    %5273 = vmatpush1.bf16.msra.mxu0 0
    %5274 = vmatprep.subr.bf16.mxu0 0
    %5275 = vmatpush1.bf16.msra.mxu0 0
    %5276 = vmatprep.mubr.bf16.mxu0 0
    %5277 = vmatmul.mubr.bf16.gmra.mrb[0].mxu0 %v5242
    %v5278 = vpop.f32.mrb[0].mxu0
    %v5279 = vadd.f32 0.0, %v5278
    %v5280 = vpop.f32.mrb[0].mxu0
    %v5281 = vpop.f32.mrb[0].mxu0
    %v5282 = vadd.f32 0.0, %v5281
    %v5283 = vpop.f32.mrb[0].mxu0
    %5284 = vdwg.mxu0
    %v5286 = vsel %vm4828, %v5183, 0
    %5288 = vmatprep.subr.bf16.mxu0 0
    %5289 = vmatpush1.bf16.msra.mxu0 %v4061
    %5290 = vmatprep.subr.bf16.mxu0 0
    %5291 = vmatpush1.bf16.msra.mxu0 0
    %5292 = vmatprep.subr.bf16.mxu0 0
    %5293 = vmatpush1.bf16.msra.mxu0 0
    %5294 = vmatprep.subr.bf16.mxu0 0
    %5295 = vmatpush1.bf16.msra.mxu0 0
    %5296 = vmatprep.subr.bf16.mxu0 0
    %5297 = vmatpush1.bf16.msra.mxu0 0
    %5298 = vmatprep.subr.bf16.mxu0 0
    %5299 = vmatpush1.bf16.msra.mxu0 0
    %5300 = vmatprep.subr.bf16.mxu0 0
    %5301 = vmatpush1.bf16.msra.mxu0 0
    %5302 = vmatprep.subr.bf16.mxu0 0
    %5303 = vmatpush1.bf16.msra.mxu0 0
    %5304 = vmatprep.subr.bf16.mxu0 0
    %5305 = vmatpush1.bf16.msra.mxu0 0
    %5306 = vmatprep.subr.bf16.mxu0 0
    %5307 = vmatpush1.bf16.msra.mxu0 0
    %5308 = vmatprep.subr.bf16.mxu0 0
    %5309 = vmatpush1.bf16.msra.mxu0 0
    %5310 = vmatprep.subr.bf16.mxu0 0
    %5311 = vmatpush1.bf16.msra.mxu0 0
    %5312 = vmatprep.subr.bf16.mxu0 0
    %5313 = vmatpush1.bf16.msra.mxu0 0
    %5314 = vmatprep.subr.bf16.mxu0 0
    %5315 = vmatpush1.bf16.msra.mxu0 0
    %5316 = vmatprep.subr.bf16.mxu0 0
    %5317 = vmatpush1.bf16.msra.mxu0 0
    %5318 = vmatprep.subr.bf16.mxu0 0
    %5319 = vmatpush1.bf16.msra.mxu0 0
    %5320 = vmatprep.mubr.bf16.mxu0 0
    %5321 = vmatmul.mubr.bf16.gmra.mrb[0].mxu0 %v5286
    %v5322 = vpop.f32.mrb[0].mxu0
    %v5323 = vadd.f32 0.0, %v5322
    %v5324 = vpop.f32.mrb[0].mxu0
    %v5325 = vpop.f32.mrb[0].mxu0
    %v5326 = vadd.f32 0.0, %v5325
    %v5327 = vpop.f32.mrb[0].mxu0
    %5328 = vdwg.mxu0
    %v5330 = vsel %vm4828, %v5184, 0
    %5332 = vmatprep.subr.bf16.mxu0 0
    %5333 = vmatpush1.bf16.msra.mxu0 %v4062
    %5334 = vmatprep.subr.bf16.mxu0 0
    %5335 = vmatpush1.bf16.msra.mxu0 0
    %5336 = vmatprep.subr.bf16.mxu0 0
    %5337 = vmatpush1.bf16.msra.mxu0 0
    %5338 = vmatprep.subr.bf16.mxu0 0
    %5339 = vmatpush1.bf16.msra.mxu0 0
    %5340 = vmatprep.subr.bf16.mxu0 0
    %5341 = vmatpush1.bf16.msra.mxu0 0
    %5342 = vmatprep.subr.bf16.mxu0 0
    %5343 = vmatpush1.bf16.msra.mxu0 0
    %5344 = vmatprep.subr.bf16.mxu0 0
    %5345 = vmatpush1.bf16.msra.mxu0 0
    %5346 = vmatprep.subr.bf16.mxu0 0
    %5347 = vmatpush1.bf16.msra.mxu0 0
    %5348 = vmatprep.subr.bf16.mxu0 0
    %5349 = vmatpush1.bf16.msra.mxu0 0
    %5350 = vmatprep.subr.bf16.mxu0 0
    %5351 = vmatpush1.bf16.msra.mxu0 0
    %5352 = vmatprep.subr.bf16.mxu0 0
    %5353 = vmatpush1.bf16.msra.mxu0 0
    %5354 = vmatprep.subr.bf16.mxu0 0
    %5355 = vmatpush1.bf16.msra.mxu0 0
    %5356 = vmatprep.subr.bf16.mxu0 0
    %5357 = vmatpush1.bf16.msra.mxu0 0
    %5358 = vmatprep.subr.bf16.mxu0 0
    %5359 = vmatpush1.bf16.msra.mxu0 0
    %5360 = vmatprep.subr.bf16.mxu0 0
    %5361 = vmatpush1.bf16.msra.mxu0 0
    %5362 = vmatprep.subr.bf16.mxu0 0
    %5363 = vmatpush1.bf16.msra.mxu0 0
    %5364 = vmatprep.mubr.bf16.mxu0 0
    %5365 = vmatmul.mubr.bf16.gmra.mrb[0].mxu0 %v5330
    %v5366 = vpop.f32.mrb[0].mxu0
    %v5367 = vadd.f32 0.0, %v5366
    %v5368 = vpop.f32.mrb[0].mxu0
    %v5369 = vpop.f32.mrb[0].mxu0
    %v5370 = vadd.f32 0.0, %v5369
    %v5371 = vpop.f32.mrb[0].mxu0
    %5372 = vdwg.mxu0
    %v5374 = vsel %vm4828, %v5185, 0
    %5376 = vmatprep.subr.bf16.mxu0 0
    %5377 = vmatpush1.bf16.msra.mxu0 %v4063
    %5378 = vmatprep.subr.bf16.mxu0 0
    %5379 = vmatpush1.bf16.msra.mxu0 0
    %5380 = vmatprep.subr.bf16.mxu0 0
    %5381 = vmatpush1.bf16.msra.mxu0 0
    %5382 = vmatprep.subr.bf16.mxu0 0
    %5383 = vmatpush1.bf16.msra.mxu0 0
    %5384 = vmatprep.subr.bf16.mxu0 0
    %5385 = vmatpush1.bf16.msra.mxu0 0
    %5386 = vmatprep.subr.bf16.mxu0 0
    %5387 = vmatpush1.bf16.msra.mxu0 0
    %5388 = vmatprep.subr.bf16.mxu0 0
    %5389 = vmatpush1.bf16.msra.mxu0 0
    %5390 = vmatprep.subr.bf16.mxu0 0
    %5391 = vmatpush1.bf16.msra.mxu0 0
    %5392 = vmatprep.subr.bf16.mxu0 0
    %5393 = vmatpush1.bf16.msra.mxu0 0
    %5394 = vmatprep.subr.bf16.mxu0 0
    %5395 = vmatpush1.bf16.msra.mxu0 0
    %5396 = vmatprep.subr.bf16.mxu0 0
    %5397 = vmatpush1.bf16.msra.mxu0 0
    %5398 = vmatprep.subr.bf16.mxu0 0
    %5399 = vmatpush1.bf16.msra.mxu0 0
    %5400 = vmatprep.subr.bf16.mxu0 0
    %5401 = vmatpush1.bf16.msra.mxu0 0
    %5402 = vmatprep.subr.bf16.mxu0 0
    %5403 = vmatpush1.bf16.msra.mxu0 0
    %5404 = vmatprep.subr.bf16.mxu0 0
    %5405 = vmatpush1.bf16.msra.mxu0 0
    %5406 = vmatprep.subr.bf16.mxu0 0
    %5407 = vmatpush1.bf16.msra.mxu0 0
    %5408 = vmatprep.mubr.bf16.mxu0 0
    %5409 = vmatmul.mubr.bf16.gmra.mrb[0].mxu0 %v5374
    %v5410 = vpop.f32.mrb[0].mxu0
    %v5411 = vadd.f32 0.0, %v5410
    %v5412 = vpop.f32.mrb[0].mxu0
    %v5413 = vpop.f32.mrb[0].mxu0
    %v5414 = vadd.f32 0.0, %v5413
    %v5415 = vpop.f32.mrb[0].mxu0
    %5416 = vdwg.mxu0
    %v5418 = vsel %vm4828, %v5186, 0
    %5420 = vmatprep.subr.bf16.mxu0 0
    %5421 = vmatpush1.bf16.msra.mxu0 %v4064
    %5422 = vmatprep.subr.bf16.mxu0 0
    %5423 = vmatpush1.bf16.msra.mxu0 0
    %5424 = vmatprep.subr.bf16.mxu0 0
    %5425 = vmatpush1.bf16.msra.mxu0 0
    %5426 = vmatprep.subr.bf16.mxu0 0
    %5427 = vmatpush1.bf16.msra.mxu0 0
    %5428 = vmatprep.subr.bf16.mxu0 0
    %5429 = vmatpush1.bf16.msra.mxu0 0
    %5430 = vmatprep.subr.bf16.mxu0 0
    %5431 = vmatpush1.bf16.msra.mxu0 0
    %5432 = vmatprep.subr.bf16.mxu0 0
    %5433 = vmatpush1.bf16.msra.mxu0 0
    %5434 = vmatprep.subr.bf16.mxu0 0
    %5435 = vmatpush1.bf16.msra.mxu0 0
    %5436 = vmatprep.subr.bf16.mxu0 0
    %5437 = vmatpush1.bf16.msra.mxu0 0
    %5438 = vmatprep.subr.bf16.mxu0 0
    %5439 = vmatpush1.bf16.msra.mxu0 0
    %5440 = vmatprep.subr.bf16.mxu0 0
    %5441 = vmatpush1.bf16.msra.mxu0 0
    %5442 = vmatprep.subr.bf16.mxu0 0
    %5443 = vmatpush1.bf16.msra.mxu0 0
    %5444 = vmatprep.subr.bf16.mxu0 0
    %5445 = vmatpush1.bf16.msra.mxu0 0
    %5446 = vmatprep.subr.bf16.mxu0 0
    %5447 = vmatpush1.bf16.msra.mxu0 0
    %5448 = vmatprep.subr.bf16.mxu0 0
    %5449 = vmatpush1.bf16.msra.mxu0 0
    %5450 = vmatprep.subr.bf16.mxu0 0
    %5451 = vmatpush1.bf16.msra.mxu0 0
    %5452 = vmatprep.mubr.bf16.mxu0 0
    %5453 = vmatmul.mubr.bf16.gmra.mrb[0].mxu0 %v5418
    %v5454 = vpop.f32.mrb[0].mxu0
    %v5455 = vadd.f32 0.0, %v5454
    %v5456 = vpop.f32.mrb[0].mxu0
    %v5457 = vpop.f32.mrb[0].mxu0
    %v5458 = vadd.f32 0.0, %v5457
    %v5459 = vpop.f32.mrb[0].mxu0
    %5460 = vdwg.mxu0
    %v5462 = vsel %vm4828, %v5187, 0
    %5464 = vmatprep.subr.bf16.mxu0 0
    %5465 = vmatpush1.bf16.msra.mxu0 %v4065
    %5466 = vmatprep.subr.bf16.mxu0 0
    %5467 = vmatpush1.bf16.msra.mxu0 0
    %5468 = vmatprep.subr.bf16.mxu0 0
    %5469 = vmatpush1.bf16.msra.mxu0 0
    %5470 = vmatprep.subr.bf16.mxu0 0
    %5471 = vmatpush1.bf16.msra.mxu0 0
    %5472 = vmatprep.subr.bf16.mxu0 0
    %5473 = vmatpush1.bf16.msra.mxu0 0
    %5474 = vmatprep.subr.bf16.mxu0 0
    %5475 = vmatpush1.bf16.msra.mxu0 0
    %5476 = vmatprep.subr.bf16.mxu0 0
    %5477 = vmatpush1.bf16.msra.mxu0 0
    %5478 = vmatprep.subr.bf16.mxu0 0
    %5479 = vmatpush1.bf16.msra.mxu0 0
    %5480 = vmatprep.subr.bf16.mxu0 0
    %5481 = vmatpush1.bf16.msra.mxu0 0
    %5482 = vmatprep.subr.bf16.mxu0 0
    %5483 = vmatpush1.bf16.msra.mxu0 0
    %5484 = vmatprep.subr.bf16.mxu0 0
    %5485 = vmatpush1.bf16.msra.mxu0 0
    %5486 = vmatprep.subr.bf16.mxu0 0
    %5487 = vmatpush1.bf16.msra.mxu0 0
    %5488 = vmatprep.subr.bf16.mxu0 0
    %5489 = vmatpush1.bf16.msra.mxu0 0
    %5490 = vmatprep.subr.bf16.mxu0 0
    %5491 = vmatpush1.bf16.msra.mxu0 0
    %5492 = vmatprep.subr.bf16.mxu0 0
    %5493 = vmatpush1.bf16.msra.mxu0 0
    %5494 = vmatprep.subr.bf16.mxu0 0
    %5495 = vmatpush1.bf16.msra.mxu0 0
    %5496 = vmatprep.mubr.bf16.mxu0 0
    %5497 = vmatmul.mubr.bf16.gmra.mrb[0].mxu0 %v5462
    %v5498 = vpop.f32.mrb[0].mxu0
    %v5499 = vadd.f32 0.0, %v5498
    %v5500 = vpop.f32.mrb[0].mxu0
    %v5501 = vpop.f32.mrb[0].mxu0
    %v5502 = vadd.f32 0.0, %v5501
    %v5503 = vpop.f32.mrb[0].mxu0
    %5504 = vdwg.mxu0
    %v5506 = vsel %vm4828, %v5188, 0
    %5508 = vmatprep.subr.bf16.mxu0 0
    %5509 = vmatpush1.bf16.msra.mxu0 %v4066
    %5510 = vmatprep.subr.bf16.mxu0 0
    %5511 = vmatpush1.bf16.msra.mxu0 0
    %5512 = vmatprep.subr.bf16.mxu0 0
    %5513 = vmatpush1.bf16.msra.mxu0 0
    %5514 = vmatprep.subr.bf16.mxu0 0
    %5515 = vmatpush1.bf16.msra.mxu0 0
    %5516 = vmatprep.subr.bf16.mxu0 0
    %5517 = vmatpush1.bf16.msra.mxu0 0
    %5518 = vmatprep.subr.bf16.mxu0 0
    %5519 = vmatpush1.bf16.msra.mxu0 0
    %5520 = vmatprep.subr.bf16.mxu0 0
    %5521 = vmatpush1.bf16.msra.mxu0 0
    %5522 = vmatprep.subr.bf16.mxu0 0
    %5523 = vmatpush1.bf16.msra.mxu0 0
    %5524 = vmatprep.subr.bf16.mxu0 0
    %5525 = vmatpush1.bf16.msra.mxu0 0
    %5526 = vmatprep.subr.bf16.mxu0 0
    %5527 = vmatpush1.bf16.msra.mxu0 0
    %5528 = vmatprep.subr.bf16.mxu0 0
    %5529 = vmatpush1.bf16.msra.mxu0 0
    %5530 = vmatprep.subr.bf16.mxu0 0
    %5531 = vmatpush1.bf16.msra.mxu0 0
    %5532 = vmatprep.subr.bf16.mxu0 0
    %5533 = vmatpush1.bf16.msra.mxu0 0
    %5534 = vmatprep.subr.bf16.mxu0 0
    %5535 = vmatpush1.bf16.msra.mxu0 0
    %5536 = vmatprep.subr.bf16.mxu0 0
    %5537 = vmatpush1.bf16.msra.mxu0 0
    %5538 = vmatprep.subr.bf16.mxu0 0
    %5539 = vmatpush1.bf16.msra.mxu0 0
    %5540 = vmatprep.mubr.bf16.mxu0 0
    %5541 = vmatmul.mubr.bf16.gmra.mrb[0].mxu0 %v5506
    %v5542 = vpop.f32.mrb[0].mxu0
    %v5543 = vadd.f32 0.0, %v5542
    %v5544 = vpop.f32.mrb[0].mxu0
    %v5545 = vpop.f32.mrb[0].mxu0
    %v5546 = vadd.f32 0.0, %v5545
    %v5547 = vpop.f32.mrb[0].mxu0
    %5548 = vdwg.mxu0
    %v5550 = vsel %vm4828, %v5189, 0
    %5552 = vmatprep.subr.bf16.mxu0 0
    %5553 = vmatpush1.bf16.msra.mxu0 %v4067
    %5554 = vmatprep.subr.bf16.mxu0 0
    %5555 = vmatpush1.bf16.msra.mxu0 0
    %5556 = vmatprep.subr.bf16.mxu0 0
    %5557 = vmatpush1.bf16.msra.mxu0 0
    %5558 = vmatprep.subr.bf16.mxu0 0
    %5559 = vmatpush1.bf16.msra.mxu0 0
    %5560 = vmatprep.subr.bf16.mxu0 0
    %5561 = vmatpush1.bf16.msra.mxu0 0
    %5562 = vmatprep.subr.bf16.mxu0 0
    %5563 = vmatpush1.bf16.msra.mxu0 0
    %5564 = vmatprep.subr.bf16.mxu0 0
    %5565 = vmatpush1.bf16.msra.mxu0 0
    %5566 = vmatprep.subr.bf16.mxu0 0
    %5567 = vmatpush1.bf16.msra.mxu0 0
    %5568 = vmatprep.subr.bf16.mxu0 0
    %5569 = vmatpush1.bf16.msra.mxu0 0
    %5570 = vmatprep.subr.bf16.mxu0 0
    %5571 = vmatpush1.bf16.msra.mxu0 0
    %5572 = vmatprep.subr.bf16.mxu0 0
    %5573 = vmatpush1.bf16.msra.mxu0 0
    %5574 = vmatprep.subr.bf16.mxu0 0
    %5575 = vmatpush1.bf16.msra.mxu0 0
    %5576 = vmatprep.subr.bf16.mxu0 0
    %5577 = vmatpush1.bf16.msra.mxu0 0
    %5578 = vmatprep.subr.bf16.mxu0 0
    %5579 = vmatpush1.bf16.msra.mxu0 0
    %5580 = vmatprep.subr.bf16.mxu0 0
    %5581 = vmatpush1.bf16.msra.mxu0 0
    %5582 = vmatprep.subr.bf16.mxu0 0
    %5583 = vmatpush1.bf16.msra.mxu0 0
    %5584 = vmatprep.mubr.bf16.mxu0 0
    %5585 = vmatmul.mubr.bf16.gmra.mrb[0].mxu0 %v5550
    %v5586 = vpop.f32.mrb[0].mxu0
    %v5587 = vadd.f32 0.0, %v5586
    %v5588 = vpop.f32.mrb[0].mxu0
    %v5589 = vpop.f32.mrb[0].mxu0
    %v5590 = vadd.f32 0.0, %v5589
    %v5591 = vpop.f32.mrb[0].mxu0
    %5592 = vdwg.mxu0
    %v5594 = vsel %vm4828, %v5190, 0
    %5596 = vmatprep.subr.bf16.mxu0 0
    %5597 = vmatpush1.bf16.msra.mxu0 %v4068
    %5598 = vmatprep.subr.bf16.mxu0 0
    %5599 = vmatpush1.bf16.msra.mxu0 0
    %5600 = vmatprep.subr.bf16.mxu0 0
    %5601 = vmatpush1.bf16.msra.mxu0 0
    %5602 = vmatprep.subr.bf16.mxu0 0
    %5603 = vmatpush1.bf16.msra.mxu0 0
    %5604 = vmatprep.subr.bf16.mxu0 0
    %5605 = vmatpush1.bf16.msra.mxu0 0
    %5606 = vmatprep.subr.bf16.mxu0 0
    %5607 = vmatpush1.bf16.msra.mxu0 0
    %5608 = vmatprep.subr.bf16.mxu0 0
    %5609 = vmatpush1.bf16.msra.mxu0 0
    %5610 = vmatprep.subr.bf16.mxu0 0
    %5611 = vmatpush1.bf16.msra.mxu0 0
    %5612 = vmatprep.subr.bf16.mxu0 0
    %5613 = vmatpush1.bf16.msra.mxu0 0
    %5614 = vmatprep.subr.bf16.mxu0 0
    %5615 = vmatpush1.bf16.msra.mxu0 0
    %5616 = vmatprep.subr.bf16.mxu0 0
    %5617 = vmatpush1.bf16.msra.mxu0 0
    %5618 = vmatprep.subr.bf16.mxu0 0
    %5619 = vmatpush1.bf16.msra.mxu0 0
    %5620 = vmatprep.subr.bf16.mxu0 0
    %5621 = vmatpush1.bf16.msra.mxu0 0
    %5622 = vmatprep.subr.bf16.mxu0 0
    %5623 = vmatpush1.bf16.msra.mxu0 0
    %5624 = vmatprep.subr.bf16.mxu0 0
    %5625 = vmatpush1.bf16.msra.mxu0 0
    %5626 = vmatprep.subr.bf16.mxu0 0
    %5627 = vmatpush1.bf16.msra.mxu0 0
    %5628 = vmatprep.mubr.bf16.mxu0 0
    %5629 = vmatmul.mubr.bf16.gmra.mrb[0].mxu0 %v5594
    %v5630 = vpop.f32.mrb[0].mxu0
    %v5631 = vadd.f32 0.0, %v5630
    %v5632 = vpop.f32.mrb[0].mxu0
    %v5633 = vpop.f32.mrb[0].mxu0
    %v5634 = vadd.f32 0.0, %v5633
    %v5635 = vpop.f32.mrb[0].mxu0
    %5636 = vdwg.mxu0
    %v5638 = vsel %vm4828, %v5191, 0
    %5640 = vmatprep.subr.bf16.mxu0 0
    %5641 = vmatpush1.bf16.msra.mxu0 %v4069
    %5642 = vmatprep.subr.bf16.mxu0 0
    %5643 = vmatpush1.bf16.msra.mxu0 0
    %5644 = vmatprep.subr.bf16.mxu0 0
    %5645 = vmatpush1.bf16.msra.mxu0 0
    %5646 = vmatprep.subr.bf16.mxu0 0
    %5647 = vmatpush1.bf16.msra.mxu0 0
    %5648 = vmatprep.subr.bf16.mxu0 0
    %5649 = vmatpush1.bf16.msra.mxu0 0
    %5650 = vmatprep.subr.bf16.mxu0 0
    %5651 = vmatpush1.bf16.msra.mxu0 0
    %5652 = vmatprep.subr.bf16.mxu0 0
    %5653 = vmatpush1.bf16.msra.mxu0 0
    %5654 = vmatprep.subr.bf16.mxu0 0
    %5655 = vmatpush1.bf16.msra.mxu0 0
    %5656 = vmatprep.subr.bf16.mxu0 0
    %5657 = vmatpush1.bf16.msra.mxu0 0
    %5658 = vmatprep.subr.bf16.mxu0 0
    %5659 = vmatpush1.bf16.msra.mxu0 0
    %5660 = vmatprep.subr.bf16.mxu0 0
    %5661 = vmatpush1.bf16.msra.mxu0 0
    %5662 = vmatprep.subr.bf16.mxu0 0
    %5663 = vmatpush1.bf16.msra.mxu0 0
    %5664 = vmatprep.subr.bf16.mxu0 0
    %5665 = vmatpush1.bf16.msra.mxu0 0
    %5666 = vmatprep.subr.bf16.mxu0 0
    %5667 = vmatpush1.bf16.msra.mxu0 0
    %5668 = vmatprep.subr.bf16.mxu0 0
    %5669 = vmatpush1.bf16.msra.mxu0 0
    %5670 = vmatprep.subr.bf16.mxu0 0
    %5671 = vmatpush1.bf16.msra.mxu0 0
    %5672 = vmatprep.mubr.bf16.mxu0 0
    %5673 = vmatmul.mubr.bf16.gmra.mrb[0].mxu0 %v5638
    %v5674 = vpop.f32.mrb[0].mxu0
    %v5675 = vadd.f32 0.0, %v5674
    %v5676 = vpop.f32.mrb[0].mxu0
    %v5677 = vpop.f32.mrb[0].mxu0
    %v5678 = vadd.f32 0.0, %v5677
    %v5679 = vpop.f32.mrb[0].mxu0
    %5680 = vdwg.mxu0
    %v5682 = vsel %vm4828, %v5192, 0
    %5684 = vmatprep.subr.bf16.mxu0 0
    %5685 = vmatpush1.bf16.msra.mxu0 %v4070
    %5686 = vmatprep.subr.bf16.mxu0 0
    %5687 = vmatpush1.bf16.msra.mxu0 0
    %5688 = vmatprep.subr.bf16.mxu0 0
    %5689 = vmatpush1.bf16.msra.mxu0 0
    %5690 = vmatprep.subr.bf16.mxu0 0
    %5691 = vmatpush1.bf16.msra.mxu0 0
    %5692 = vmatprep.subr.bf16.mxu0 0
    %5693 = vmatpush1.bf16.msra.mxu0 0
    %5694 = vmatprep.subr.bf16.mxu0 0
    %5695 = vmatpush1.bf16.msra.mxu0 0
    %5696 = vmatprep.subr.bf16.mxu0 0
    %5697 = vmatpush1.bf16.msra.mxu0 0
    %5698 = vmatprep.subr.bf16.mxu0 0
    %5699 = vmatpush1.bf16.msra.mxu0 0
    %5700 = vmatprep.subr.bf16.mxu0 0
    %5701 = vmatpush1.bf16.msra.mxu0 0
    %5702 = vmatprep.subr.bf16.mxu0 0
    %5703 = vmatpush1.bf16.msra.mxu0 0
    %5704 = vmatprep.subr.bf16.mxu0 0
    %5705 = vmatpush1.bf16.msra.mxu0 0
    %5706 = vmatprep.subr.bf16.mxu0 0
    %5707 = vmatpush1.bf16.msra.mxu0 0
    %5708 = vmatprep.subr.bf16.mxu0 0
    %5709 = vmatpush1.bf16.msra.mxu0 0
    %5710 = vmatprep.subr.bf16.mxu0 0
    %5711 = vmatpush1.bf16.msra.mxu0 0
    %5712 = vmatprep.subr.bf16.mxu0 0
    %5713 = vmatpush1.bf16.msra.mxu0 0
    %5714 = vmatprep.subr.bf16.mxu0 0
    %5715 = vmatpush1.bf16.msra.mxu0 0
    %5716 = vmatprep.mubr.bf16.mxu0 0
    %5717 = vmatmul.mubr.bf16.gmra.mrb[0].mxu0 %v5682
    %v5718 = vpop.f32.mrb[0].mxu0
    %v5719 = vadd.f32 0.0, %v5718
    %v5720 = vpop.f32.mrb[0].mxu0
    %v5721 = vpop.f32.mrb[0].mxu0
    %v5722 = vadd.f32 0.0, %v5721
    %v5723 = vpop.f32.mrb[0].mxu0
    %5724 = vdwg.mxu0
    %v5726 = vsel %vm4828, %v5193, 0
    %5728 = vmatprep.subr.bf16.mxu0 0
    %5729 = vmatpush1.bf16.msra.mxu0 %v4071
    %5730 = vmatprep.subr.bf16.mxu0 0
    %5731 = vmatpush1.bf16.msra.mxu0 0
    %5732 = vmatprep.subr.bf16.mxu0 0
    %5733 = vmatpush1.bf16.msra.mxu0 0
    %5734 = vmatprep.subr.bf16.mxu0 0
    %5735 = vmatpush1.bf16.msra.mxu0 0
    %5736 = vmatprep.subr.bf16.mxu0 0
    %5737 = vmatpush1.bf16.msra.mxu0 0
    %5738 = vmatprep.subr.bf16.mxu0 0
    %5739 = vmatpush1.bf16.msra.mxu0 0
    %5740 = vmatprep.subr.bf16.mxu0 0
    %5741 = vmatpush1.bf16.msra.mxu0 0
    %5742 = vmatprep.subr.bf16.mxu0 0
    %5743 = vmatpush1.bf16.msra.mxu0 0
    %5744 = vmatprep.subr.bf16.mxu0 0
    %5745 = vmatpush1.bf16.msra.mxu0 0
    %5746 = vmatprep.subr.bf16.mxu0 0
    %5747 = vmatpush1.bf16.msra.mxu0 0
    %5748 = vmatprep.subr.bf16.mxu0 0
    %5749 = vmatpush1.bf16.msra.mxu0 0
    %5750 = vmatprep.subr.bf16.mxu0 0
    %5751 = vmatpush1.bf16.msra.mxu0 0
    %5752 = vmatprep.subr.bf16.mxu0 0
    %5753 = vmatpush1.bf16.msra.mxu0 0
    %5754 = vmatprep.subr.bf16.mxu0 0
    %5755 = vmatpush1.bf16.msra.mxu0 0
    %5756 = vmatprep.subr.bf16.mxu0 0
    %5757 = vmatpush1.bf16.msra.mxu0 0
    %5758 = vmatprep.subr.bf16.mxu0 0
    %5759 = vmatpush1.bf16.msra.mxu0 0
    %5760 = vmatprep.mubr.bf16.mxu0 0
    %5761 = vmatmul.mubr.bf16.gmra.mrb[0].mxu0 %v5726
    %v5762 = vpop.f32.mrb[0].mxu0
    %v5763 = vadd.f32 0.0, %v5762
    %v5764 = vpop.f32.mrb[0].mxu0
    %v5765 = vpop.f32.mrb[0].mxu0
    %v5766 = vadd.f32 0.0, %v5765
    %v5767 = vpop.f32.mrb[0].mxu0
    %5768 = vdwg.mxu0
    %v5770 = vsel %vm4828, %v5194, 0
    %5772 = vmatprep.subr.bf16.mxu0 0
    %5773 = vmatpush1.bf16.msra.mxu0 %v4072
    %5774 = vmatprep.subr.bf16.mxu0 0
    %5775 = vmatpush1.bf16.msra.mxu0 0
    %5776 = vmatprep.subr.bf16.mxu0 0
    %5777 = vmatpush1.bf16.msra.mxu0 0
    %5778 = vmatprep.subr.bf16.mxu0 0
    %5779 = vmatpush1.bf16.msra.mxu0 0
    %5780 = vmatprep.subr.bf16.mxu0 0
    %5781 = vmatpush1.bf16.msra.mxu0 0
    %5782 = vmatprep.subr.bf16.mxu0 0
    %5783 = vmatpush1.bf16.msra.mxu0 0
    %5784 = vmatprep.subr.bf16.mxu0 0
    %5785 = vmatpush1.bf16.msra.mxu0 0
    %5786 = vmatprep.subr.bf16.mxu0 0
    %5787 = vmatpush1.bf16.msra.mxu0 0
    %5788 = vmatprep.subr.bf16.mxu0 0
    %5789 = vmatpush1.bf16.msra.mxu0 0
    %5790 = vmatprep.subr.bf16.mxu0 0
    %5791 = vmatpush1.bf16.msra.mxu0 0
    %5792 = vmatprep.subr.bf16.mxu0 0
    %5793 = vmatpush1.bf16.msra.mxu0 0
    %5794 = vmatprep.subr.bf16.mxu0 0
    %5795 = vmatpush1.bf16.msra.mxu0 0
    %5796 = vmatprep.subr.bf16.mxu0 0
    %5797 = vmatpush1.bf16.msra.mxu0 0
    %5798 = vmatprep.subr.bf16.mxu0 0
    %5799 = vmatpush1.bf16.msra.mxu0 0
    %5800 = vmatprep.subr.bf16.mxu0 0
    %5801 = vmatpush1.bf16.msra.mxu0 0
    %5802 = vmatprep.subr.bf16.mxu0 0
    %5803 = vmatpush1.bf16.msra.mxu0 0
    %5804 = vmatprep.mubr.bf16.mxu0 0
    %5805 = vmatmul.mubr.bf16.gmra.mrb[0].mxu0 %v5770
    %v5806 = vpop.f32.mrb[0].mxu0
    %v5807 = vadd.f32 0.0, %v5806
    %v5808 = vpop.f32.mrb[0].mxu0
    %v5809 = vpop.f32.mrb[0].mxu0
    %v5810 = vadd.f32 0.0, %v5809
    %v5811 = vpop.f32.mrb[0].mxu0
    %5812 = vdwg.mxu0
    %v5814 = vsel %vm4828, %v5195, 0
    %5816 = vmatprep.subr.bf16.mxu0 0
    %5817 = vmatpush1.bf16.msra.mxu0 %v4073
    %5818 = vmatprep.subr.bf16.mxu0 0
    %5819 = vmatpush1.bf16.msra.mxu0 0
    %5820 = vmatprep.subr.bf16.mxu0 0
    %5821 = vmatpush1.bf16.msra.mxu0 0
    %5822 = vmatprep.subr.bf16.mxu0 0
    %5823 = vmatpush1.bf16.msra.mxu0 0
    %5824 = vmatprep.subr.bf16.mxu0 0
    %5825 = vmatpush1.bf16.msra.mxu0 0
    %5826 = vmatprep.subr.bf16.mxu0 0
    %5827 = vmatpush1.bf16.msra.mxu0 0
    %5828 = vmatprep.subr.bf16.mxu0 0
    %5829 = vmatpush1.bf16.msra.mxu0 0
    %5830 = vmatprep.subr.bf16.mxu0 0
    %5831 = vmatpush1.bf16.msra.mxu0 0
    %5832 = vmatprep.subr.bf16.mxu0 0
    %5833 = vmatpush1.bf16.msra.mxu0 0
    %5834 = vmatprep.subr.bf16.mxu0 0
    %5835 = vmatpush1.bf16.msra.mxu0 0
    %5836 = vmatprep.subr.bf16.mxu0 0
    %5837 = vmatpush1.bf16.msra.mxu0 0
    %5838 = vmatprep.subr.bf16.mxu0 0
    %5839 = vmatpush1.bf16.msra.mxu0 0
    %5840 = vmatprep.subr.bf16.mxu0 0
    %5841 = vmatpush1.bf16.msra.mxu0 0
    %5842 = vmatprep.subr.bf16.mxu0 0
    %5843 = vmatpush1.bf16.msra.mxu0 0
    %5844 = vmatprep.subr.bf16.mxu0 0
    %5845 = vmatpush1.bf16.msra.mxu0 0
    %5846 = vmatprep.subr.bf16.mxu0 0
    %5847 = vmatpush1.bf16.msra.mxu0 0
    %5848 = vmatprep.mubr.bf16.mxu0 0
    %5849 = vmatmul.mubr.bf16.gmra.mrb[0].mxu0 %v5814
    %v5850 = vpop.f32.mrb[0].mxu0
    %v5851 = vadd.f32 0.0, %v5850
    %v5852 = vpop.f32.mrb[0].mxu0
    %v5853 = vpop.f32.mrb[0].mxu0
    %v5854 = vadd.f32 0.0, %v5853
    %v5855 = vpop.f32.mrb[0].mxu0
    %5856 = vdwg.mxu0
    %v5858 = vsel %vm4828, %v5196, 0
    %5860 = vmatprep.subr.bf16.mxu0 0
    %5861 = vmatpush1.bf16.msra.mxu0 %v4074
    %5862 = vmatprep.subr.bf16.mxu0 0
    %5863 = vmatpush1.bf16.msra.mxu0 0
    %5864 = vmatprep.subr.bf16.mxu0 0
    %5865 = vmatpush1.bf16.msra.mxu0 0
    %5866 = vmatprep.subr.bf16.mxu0 0
    %5867 = vmatpush1.bf16.msra.mxu0 0
    %5868 = vmatprep.subr.bf16.mxu0 0
    %5869 = vmatpush1.bf16.msra.mxu0 0
    %5870 = vmatprep.subr.bf16.mxu0 0
    %5871 = vmatpush1.bf16.msra.mxu0 0
    %5872 = vmatprep.subr.bf16.mxu0 0
    %5873 = vmatpush1.bf16.msra.mxu0 0
    %5874 = vmatprep.subr.bf16.mxu0 0
    %5875 = vmatpush1.bf16.msra.mxu0 0
    %5876 = vmatprep.subr.bf16.mxu0 0
    %5877 = vmatpush1.bf16.msra.mxu0 0
    %5878 = vmatprep.subr.bf16.mxu0 0
    %5879 = vmatpush1.bf16.msra.mxu0 0
    %5880 = vmatprep.subr.bf16.mxu0 0
    %5881 = vmatpush1.bf16.msra.mxu0 0
    %5882 = vmatprep.subr.bf16.mxu0 0
    %5883 = vmatpush1.bf16.msra.mxu0 0
    %5884 = vmatprep.subr.bf16.mxu0 0
    %5885 = vmatpush1.bf16.msra.mxu0 0
    %5886 = vmatprep.subr.bf16.mxu0 0
    %5887 = vmatpush1.bf16.msra.mxu0 0
    %5888 = vmatprep.subr.bf16.mxu0 0
    %5889 = vmatpush1.bf16.msra.mxu0 0
    %5890 = vmatprep.subr.bf16.mxu0 0
    %5891 = vmatpush1.bf16.msra.mxu0 0
    %5892 = vmatprep.mubr.bf16.mxu0 0
    %5893 = vmatmul.mubr.bf16.gmra.mrb[0].mxu0 %v5858
    %v5894 = vpop.f32.mrb[0].mxu0
    %v5895 = vadd.f32 0.0, %v5894
    %v5896 = vpop.f32.mrb[0].mxu0
    %v5897 = vpop.f32.mrb[0].mxu0
    %v5898 = vadd.f32 0.0, %v5897
    %v5899 = vpop.f32.mrb[0].mxu0
    %5900 = vdwg.mxu0
    %v5901 = vcombine.low %v5235, %v5323
    %v5902 = vcombine.high %v5235, %v5323
    %v5904 = vunpack.c.l.s4 1983009808
    %v5905 = vunpack.c.0.s8 %v5904
    %v5906 = vlaneseq
    %v5907 = vshrl.u32 %v5906, 7
    %v5908 = vsub.s32 %v5905, %v5907
    %v5909 = vrot.slane %v5901, %v5908
    %v5911 = vunpack.c.l.s4 1983009808
    %v5912 = vunpack.c.0.s8 %v5911
    %v5913 = vlaneseq
    %v5914 = vshrl.u32 %v5913, 7
    %v5915 = vsub.s32 %v5912, %v5914
    %v5916 = vrot.slane %v5902, %v5915
    %v5917 = vcombine.low %v5279, %v5367
    %v5918 = vcombine.high %v5279, %v5367
    %v5920 = vunpack.c.l.s4 1983009808
    %v5921 = vunpack.c.0.s8 %v5920
    %v5922 = vlaneseq
    %v5923 = vshrl.u32 %v5922, 7
    %v5924 = vsub.s32 %v5921, %v5923
    %v5925 = vrot.slane %v5917, %v5924
    %v5927 = vunpack.c.l.s4 1983009808
    %v5928 = vunpack.c.0.s8 %v5927
    %v5929 = vlaneseq
    %v5930 = vshrl.u32 %v5929, 7
    %v5931 = vsub.s32 %v5928, %v5930
    %v5932 = vrot.slane %v5918, %v5931
    %v5933 = vcombine.low %v5909, %v5925
    %v5934 = vcombine.high %v5909, %v5925
    %v5936 = vunpack.c.l.s4 1934713408
    %v5937 = vunpack.c.0.s8 %v5936
    %v5938 = vlaneseq
    %v5939 = vshrl.u32 %v5938, 7
    %v5940 = vsub.s32 %v5937, %v5939
    %v5941 = vrot.slane %v5933, %v5940
    %v5943 = vunpack.c.l.s4 1934713408
    %v5944 = vunpack.c.0.s8 %v5943
    %v5945 = vlaneseq
    %v5946 = vshrl.u32 %v5945, 7
    %v5947 = vsub.s32 %v5944, %v5946
    %v5948 = vrot.slane %v5934, %v5947
    %v5949 = vcombine.low %v5916, %v5932
    %v5950 = vcombine.high %v5916, %v5932
    %v5952 = vunpack.c.l.s4 1934713408
    %v5953 = vunpack.c.0.s8 %v5952
    %v5954 = vlaneseq
    %v5955 = vshrl.u32 %v5954, 7
    %v5956 = vsub.s32 %v5953, %v5955
    %v5957 = vrot.slane %v5949, %v5956
    %v5959 = vunpack.c.l.s4 1934713408
    %v5960 = vunpack.c.0.s8 %v5959
    %v5961 = vlaneseq
    %v5962 = vshrl.u32 %v5961, 7
    %v5963 = vsub.s32 %v5960, %v5962
    %v5964 = vrot.slane %v5950, %v5963
    %v5965 = vcombine.high %v5941, 0.0
    %v5966 = vcombine.high %v5948, 0.0
    %v5967 = vcombine.high %v5957, 0.0
    %v5968 = vcombine.high %v5964, 0.0
    %v5969 = vcombine.low %v5238, %v5326
    %v5970 = vcombine.high %v5238, %v5326
    %v5972 = vunpack.c.l.s4 1983009808
    %v5973 = vunpack.c.0.s8 %v5972
    %v5974 = vlaneseq
    %v5975 = vshrl.u32 %v5974, 7
    %v5976 = vsub.s32 %v5973, %v5975
    %v5977 = vrot.slane %v5969, %v5976
    %v5979 = vunpack.c.l.s4 1983009808
    %v5980 = vunpack.c.0.s8 %v5979
    %v5981 = vlaneseq
    %v5982 = vshrl.u32 %v5981, 7
    %v5983 = vsub.s32 %v5980, %v5982
    %v5984 = vrot.slane %v5970, %v5983
    %v5985 = vcombine.low %v5282, %v5370
    %v5986 = vcombine.high %v5282, %v5370
    %v5988 = vunpack.c.l.s4 1983009808
    %v5989 = vunpack.c.0.s8 %v5988
    %v5990 = vlaneseq
    %v5991 = vshrl.u32 %v5990, 7
    %v5992 = vsub.s32 %v5989, %v5991
    %v5993 = vrot.slane %v5985, %v5992
    %v5995 = vunpack.c.l.s4 1983009808
    %v5996 = vunpack.c.0.s8 %v5995
    %v5997 = vlaneseq
    %v5998 = vshrl.u32 %v5997, 7
    %v5999 = vsub.s32 %v5996, %v5998
    %v6000 = vrot.slane %v5986, %v5999
    %v6001 = vcombine.low %v5977, %v5993
    %v6002 = vcombine.high %v5977, %v5993
    %v6004 = vunpack.c.l.s4 1934713408
    %v6005 = vunpack.c.0.s8 %v6004
    %v6006 = vlaneseq
    %v6007 = vshrl.u32 %v6006, 7
    %v6008 = vsub.s32 %v6005, %v6007
    %v6009 = vrot.slane %v6001, %v6008
    %v6011 = vunpack.c.l.s4 1934713408
    %v6012 = vunpack.c.0.s8 %v6011
    %v6013 = vlaneseq
    %v6014 = vshrl.u32 %v6013, 7
    %v6015 = vsub.s32 %v6012, %v6014
    %v6016 = vrot.slane %v6002, %v6015
    %v6017 = vcombine.low %v5984, %v6000
    %v6018 = vcombine.high %v5984, %v6000
    %v6020 = vunpack.c.l.s4 1934713408
    %v6021 = vunpack.c.0.s8 %v6020
    %v6022 = vlaneseq
    %v6023 = vshrl.u32 %v6022, 7
    %v6024 = vsub.s32 %v6021, %v6023
    %v6025 = vrot.slane %v6017, %v6024
    %v6027 = vunpack.c.l.s4 1934713408
    %v6028 = vunpack.c.0.s8 %v6027
    %v6029 = vlaneseq
    %v6030 = vshrl.u32 %v6029, 7
    %v6031 = vsub.s32 %v6028, %v6030
    %v6032 = vrot.slane %v6018, %v6031
    %v6033 = vcombine.high %v6009, 0.0
    %v6034 = vcombine.high %v6016, 0.0
    %v6035 = vcombine.high %v6025, 0.0
    %v6036 = vcombine.high %v6032, 0.0
    %v6037 = vcombine.low %v5411, %v5499
    %v6038 = vcombine.high %v5411, %v5499
    %v6040 = vunpack.c.l.s4 1983009808
    %v6041 = vunpack.c.0.s8 %v6040
    %v6042 = vlaneseq
    %v6043 = vshrl.u32 %v6042, 7
    %v6044 = vsub.s32 %v6041, %v6043
    %v6045 = vrot.slane %v6037, %v6044
    %v6047 = vunpack.c.l.s4 1983009808
    %v6048 = vunpack.c.0.s8 %v6047
    %v6049 = vlaneseq
    %v6050 = vshrl.u32 %v6049, 7
    %v6051 = vsub.s32 %v6048, %v6050
    %v6052 = vrot.slane %v6038, %v6051
    %v6053 = vcombine.low %v5455, %v5543
    %v6054 = vcombine.high %v5455, %v5543
    %v6056 = vunpack.c.l.s4 1983009808
    %v6057 = vunpack.c.0.s8 %v6056
    %v6058 = vlaneseq
    %v6059 = vshrl.u32 %v6058, 7
    %v6060 = vsub.s32 %v6057, %v6059
    %v6061 = vrot.slane %v6053, %v6060
    %v6063 = vunpack.c.l.s4 1983009808
    %v6064 = vunpack.c.0.s8 %v6063
    %v6065 = vlaneseq
    %v6066 = vshrl.u32 %v6065, 7
    %v6067 = vsub.s32 %v6064, %v6066
    %v6068 = vrot.slane %v6054, %v6067
    %v6069 = vcombine.low %v6045, %v6061
    %v6070 = vcombine.high %v6045, %v6061
    %v6072 = vunpack.c.l.s4 1934713408
    %v6073 = vunpack.c.0.s8 %v6072
    %v6074 = vlaneseq
    %v6075 = vshrl.u32 %v6074, 7
    %v6076 = vsub.s32 %v6073, %v6075
    %v6077 = vrot.slane %v6069, %v6076
    %v6079 = vunpack.c.l.s4 1934713408
    %v6080 = vunpack.c.0.s8 %v6079
    %v6081 = vlaneseq
    %v6082 = vshrl.u32 %v6081, 7
    %v6083 = vsub.s32 %v6080, %v6082
    %v6084 = vrot.slane %v6070, %v6083
    %v6085 = vcombine.low %v6052, %v6068
    %v6086 = vcombine.high %v6052, %v6068
    %v6088 = vunpack.c.l.s4 1934713408
    %v6089 = vunpack.c.0.s8 %v6088
    %v6090 = vlaneseq
    %v6091 = vshrl.u32 %v6090, 7
    %v6092 = vsub.s32 %v6089, %v6091
    %v6093 = vrot.slane %v6085, %v6092
    %v6095 = vunpack.c.l.s4 1934713408
    %v6096 = vunpack.c.0.s8 %v6095
    %v6097 = vlaneseq
    %v6098 = vshrl.u32 %v6097, 7
    %v6099 = vsub.s32 %v6096, %v6098
    %v6100 = vrot.slane %v6086, %v6099
    %v6101 = vcombine.high %v6077, 0.0
    %v6102 = vcombine.high %v6084, 0.0
    %v6103 = vcombine.high %v6093, 0.0
    %v6104 = vcombine.high %v6100, 0.0
    %v6105 = vcombine.low %v5414, %v5502
    %v6106 = vcombine.high %v5414, %v5502
    %v6108 = vunpack.c.l.s4 1983009808
    %v6109 = vunpack.c.0.s8 %v6108
    %v6110 = vlaneseq
    %v6111 = vshrl.u32 %v6110, 7
    %v6112 = vsub.s32 %v6109, %v6111
    %v6113 = vrot.slane %v6105, %v6112
    %v6115 = vunpack.c.l.s4 1983009808
    %v6116 = vunpack.c.0.s8 %v6115
    %v6117 = vlaneseq
    %v6118 = vshrl.u32 %v6117, 7
    %v6119 = vsub.s32 %v6116, %v6118
    %v6120 = vrot.slane %v6106, %v6119
    %v6121 = vcombine.low %v5458, %v5546
    %v6122 = vcombine.high %v5458, %v5546
    %v6124 = vunpack.c.l.s4 1983009808
    %v6125 = vunpack.c.0.s8 %v6124
    %v6126 = vlaneseq
    %v6127 = vshrl.u32 %v6126, 7
    %v6128 = vsub.s32 %v6125, %v6127
    %v6129 = vrot.slane %v6121, %v6128
    %v6131 = vunpack.c.l.s4 1983009808
    %v6132 = vunpack.c.0.s8 %v6131
    %v6133 = vlaneseq
    %v6134 = vshrl.u32 %v6133, 7
    %v6135 = vsub.s32 %v6132, %v6134
    %v6136 = vrot.slane %v6122, %v6135
    %v6137 = vcombine.low %v6113, %v6129
    %v6138 = vcombine.high %v6113, %v6129
    %v6140 = vunpack.c.l.s4 1934713408
    %v6141 = vunpack.c.0.s8 %v6140
    %v6142 = vlaneseq
    %v6143 = vshrl.u32 %v6142, 7
    %v6144 = vsub.s32 %v6141, %v6143
    %v6145 = vrot.slane %v6137, %v6144
    %v6147 = vunpack.c.l.s4 1934713408
    %v6148 = vunpack.c.0.s8 %v6147
    %v6149 = vlaneseq
    %v6150 = vshrl.u32 %v6149, 7
    %v6151 = vsub.s32 %v6148, %v6150
    %v6152 = vrot.slane %v6138, %v6151
    %v6153 = vcombine.low %v6120, %v6136
    %v6154 = vcombine.high %v6120, %v6136
    %v6156 = vunpack.c.l.s4 1934713408
    %v6157 = vunpack.c.0.s8 %v6156
    %v6158 = vlaneseq
    %v6159 = vshrl.u32 %v6158, 7
    %v6160 = vsub.s32 %v6157, %v6159
    %v6161 = vrot.slane %v6153, %v6160
    %v6163 = vunpack.c.l.s4 1934713408
    %v6164 = vunpack.c.0.s8 %v6163
    %v6165 = vlaneseq
    %v6166 = vshrl.u32 %v6165, 7
    %v6167 = vsub.s32 %v6164, %v6166
    %v6168 = vrot.slane %v6154, %v6167
    %v6169 = vcombine.high %v6145, 0.0
    %v6170 = vcombine.high %v6152, 0.0
    %v6171 = vcombine.high %v6161, 0.0
    %v6172 = vcombine.high %v6168, 0.0
    %v6173 = vcombine.low %v5587, %v5675
    %v6174 = vcombine.high %v5587, %v5675
    %v6176 = vunpack.c.l.s4 1983009808
    %v6177 = vunpack.c.0.s8 %v6176
    %v6178 = vlaneseq
    %v6179 = vshrl.u32 %v6178, 7
    %v6180 = vsub.s32 %v6177, %v6179
    %v6181 = vrot.slane %v6173, %v6180
    %v6183 = vunpack.c.l.s4 1983009808
    %v6184 = vunpack.c.0.s8 %v6183
    %v6185 = vlaneseq
    %v6186 = vshrl.u32 %v6185, 7
    %v6187 = vsub.s32 %v6184, %v6186
    %v6188 = vrot.slane %v6174, %v6187
    %v6189 = vcombine.low %v5631, %v5719
    %v6190 = vcombine.high %v5631, %v5719
    %v6192 = vunpack.c.l.s4 1983009808
    %v6193 = vunpack.c.0.s8 %v6192
    %v6194 = vlaneseq
    %v6195 = vshrl.u32 %v6194, 7
    %v6196 = vsub.s32 %v6193, %v6195
    %v6197 = vrot.slane %v6189, %v6196
    %v6199 = vunpack.c.l.s4 1983009808
    %v6200 = vunpack.c.0.s8 %v6199
    %v6201 = vlaneseq
    %v6202 = vshrl.u32 %v6201, 7
    %v6203 = vsub.s32 %v6200, %v6202
    %v6204 = vrot.slane %v6190, %v6203
    %v6205 = vcombine.low %v6181, %v6197
    %v6206 = vcombine.high %v6181, %v6197
    %v6208 = vunpack.c.l.s4 1934713408
    %v6209 = vunpack.c.0.s8 %v6208
    %v6210 = vlaneseq
    %v6211 = vshrl.u32 %v6210, 7
    %v6212 = vsub.s32 %v6209, %v6211
    %v6213 = vrot.slane %v6205, %v6212
    %v6215 = vunpack.c.l.s4 1934713408
    %v6216 = vunpack.c.0.s8 %v6215
    %v6217 = vlaneseq
    %v6218 = vshrl.u32 %v6217, 7
    %v6219 = vsub.s32 %v6216, %v6218
    %v6220 = vrot.slane %v6206, %v6219
    %v6221 = vcombine.low %v6188, %v6204
    %v6222 = vcombine.high %v6188, %v6204
    %v6224 = vunpack.c.l.s4 1934713408
    %v6225 = vunpack.c.0.s8 %v6224
    %v6226 = vlaneseq
    %v6227 = vshrl.u32 %v6226, 7
    %v6228 = vsub.s32 %v6225, %v6227
    %v6229 = vrot.slane %v6221, %v6228
    %v6231 = vunpack.c.l.s4 1934713408
    %v6232 = vunpack.c.0.s8 %v6231
    %v6233 = vlaneseq
    %v6234 = vshrl.u32 %v6233, 7
    %v6235 = vsub.s32 %v6232, %v6234
    %v6236 = vrot.slane %v6222, %v6235
    %v6237 = vcombine.high %v6213, 0.0
    %v6238 = vcombine.high %v6220, 0.0
    %v6239 = vcombine.high %v6229, 0.0
    %v6240 = vcombine.high %v6236, 0.0
    %v6241 = vcombine.low %v5590, %v5678
    %v6242 = vcombine.high %v5590, %v5678
    %v6244 = vunpack.c.l.s4 1983009808
    %v6245 = vunpack.c.0.s8 %v6244
    %v6246 = vlaneseq
    %v6247 = vshrl.u32 %v6246, 7
    %v6248 = vsub.s32 %v6245, %v6247
    %v6249 = vrot.slane %v6241, %v6248
    %v6251 = vunpack.c.l.s4 1983009808
    %v6252 = vunpack.c.0.s8 %v6251
    %v6253 = vlaneseq
    %v6254 = vshrl.u32 %v6253, 7
    %v6255 = vsub.s32 %v6252, %v6254
    %v6256 = vrot.slane %v6242, %v6255
    %v6257 = vcombine.low %v5634, %v5722
    %v6258 = vcombine.high %v5634, %v5722
    %v6260 = vunpack.c.l.s4 1983009808
    %v6261 = vunpack.c.0.s8 %v6260
    %v6262 = vlaneseq
    %v6263 = vshrl.u32 %v6262, 7
    %v6264 = vsub.s32 %v6261, %v6263
    %v6265 = vrot.slane %v6257, %v6264
    %v6267 = vunpack.c.l.s4 1983009808
    %v6268 = vunpack.c.0.s8 %v6267
    %v6269 = vlaneseq
    %v6270 = vshrl.u32 %v6269, 7
    %v6271 = vsub.s32 %v6268, %v6270
    %v6272 = vrot.slane %v6258, %v6271
    %v6273 = vcombine.low %v6249, %v6265
    %v6274 = vcombine.high %v6249, %v6265
    %v6276 = vunpack.c.l.s4 1934713408
    %v6277 = vunpack.c.0.s8 %v6276
    %v6278 = vlaneseq
    %v6279 = vshrl.u32 %v6278, 7
    %v6280 = vsub.s32 %v6277, %v6279
    %v6281 = vrot.slane %v6273, %v6280
    %v6283 = vunpack.c.l.s4 1934713408
    %v6284 = vunpack.c.0.s8 %v6283
    %v6285 = vlaneseq
    %v6286 = vshrl.u32 %v6285, 7
    %v6287 = vsub.s32 %v6284, %v6286
    %v6288 = vrot.slane %v6274, %v6287
    %v6289 = vcombine.low %v6256, %v6272
    %v6290 = vcombine.high %v6256, %v6272
    %v6292 = vunpack.c.l.s4 1934713408
    %v6293 = vunpack.c.0.s8 %v6292
    %v6294 = vlaneseq
    %v6295 = vshrl.u32 %v6294, 7
    %v6296 = vsub.s32 %v6293, %v6295
    %v6297 = vrot.slane %v6289, %v6296
    %v6299 = vunpack.c.l.s4 1934713408
    %v6300 = vunpack.c.0.s8 %v6299
    %v6301 = vlaneseq
    %v6302 = vshrl.u32 %v6301, 7
    %v6303 = vsub.s32 %v6300, %v6302
    %v6304 = vrot.slane %v6290, %v6303
    %v6305 = vcombine.high %v6281, 0.0
    %v6306 = vcombine.high %v6288, 0.0
    %v6307 = vcombine.high %v6297, 0.0
    %v6308 = vcombine.high %v6304, 0.0
    %v6309 = vcombine.low %v5763, %v5851
    %v6310 = vcombine.high %v5763, %v5851
    %v6312 = vunpack.c.l.s4 1983009808
    %v6313 = vunpack.c.0.s8 %v6312
    %v6314 = vlaneseq
    %v6315 = vshrl.u32 %v6314, 7
    %v6316 = vsub.s32 %v6313, %v6315
    %v6317 = vrot.slane %v6309, %v6316
    %v6319 = vunpack.c.l.s4 1983009808
    %v6320 = vunpack.c.0.s8 %v6319
    %v6321 = vlaneseq
    %v6322 = vshrl.u32 %v6321, 7
    %v6323 = vsub.s32 %v6320, %v6322
    %v6324 = vrot.slane %v6310, %v6323
    %v6325 = vcombine.low %v5807, %v5895
    %v6326 = vcombine.high %v5807, %v5895
    %v6328 = vunpack.c.l.s4 1983009808
    %v6329 = vunpack.c.0.s8 %v6328
    %v6330 = vlaneseq
    %v6331 = vshrl.u32 %v6330, 7
    %v6332 = vsub.s32 %v6329, %v6331
    %v6333 = vrot.slane %v6325, %v6332
    %v6335 = vunpack.c.l.s4 1983009808
    %v6336 = vunpack.c.0.s8 %v6335
    %v6337 = vlaneseq
    %v6338 = vshrl.u32 %v6337, 7
    %v6339 = vsub.s32 %v6336, %v6338
    %v6340 = vrot.slane %v6326, %v6339
    %v6341 = vcombine.low %v6317, %v6333
    %v6342 = vcombine.high %v6317, %v6333
    %v6344 = vunpack.c.l.s4 1934713408
    %v6345 = vunpack.c.0.s8 %v6344
    %v6346 = vlaneseq
    %v6347 = vshrl.u32 %v6346, 7
    %v6348 = vsub.s32 %v6345, %v6347
    %v6349 = vrot.slane %v6341, %v6348
    %v6351 = vunpack.c.l.s4 1934713408
    %v6352 = vunpack.c.0.s8 %v6351
    %v6353 = vlaneseq
    %v6354 = vshrl.u32 %v6353, 7
    %v6355 = vsub.s32 %v6352, %v6354
    %v6356 = vrot.slane %v6342, %v6355
    %v6357 = vcombine.low %v6324, %v6340
    %v6358 = vcombine.high %v6324, %v6340
    %v6360 = vunpack.c.l.s4 1934713408
    %v6361 = vunpack.c.0.s8 %v6360
    %v6362 = vlaneseq
    %v6363 = vshrl.u32 %v6362, 7
    %v6364 = vsub.s32 %v6361, %v6363
    %v6365 = vrot.slane %v6357, %v6364
    %v6367 = vunpack.c.l.s4 1934713408
    %v6368 = vunpack.c.0.s8 %v6367
    %v6369 = vlaneseq
    %v6370 = vshrl.u32 %v6369, 7
    %v6371 = vsub.s32 %v6368, %v6370
    %v6372 = vrot.slane %v6358, %v6371
    %v6373 = vcombine.high %v6349, 0.0
    %v6374 = vcombine.high %v6356, 0.0
    %v6375 = vcombine.high %v6365, 0.0
    %v6376 = vcombine.high %v6372, 0.0
    %v6377 = vcombine.low %v5766, %v5854
    %v6378 = vcombine.high %v5766, %v5854
    %v6380 = vunpack.c.l.s4 1983009808
    %v6381 = vunpack.c.0.s8 %v6380
    %v6382 = vlaneseq
    %v6383 = vshrl.u32 %v6382, 7
    %v6384 = vsub.s32 %v6381, %v6383
    %v6385 = vrot.slane %v6377, %v6384
    %v6387 = vunpack.c.l.s4 1983009808
    %v6388 = vunpack.c.0.s8 %v6387
    %v6389 = vlaneseq
    %v6390 = vshrl.u32 %v6389, 7
    %v6391 = vsub.s32 %v6388, %v6390
    %v6392 = vrot.slane %v6378, %v6391
    %v6393 = vcombine.low %v5810, %v5898
    %v6394 = vcombine.high %v5810, %v5898
    %v6396 = vunpack.c.l.s4 1983009808
    %v6397 = vunpack.c.0.s8 %v6396
    %v6398 = vlaneseq
    %v6399 = vshrl.u32 %v6398, 7
    %v6400 = vsub.s32 %v6397, %v6399
    %v6401 = vrot.slane %v6393, %v6400
    %v6403 = vunpack.c.l.s4 1983009808
    %v6404 = vunpack.c.0.s8 %v6403
    %v6405 = vlaneseq
    %v6406 = vshrl.u32 %v6405, 7
    %v6407 = vsub.s32 %v6404, %v6406
    %v6408 = vrot.slane %v6394, %v6407
    %v6409 = vcombine.low %v6385, %v6401
    %v6410 = vcombine.high %v6385, %v6401
    %v6412 = vunpack.c.l.s4 1934713408
    %v6413 = vunpack.c.0.s8 %v6412
    %v6414 = vlaneseq
    %v6415 = vshrl.u32 %v6414, 7
    %v6416 = vsub.s32 %v6413, %v6415
    %v6417 = vrot.slane %v6409, %v6416
    %v6419 = vunpack.c.l.s4 1934713408
    %v6420 = vunpack.c.0.s8 %v6419
    %v6421 = vlaneseq
    %v6422 = vshrl.u32 %v6421, 7
    %v6423 = vsub.s32 %v6420, %v6422
    %v6424 = vrot.slane %v6410, %v6423
    %v6425 = vcombine.low %v6392, %v6408
    %v6426 = vcombine.high %v6392, %v6408
    %v6428 = vunpack.c.l.s4 1934713408
    %v6429 = vunpack.c.0.s8 %v6428
    %v6430 = vlaneseq
    %v6431 = vshrl.u32 %v6430, 7
    %v6432 = vsub.s32 %v6429, %v6431
    %v6433 = vrot.slane %v6425, %v6432
    %v6435 = vunpack.c.l.s4 1934713408
    %v6436 = vunpack.c.0.s8 %v6435
    %v6437 = vlaneseq
    %v6438 = vshrl.u32 %v6437, 7
    %v6439 = vsub.s32 %v6436, %v6438
    %v6440 = vrot.slane %v6426, %v6439
    %v6441 = vcombine.high %v6417, 0.0
    %v6442 = vcombine.high %v6424, 0.0
    %v6443 = vcombine.high %v6433, 0.0
    %v6444 = vcombine.high %v6440, 0.0
    %v6445 = vcombine.low %v5941, %v5948
    %v6447 = vunpack.c.l.s4 1983009808
    %v6448 = vunpack.c.0.s8 %v6447
    %v6449 = vlaneseq
    %v6450 = vshrl.u32 %v6449, 7
    %v6451 = vsub.s32 %v6448, %v6450
    %v6452 = vrot.slane %v6445, %v6451
    %v6453 = vcombine.low %v5965, %v5966
    %v6455 = vunpack.c.l.s4 1983009808
    %v6456 = vunpack.c.0.s8 %v6455
    %v6457 = vlaneseq
    %v6458 = vshrl.u32 %v6457, 7
    %v6459 = vsub.s32 %v6456, %v6458
    %v6460 = vrot.slane %v6453, %v6459
    %v6461 = vcombine.low %v5957, %v5964
    %v6463 = vunpack.c.l.s4 1983009808
    %v6464 = vunpack.c.0.s8 %v6463
    %v6465 = vlaneseq
    %v6466 = vshrl.u32 %v6465, 7
    %v6467 = vsub.s32 %v6464, %v6466
    %v6468 = vrot.slane %v6461, %v6467
    %v6469 = vcombine.low %v5967, %v5968
    %v6471 = vunpack.c.l.s4 1983009808
    %v6472 = vunpack.c.0.s8 %v6471
    %v6473 = vlaneseq
    %v6474 = vshrl.u32 %v6473, 7
    %v6475 = vsub.s32 %v6472, %v6474
    %v6476 = vrot.slane %v6469, %v6475
    %v6477 = vcombine.low %v6452, %v6460
    %v6478 = vcombine.high %v6452, %v6460
    %v6480 = vunpack.c.l.s4 1934713408
    %v6481 = vunpack.c.0.s8 %v6480
    %v6482 = vlaneseq
    %v6483 = vshrl.u32 %v6482, 7
    %v6484 = vsub.s32 %v6481, %v6483
    %v6485 = vrot.slane %v6477, %v6484
    %v6487 = vunpack.c.l.s4 1934713408
    %v6488 = vunpack.c.0.s8 %v6487
    %v6489 = vlaneseq
    %v6490 = vshrl.u32 %v6489, 7
    %v6491 = vsub.s32 %v6488, %v6490
    %v6492 = vrot.slane %v6478, %v6491
    %v6493 = vcombine.low %v6468, %v6476
    %v6494 = vcombine.high %v6468, %v6476
    %v6496 = vunpack.c.l.s4 1934713408
    %v6497 = vunpack.c.0.s8 %v6496
    %v6498 = vlaneseq
    %v6499 = vshrl.u32 %v6498, 7
    %v6500 = vsub.s32 %v6497, %v6499
    %v6501 = vrot.slane %v6493, %v6500
    %v6503 = vunpack.c.l.s4 1934713408
    %v6504 = vunpack.c.0.s8 %v6503
    %v6505 = vlaneseq
    %v6506 = vshrl.u32 %v6505, 7
    %v6507 = vsub.s32 %v6504, %v6506
    %v6508 = vrot.slane %v6494, %v6507
    %v6509 = vcombine.low %v6485, %v6501
    %v6510 = vcombine.high %v6485, %v6501
    %v6511 = vcombine.low %v6492, %v6508
    %v6512 = vcombine.high %v6492, %v6508
    %v6513 = vcombine.low %v6009, %v6016
    %v6515 = vunpack.c.l.s4 1983009808
    %v6516 = vunpack.c.0.s8 %v6515
    %v6517 = vlaneseq
    %v6518 = vshrl.u32 %v6517, 7
    %v6519 = vsub.s32 %v6516, %v6518
    %v6520 = vrot.slane %v6513, %v6519
    %v6521 = vcombine.low %v6033, %v6034
    %v6523 = vunpack.c.l.s4 1983009808
    %v6524 = vunpack.c.0.s8 %v6523
    %v6525 = vlaneseq
    %v6526 = vshrl.u32 %v6525, 7
    %v6527 = vsub.s32 %v6524, %v6526
    %v6528 = vrot.slane %v6521, %v6527
    %v6529 = vcombine.low %v6025, %v6032
    %v6531 = vunpack.c.l.s4 1983009808
    %v6532 = vunpack.c.0.s8 %v6531
    %v6533 = vlaneseq
    %v6534 = vshrl.u32 %v6533, 7
    %v6535 = vsub.s32 %v6532, %v6534
    %v6536 = vrot.slane %v6529, %v6535
    %v6537 = vcombine.low %v6035, %v6036
    %v6539 = vunpack.c.l.s4 1983009808
    %v6540 = vunpack.c.0.s8 %v6539
    %v6541 = vlaneseq
    %v6542 = vshrl.u32 %v6541, 7
    %v6543 = vsub.s32 %v6540, %v6542
    %v6544 = vrot.slane %v6537, %v6543
    %v6545 = vcombine.low %v6520, %v6528
    %v6546 = vcombine.high %v6520, %v6528
    %v6548 = vunpack.c.l.s4 1934713408
    %v6549 = vunpack.c.0.s8 %v6548
    %v6550 = vlaneseq
    %v6551 = vshrl.u32 %v6550, 7
    %v6552 = vsub.s32 %v6549, %v6551
    %v6553 = vrot.slane %v6545, %v6552
    %v6555 = vunpack.c.l.s4 1934713408
    %v6556 = vunpack.c.0.s8 %v6555
    %v6557 = vlaneseq
    %v6558 = vshrl.u32 %v6557, 7
    %v6559 = vsub.s32 %v6556, %v6558
    %v6560 = vrot.slane %v6546, %v6559
    %v6561 = vcombine.low %v6536, %v6544
    %v6562 = vcombine.high %v6536, %v6544
    %v6564 = vunpack.c.l.s4 1934713408
    %v6565 = vunpack.c.0.s8 %v6564
    %v6566 = vlaneseq
    %v6567 = vshrl.u32 %v6566, 7
    %v6568 = vsub.s32 %v6565, %v6567
    %v6569 = vrot.slane %v6561, %v6568
    %v6571 = vunpack.c.l.s4 1934713408
    %v6572 = vunpack.c.0.s8 %v6571
    %v6573 = vlaneseq
    %v6574 = vshrl.u32 %v6573, 7
    %v6575 = vsub.s32 %v6572, %v6574
    %v6576 = vrot.slane %v6562, %v6575
    %v6577 = vcombine.low %v6553, %v6569
    %v6578 = vcombine.high %v6553, %v6569
    %v6579 = vcombine.low %v6560, %v6576
    %v6580 = vcombine.high %v6560, %v6576
    %v6581 = vcombine.low %v6077, %v6084
    %v6583 = vunpack.c.l.s4 1983009808
    %v6584 = vunpack.c.0.s8 %v6583
    %v6585 = vlaneseq
    %v6586 = vshrl.u32 %v6585, 7
    %v6587 = vsub.s32 %v6584, %v6586
    %v6588 = vrot.slane %v6581, %v6587
    %v6589 = vcombine.low %v6101, %v6102
    %v6591 = vunpack.c.l.s4 1983009808
    %v6592 = vunpack.c.0.s8 %v6591
    %v6593 = vlaneseq
    %v6594 = vshrl.u32 %v6593, 7
    %v6595 = vsub.s32 %v6592, %v6594
    %v6596 = vrot.slane %v6589, %v6595
    %v6597 = vcombine.low %v6093, %v6100
    %v6599 = vunpack.c.l.s4 1983009808
    %v6600 = vunpack.c.0.s8 %v6599
    %v6601 = vlaneseq
    %v6602 = vshrl.u32 %v6601, 7
    %v6603 = vsub.s32 %v6600, %v6602
    %v6604 = vrot.slane %v6597, %v6603
    %v6605 = vcombine.low %v6103, %v6104
    %v6607 = vunpack.c.l.s4 1983009808
    %v6608 = vunpack.c.0.s8 %v6607
    %v6609 = vlaneseq
    %v6610 = vshrl.u32 %v6609, 7
    %v6611 = vsub.s32 %v6608, %v6610
    %v6612 = vrot.slane %v6605, %v6611
    %v6613 = vcombine.low %v6588, %v6596
    %v6614 = vcombine.high %v6588, %v6596
    %v6616 = vunpack.c.l.s4 1934713408
    %v6617 = vunpack.c.0.s8 %v6616
    %v6618 = vlaneseq
    %v6619 = vshrl.u32 %v6618, 7
    %v6620 = vsub.s32 %v6617, %v6619
    %v6621 = vrot.slane %v6613, %v6620
    %v6623 = vunpack.c.l.s4 1934713408
    %v6624 = vunpack.c.0.s8 %v6623
    %v6625 = vlaneseq
    %v6626 = vshrl.u32 %v6625, 7
    %v6627 = vsub.s32 %v6624, %v6626
    %v6628 = vrot.slane %v6614, %v6627
    %v6629 = vcombine.low %v6604, %v6612
    %v6630 = vcombine.high %v6604, %v6612
    %v6632 = vunpack.c.l.s4 1934713408
    %v6633 = vunpack.c.0.s8 %v6632
    %v6634 = vlaneseq
    %v6635 = vshrl.u32 %v6634, 7
    %v6636 = vsub.s32 %v6633, %v6635
    %v6637 = vrot.slane %v6629, %v6636
    %v6639 = vunpack.c.l.s4 1934713408
    %v6640 = vunpack.c.0.s8 %v6639
    %v6641 = vlaneseq
    %v6642 = vshrl.u32 %v6641, 7
    %v6643 = vsub.s32 %v6640, %v6642
    %v6644 = vrot.slane %v6630, %v6643
    %v6645 = vcombine.low %v6621, %v6637
    %v6646 = vcombine.high %v6621, %v6637
    %v6647 = vcombine.low %v6628, %v6644
    %v6648 = vcombine.high %v6628, %v6644
    %v6649 = vcombine.low %v6145, %v6152
    %v6651 = vunpack.c.l.s4 1983009808
    %v6652 = vunpack.c.0.s8 %v6651
    %v6653 = vlaneseq
    %v6654 = vshrl.u32 %v6653, 7
    %v6655 = vsub.s32 %v6652, %v6654
    %v6656 = vrot.slane %v6649, %v6655
    %v6657 = vcombine.low %v6169, %v6170
    %v6659 = vunpack.c.l.s4 1983009808
    %v6660 = vunpack.c.0.s8 %v6659
    %v6661 = vlaneseq
    %v6662 = vshrl.u32 %v6661, 7
    %v6663 = vsub.s32 %v6660, %v6662
    %v6664 = vrot.slane %v6657, %v6663
    %v6665 = vcombine.low %v6161, %v6168
    %v6667 = vunpack.c.l.s4 1983009808
    %v6668 = vunpack.c.0.s8 %v6667
    %v6669 = vlaneseq
    %v6670 = vshrl.u32 %v6669, 7
    %v6671 = vsub.s32 %v6668, %v6670
    %v6672 = vrot.slane %v6665, %v6671
    %v6673 = vcombine.low %v6171, %v6172
    %v6675 = vunpack.c.l.s4 1983009808
    %v6676 = vunpack.c.0.s8 %v6675
    %v6677 = vlaneseq
    %v6678 = vshrl.u32 %v6677, 7
    %v6679 = vsub.s32 %v6676, %v6678
    %v6680 = vrot.slane %v6673, %v6679
    %v6681 = vcombine.low %v6656, %v6664
    %v6682 = vcombine.high %v6656, %v6664
    %v6684 = vunpack.c.l.s4 1934713408
    %v6685 = vunpack.c.0.s8 %v6684
    %v6686 = vlaneseq
    %v6687 = vshrl.u32 %v6686, 7
    %v6688 = vsub.s32 %v6685, %v6687
    %v6689 = vrot.slane %v6681, %v6688
    %v6691 = vunpack.c.l.s4 1934713408
    %v6692 = vunpack.c.0.s8 %v6691
    %v6693 = vlaneseq
    %v6694 = vshrl.u32 %v6693, 7
    %v6695 = vsub.s32 %v6692, %v6694
    %v6696 = vrot.slane %v6682, %v6695
    %v6697 = vcombine.low %v6672, %v6680
    %v6698 = vcombine.high %v6672, %v6680
    %v6700 = vunpack.c.l.s4 1934713408
    %v6701 = vunpack.c.0.s8 %v6700
    %v6702 = vlaneseq
    %v6703 = vshrl.u32 %v6702, 7
    %v6704 = vsub.s32 %v6701, %v6703
    %v6705 = vrot.slane %v6697, %v6704
    %v6707 = vunpack.c.l.s4 1934713408
    %v6708 = vunpack.c.0.s8 %v6707
    %v6709 = vlaneseq
    %v6710 = vshrl.u32 %v6709, 7
    %v6711 = vsub.s32 %v6708, %v6710
    %v6712 = vrot.slane %v6698, %v6711
    %v6713 = vcombine.low %v6689, %v6705
    %v6714 = vcombine.high %v6689, %v6705
    %v6715 = vcombine.low %v6696, %v6712
    %v6716 = vcombine.high %v6696, %v6712
    %v6717 = vcombine.low %v6213, %v6220
    %v6719 = vunpack.c.l.s4 1983009808
    %v6720 = vunpack.c.0.s8 %v6719
    %v6721 = vlaneseq
    %v6722 = vshrl.u32 %v6721, 7
    %v6723 = vsub.s32 %v6720, %v6722
    %v6724 = vrot.slane %v6717, %v6723
    %v6725 = vcombine.low %v6237, %v6238
    %v6727 = vunpack.c.l.s4 1983009808
    %v6728 = vunpack.c.0.s8 %v6727
    %v6729 = vlaneseq
    %v6730 = vshrl.u32 %v6729, 7
    %v6731 = vsub.s32 %v6728, %v6730
    %v6732 = vrot.slane %v6725, %v6731
    %v6733 = vcombine.low %v6229, %v6236
    %v6735 = vunpack.c.l.s4 1983009808
    %v6736 = vunpack.c.0.s8 %v6735
    %v6737 = vlaneseq
    %v6738 = vshrl.u32 %v6737, 7
    %v6739 = vsub.s32 %v6736, %v6738
    %v6740 = vrot.slane %v6733, %v6739
    %v6741 = vcombine.low %v6239, %v6240
    %v6743 = vunpack.c.l.s4 1983009808
    %v6744 = vunpack.c.0.s8 %v6743
    %v6745 = vlaneseq
    %v6746 = vshrl.u32 %v6745, 7
    %v6747 = vsub.s32 %v6744, %v6746
    %v6748 = vrot.slane %v6741, %v6747
    %v6749 = vcombine.low %v6724, %v6732
    %v6750 = vcombine.high %v6724, %v6732
    %v6752 = vunpack.c.l.s4 1934713408
    %v6753 = vunpack.c.0.s8 %v6752
    %v6754 = vlaneseq
    %v6755 = vshrl.u32 %v6754, 7
    %v6756 = vsub.s32 %v6753, %v6755
    %v6757 = vrot.slane %v6749, %v6756
    %v6759 = vunpack.c.l.s4 1934713408
    %v6760 = vunpack.c.0.s8 %v6759
    %v6761 = vlaneseq
    %v6762 = vshrl.u32 %v6761, 7
    %v6763 = vsub.s32 %v6760, %v6762
    %v6764 = vrot.slane %v6750, %v6763
    %v6765 = vcombine.low %v6740, %v6748
    %v6766 = vcombine.high %v6740, %v6748
    %v6768 = vunpack.c.l.s4 1934713408
    %v6769 = vunpack.c.0.s8 %v6768
    %v6770 = vlaneseq
    %v6771 = vshrl.u32 %v6770, 7
    %v6772 = vsub.s32 %v6769, %v6771
    %v6773 = vrot.slane %v6765, %v6772
    %v6775 = vunpack.c.l.s4 1934713408
    %v6776 = vunpack.c.0.s8 %v6775
    %v6777 = vlaneseq
    %v6778 = vshrl.u32 %v6777, 7
    %v6779 = vsub.s32 %v6776, %v6778
    %v6780 = vrot.slane %v6766, %v6779
    %v6781 = vcombine.low %v6757, %v6773
    %v6782 = vcombine.high %v6757, %v6773
    %v6783 = vcombine.low %v6764, %v6780
    %v6784 = vcombine.high %v6764, %v6780
    %v6785 = vcombine.low %v6281, %v6288
    %v6787 = vunpack.c.l.s4 1983009808
    %v6788 = vunpack.c.0.s8 %v6787
    %v6789 = vlaneseq
    %v6790 = vshrl.u32 %v6789, 7
    %v6791 = vsub.s32 %v6788, %v6790
    %v6792 = vrot.slane %v6785, %v6791
    %v6793 = vcombine.low %v6305, %v6306
    %v6795 = vunpack.c.l.s4 1983009808
    %v6796 = vunpack.c.0.s8 %v6795
    %v6797 = vlaneseq
    %v6798 = vshrl.u32 %v6797, 7
    %v6799 = vsub.s32 %v6796, %v6798
    %v6800 = vrot.slane %v6793, %v6799
    %v6801 = vcombine.low %v6297, %v6304
    %v6803 = vunpack.c.l.s4 1983009808
    %v6804 = vunpack.c.0.s8 %v6803
    %v6805 = vlaneseq
    %v6806 = vshrl.u32 %v6805, 7
    %v6807 = vsub.s32 %v6804, %v6806
    %v6808 = vrot.slane %v6801, %v6807
    %v6809 = vcombine.low %v6307, %v6308
    %v6811 = vunpack.c.l.s4 1983009808
    %v6812 = vunpack.c.0.s8 %v6811
    %v6813 = vlaneseq
    %v6814 = vshrl.u32 %v6813, 7
    %v6815 = vsub.s32 %v6812, %v6814
    %v6816 = vrot.slane %v6809, %v6815
    %v6817 = vcombine.low %v6792, %v6800
    %v6818 = vcombine.high %v6792, %v6800
    %v6820 = vunpack.c.l.s4 1934713408
    %v6821 = vunpack.c.0.s8 %v6820
    %v6822 = vlaneseq
    %v6823 = vshrl.u32 %v6822, 7
    %v6824 = vsub.s32 %v6821, %v6823
    %v6825 = vrot.slane %v6817, %v6824
    %v6827 = vunpack.c.l.s4 1934713408
    %v6828 = vunpack.c.0.s8 %v6827
    %v6829 = vlaneseq
    %v6830 = vshrl.u32 %v6829, 7
    %v6831 = vsub.s32 %v6828, %v6830
    %v6832 = vrot.slane %v6818, %v6831
    %v6833 = vcombine.low %v6808, %v6816
    %v6834 = vcombine.high %v6808, %v6816
    %v6836 = vunpack.c.l.s4 1934713408
    %v6837 = vunpack.c.0.s8 %v6836
    %v6838 = vlaneseq
    %v6839 = vshrl.u32 %v6838, 7
    %v6840 = vsub.s32 %v6837, %v6839
    %v6841 = vrot.slane %v6833, %v6840
    %v6843 = vunpack.c.l.s4 1934713408
    %v6844 = vunpack.c.0.s8 %v6843
    %v6845 = vlaneseq
    %v6846 = vshrl.u32 %v6845, 7
    %v6847 = vsub.s32 %v6844, %v6846
    %v6848 = vrot.slane %v6834, %v6847
    %v6849 = vcombine.low %v6825, %v6841
    %v6850 = vcombine.high %v6825, %v6841
    %v6851 = vcombine.low %v6832, %v6848
    %v6852 = vcombine.high %v6832, %v6848
    %v6853 = vcombine.low %v6349, %v6356
    %v6855 = vunpack.c.l.s4 1983009808
    %v6856 = vunpack.c.0.s8 %v6855
    %v6857 = vlaneseq
    %v6858 = vshrl.u32 %v6857, 7
    %v6859 = vsub.s32 %v6856, %v6858
    %v6860 = vrot.slane %v6853, %v6859
    %v6861 = vcombine.low %v6373, %v6374
    %v6863 = vunpack.c.l.s4 1983009808
    %v6864 = vunpack.c.0.s8 %v6863
    %v6865 = vlaneseq
    %v6866 = vshrl.u32 %v6865, 7
    %v6867 = vsub.s32 %v6864, %v6866
    %v6868 = vrot.slane %v6861, %v6867
    %v6869 = vcombine.low %v6365, %v6372
    %v6871 = vunpack.c.l.s4 1983009808
    %v6872 = vunpack.c.0.s8 %v6871
    %v6873 = vlaneseq
    %v6874 = vshrl.u32 %v6873, 7
    %v6875 = vsub.s32 %v6872, %v6874
    %v6876 = vrot.slane %v6869, %v6875
    %v6877 = vcombine.low %v6375, %v6376
    %v6879 = vunpack.c.l.s4 1983009808
    %v6880 = vunpack.c.0.s8 %v6879
    %v6881 = vlaneseq
    %v6882 = vshrl.u32 %v6881, 7
    %v6883 = vsub.s32 %v6880, %v6882
    %v6884 = vrot.slane %v6877, %v6883
    %v6885 = vcombine.low %v6860, %v6868
    %v6886 = vcombine.high %v6860, %v6868
    %v6888 = vunpack.c.l.s4 1934713408
    %v6889 = vunpack.c.0.s8 %v6888
    %v6890 = vlaneseq
    %v6891 = vshrl.u32 %v6890, 7
    %v6892 = vsub.s32 %v6889, %v6891
    %v6893 = vrot.slane %v6885, %v6892
    %v6895 = vunpack.c.l.s4 1934713408
    %v6896 = vunpack.c.0.s8 %v6895
    %v6897 = vlaneseq
    %v6898 = vshrl.u32 %v6897, 7
    %v6899 = vsub.s32 %v6896, %v6898
    %v6900 = vrot.slane %v6886, %v6899
    %v6901 = vcombine.low %v6876, %v6884
    %v6902 = vcombine.high %v6876, %v6884
    %v6904 = vunpack.c.l.s4 1934713408
    %v6905 = vunpack.c.0.s8 %v6904
    %v6906 = vlaneseq
    %v6907 = vshrl.u32 %v6906, 7
    %v6908 = vsub.s32 %v6905, %v6907
    %v6909 = vrot.slane %v6901, %v6908
    %v6911 = vunpack.c.l.s4 1934713408
    %v6912 = vunpack.c.0.s8 %v6911
    %v6913 = vlaneseq
    %v6914 = vshrl.u32 %v6913, 7
    %v6915 = vsub.s32 %v6912, %v6914
    %v6916 = vrot.slane %v6902, %v6915
    %v6917 = vcombine.low %v6893, %v6909
    %v6918 = vcombine.high %v6893, %v6909
    %v6919 = vcombine.low %v6900, %v6916
    %v6920 = vcombine.high %v6900, %v6916
    %v6921 = vcombine.low %v6417, %v6424
    %v6923 = vunpack.c.l.s4 1983009808
    %v6924 = vunpack.c.0.s8 %v6923
    %v6925 = vlaneseq
    %v6926 = vshrl.u32 %v6925, 7
    %v6927 = vsub.s32 %v6924, %v6926
    %v6928 = vrot.slane %v6921, %v6927
    %v6929 = vcombine.low %v6441, %v6442
    %v6931 = vunpack.c.l.s4 1983009808
    %v6932 = vunpack.c.0.s8 %v6931
    %v6933 = vlaneseq
    %v6934 = vshrl.u32 %v6933, 7
    %v6935 = vsub.s32 %v6932, %v6934
    %v6936 = vrot.slane %v6929, %v6935
    %v6937 = vcombine.low %v6433, %v6440
    %v6939 = vunpack.c.l.s4 1983009808
    %v6940 = vunpack.c.0.s8 %v6939
    %v6941 = vlaneseq
    %v6942 = vshrl.u32 %v6941, 7
    %v6943 = vsub.s32 %v6940, %v6942
    %v6944 = vrot.slane %v6937, %v6943
    %v6945 = vcombine.low %v6443, %v6444
    %v6947 = vunpack.c.l.s4 1983009808
    %v6948 = vunpack.c.0.s8 %v6947
    %v6949 = vlaneseq
    %v6950 = vshrl.u32 %v6949, 7
    %v6951 = vsub.s32 %v6948, %v6950
    %v6952 = vrot.slane %v6945, %v6951
    %v6953 = vcombine.low %v6928, %v6936
    %v6954 = vcombine.high %v6928, %v6936
    %v6956 = vunpack.c.l.s4 1934713408
    %v6957 = vunpack.c.0.s8 %v6956
    %v6958 = vlaneseq
    %v6959 = vshrl.u32 %v6958, 7
    %v6960 = vsub.s32 %v6957, %v6959
    %v6961 = vrot.slane %v6953, %v6960
    %v6963 = vunpack.c.l.s4 1934713408
    %v6964 = vunpack.c.0.s8 %v6963
    %v6965 = vlaneseq
    %v6966 = vshrl.u32 %v6965, 7
    %v6967 = vsub.s32 %v6964, %v6966
    %v6968 = vrot.slane %v6954, %v6967
    %v6969 = vcombine.low %v6944, %v6952
    %v6970 = vcombine.high %v6944, %v6952
    %v6972 = vunpack.c.l.s4 1934713408
    %v6973 = vunpack.c.0.s8 %v6972
    %v6974 = vlaneseq
    %v6975 = vshrl.u32 %v6974, 7
    %v6976 = vsub.s32 %v6973, %v6975
    %v6977 = vrot.slane %v6969, %v6976
    %v6979 = vunpack.c.l.s4 1934713408
    %v6980 = vunpack.c.0.s8 %v6979
    %v6981 = vlaneseq
    %v6982 = vshrl.u32 %v6981, 7
    %v6983 = vsub.s32 %v6980, %v6982
    %v6984 = vrot.slane %v6970, %v6983
    %v6985 = vcombine.low %v6961, %v6977
    %v6986 = vcombine.high %v6961, %v6977
    %v6987 = vcombine.low %v6968, %v6984
    %v6988 = vcombine.high %v6968, %v6984
    %6997 = vrot.lane.b32.xlu0 %v6510, 32
    %v6998 = vpop.permute.xlu0 %6997
    %6999 = vrot.lane.b32.xlu0 %v6578, 32
    %v7000 = vpop.permute.xlu0 %6999
    %7001 = vrot.lane.b32.xlu0 %v6646, 32
    %v7002 = vpop.permute.xlu0 %7001
    %7003 = vrot.lane.b32.xlu0 %v6714, 32
    %v7004 = vpop.permute.xlu0 %7003
    %7005 = vrot.lane.b32.xlu0 %v6782, 32
    %v7006 = vpop.permute.xlu0 %7005
    %7007 = vrot.lane.b32.xlu0 %v6850, 32
    %v7008 = vpop.permute.xlu0 %7007
    %7009 = vrot.lane.b32.xlu0 %v6918, 32
    %v7010 = vpop.permute.xlu0 %7009
    %7011 = vrot.lane.b32.xlu0 %v6986, 32
    %v7012 = vpop.permute.xlu0 %7011
    %7029 = vrot.lane.b32.xlu0 %v6511, 64
    %v7030 = vpop.permute.xlu0 %7029
    %7031 = vrot.lane.b32.xlu0 %v6579, 64
    %v7032 = vpop.permute.xlu0 %7031
    %7033 = vrot.lane.b32.xlu0 %v6647, 64
    %v7034 = vpop.permute.xlu0 %7033
    %7035 = vrot.lane.b32.xlu0 %v6715, 64
    %v7036 = vpop.permute.xlu0 %7035
    %7037 = vrot.lane.b32.xlu0 %v6783, 64
    %v7038 = vpop.permute.xlu0 %7037
    %7039 = vrot.lane.b32.xlu0 %v6851, 64
    %v7040 = vpop.permute.xlu0 %7039
    %7041 = vrot.lane.b32.xlu0 %v6919, 64
    %v7042 = vpop.permute.xlu0 %7041
    %7043 = vrot.lane.b32.xlu0 %v6987, 64
    %v7044 = vpop.permute.xlu0 %7043
    %7061 = vrot.lane.b32.xlu0 %v6512, 96
    %v7062 = vpop.permute.xlu0 %7061
    %7063 = vrot.lane.b32.xlu0 %v6580, 96
    %v7064 = vpop.permute.xlu0 %7063
    %7065 = vrot.lane.b32.xlu0 %v6648, 96
    %v7066 = vpop.permute.xlu0 %7065
    %7067 = vrot.lane.b32.xlu0 %v6716, 96
    %v7068 = vpop.permute.xlu0 %7067
    %7069 = vrot.lane.b32.xlu0 %v6784, 96
    %v7070 = vpop.permute.xlu0 %7069
    %7071 = vrot.lane.b32.xlu0 %v6852, 96
    %v7072 = vpop.permute.xlu0 %7071
    %7073 = vrot.lane.b32.xlu0 %v6920, 96
    %v7074 = vpop.permute.xlu0 %7073
    %7075 = vrot.lane.b32.xlu0 %v6988, 96
    %v7076 = vpop.permute.xlu0 %7075
    %v7085 = vsel %vm4075, %v6509, %v6998
    %v7086 = vsel %vm4075, %v6577, %v7000
    %v7087 = vsel %vm4075, %v6645, %v7002
    %v7088 = vsel %vm4075, %v6713, %v7004
    %v7089 = vsel %vm4075, %v6781, %v7006
    %v7090 = vsel %vm4075, %v6849, %v7008
    %v7091 = vsel %vm4075, %v6917, %v7010
    %v7092 = vsel %vm4075, %v6985, %v7012
    %vm7093 = vcmask 523264
    %v7094 = vsel %vm7093, %v7085, %v7030
    %v7095 = vsel %vm7093, %v7086, %v7032
    %v7096 = vsel %vm7093, %v7087, %v7034
    %v7097 = vsel %vm7093, %v7088, %v7036
    %v7098 = vsel %vm7093, %v7089, %v7038
    %v7099 = vsel %vm7093, %v7090, %v7040
    %v7100 = vsel %vm7093, %v7091, %v7042
    %v7101 = vsel %vm7093, %v7092, %v7044
    %vm7102 = vcmask 785408
    %v7103 = vsel %vm7102, %v7094, %v7062
    %v7104 = vsel %vm7102, %v7095, %v7064
    %v7105 = vsel %vm7102, %v7096, %v7066
    %v7106 = vsel %vm7102, %v7097, %v7068
    %v7107 = vsel %vm7102, %v7098, %v7070
    %v7108 = vsel %vm7102, %v7099, %v7072
    %v7109 = vsel %vm7102, %v7100, %v7074
    %v7110 = vsel %vm7102, %v7101, %v7076
    %v7111 = vpack.c.bf16 %v7104, %v7103
    %v7112 = vpack.c.bf16 %v7106, %v7105
    %v7113 = vpack.c.bf16 %v7108, %v7107
    %v7114 = vpack.c.bf16 %v7110, %v7109
    %v7115 = vld [vmem:[#allocation7] sm:$0xf]
    %v7116 = vld [vmem:[#allocation7 + $0x4] sm:$0xf]
    %v7117 = vld [vmem:[#allocation7 + $0x8] sm:$0xf]
    %v7118 = vld [vmem:[#allocation7 + $0xc] sm:$0xf]
    %v7119 = vld [vmem:[#allocation7 + $0x10] sm:$0xf]
    %v7120 = vld [vmem:[#allocation7 + $0x14] sm:$0xf]
    %v7121 = vld [vmem:[#allocation7 + $0x18] sm:$0xf]
    %v7122 = vld [vmem:[#allocation7 + $0x1c] sm:$0xf]
    %v7123 = vld [vmem:[#allocation7 + $0x20] sm:$0xf]
    %v7124 = vld [vmem:[#allocation7 + $0x24] sm:$0xf]
    %v7125 = vld [vmem:[#allocation7 + $0x28] sm:$0xf]
    %v7126 = vld [vmem:[#allocation7 + $0x2c] sm:$0xf]
    %v7127 = vld [vmem:[#allocation7 + $0x30] sm:$0xf]
    %v7128 = vld [vmem:[#allocation7 + $0x34] sm:$0xf]
    %v7129 = vld [vmem:[#allocation7 + $0x38] sm:$0xf]
    %v7130 = vld [vmem:[#allocation7 + $0x3c] sm:$0xf]
    %v7131 = vld [vmem:[%s6] sm:$0x1]
    %v7133 = vlaneseq
    %v7134 = vshrl.u32 %v7133, 7
    %v7135 = vsub.s32 0, %v7134
    %v7136 = vrot.slane %v7131, %v7135
    %v7154 = vunpack.c.l.b16 %v7115
    %v7155 = vunpack.c.l.b16 %v7116
    %v7156 = vunpack.c.l.b16 %v7117
    %v7157 = vunpack.c.l.b16 %v7118
    %v7158 = vunpack.c.l.b16 %v7119
    %v7159 = vunpack.c.l.b16 %v7120
    %v7160 = vunpack.c.l.b16 %v7121
    %v7161 = vunpack.c.l.b16 %v7122
    %v7162 = vunpack.c.l.b16 %v7123
    %v7163 = vunpack.c.l.b16 %v7124
    %v7164 = vunpack.c.l.b16 %v7125
    %v7165 = vunpack.c.l.b16 %v7126
    %v7166 = vunpack.c.l.b16 %v7127
    %v7167 = vunpack.c.l.b16 %v7128
    %v7168 = vunpack.c.l.b16 %v7129
    %v7169 = vunpack.c.l.b16 %v7130
    %v7170 = vpack.c.b16 %v7155, %v7154
    %v7171 = vpack.c.b16 %v7157, %v7156
    %v7172 = vpack.c.b16 %v7159, %v7158
    %v7173 = vpack.c.b16 %v7161, %v7160
    %v7174 = vpack.c.b16 %v7163, %v7162
    %v7175 = vpack.c.b16 %v7165, %v7164
    %v7176 = vpack.c.b16 %v7167, %v7166
    %v7177 = vpack.c.b16 %v7169, %v7168
    %7186 = vmatprep.subr.bf16.mxu0 0
    %7187 = vmatpush1.bf16.msra.mxu0 %v7170
    %7188 = vmatprep.subr.bf16.mxu0 0
    %7189 = vmatpush1.bf16.msra.mxu0 %v7171
    %7190 = vmatprep.subr.bf16.mxu0 0
    %7191 = vmatpush1.bf16.msra.mxu0 %v7172
    %7192 = vmatprep.subr.bf16.mxu0 0
    %7193 = vmatpush1.bf16.msra.mxu0 %v7173
    %7194 = vmatprep.subr.bf16.mxu0 0
    %7195 = vmatpush1.bf16.msra.mxu0 %v7174
    %7196 = vmatprep.subr.bf16.mxu0 0
    %7197 = vmatpush1.bf16.msra.mxu0 %v7175
    %7198 = vmatprep.subr.bf16.mxu0 0
    %7199 = vmatpush1.bf16.msra.mxu0 %v7176
    %7200 = vmatprep.subr.bf16.mxu0 0
    %7201 = vmatpush1.bf16.msra.mxu0 %v7177
    %7202 = vmatprep.subr.bf16.mxu0 0
    %7203 = vmatpush1.bf16.msra.mxu0 0
    %7204 = vmatprep.subr.bf16.mxu0 0
    %7205 = vmatpush1.bf16.msra.mxu0 0
    %7206 = vmatprep.subr.bf16.mxu0 0
    %7207 = vmatpush1.bf16.msra.mxu0 0
    %7208 = vmatprep.subr.bf16.mxu0 0
    %7209 = vmatpush1.bf16.msra.mxu0 0
    %7210 = vmatprep.subr.bf16.mxu0 0
    %7211 = vmatpush1.bf16.msra.mxu0 0
    %7212 = vmatprep.subr.bf16.mxu0 0
    %7213 = vmatpush1.bf16.msra.mxu0 0
    %7214 = vmatprep.subr.bf16.mxu0 0
    %7215 = vmatpush1.bf16.msra.mxu0 0
    %7216 = vmatprep.subr.bf16.mxu0 0
    %7217 = vmatpush1.bf16.msra.mxu0 0
    %7218 = vmatprep.mubr.bf16.mxu0 0
    %7219 = vmatmul.mubr.bf16.gmra.mrb[0].mxu0 %v7111
    %v7220 = vpop.f32.mrb[0].mxu0
    %v7221 = vadd.f32 %v7136, %v7220
    %v7222 = vpop.f32.mrb[0].mxu0
    %v7223 = vpop.f32.mrb[0].mxu0
    %v7224 = vadd.f32 %v7136, %v7223
    %v7225 = vpop.f32.mrb[0].mxu0
    %7226 = vmatprep.mubr.bf16.mxu0 0
    %7227 = vmatmul.mubr.bf16.gmra.mrb[0].mxu0 %v7112
    %v7228 = vpop.f32.mrb[0].mxu0
    %v7229 = vadd.f32 %v7136, %v7228
    %v7230 = vpop.f32.mrb[0].mxu0
    %v7231 = vpop.f32.mrb[0].mxu0
    %v7232 = vadd.f32 %v7136, %v7231
    %v7233 = vpop.f32.mrb[0].mxu0
    %7234 = vmatprep.mubr.bf16.mxu0 0
    %7235 = vmatmul.mubr.bf16.gmra.mrb[0].mxu0 %v7113
    %v7236 = vpop.f32.mrb[0].mxu0
    %v7237 = vadd.f32 %v7136, %v7236
    %v7238 = vpop.f32.mrb[0].mxu0
    %v7239 = vpop.f32.mrb[0].mxu0
    %v7240 = vadd.f32 %v7136, %v7239
    %v7241 = vpop.f32.mrb[0].mxu0
    %7242 = vmatprep.mubr.bf16.mxu0 0
    %7243 = vmatmul.mubr.bf16.gmra.mrb[0].mxu0 %v7114
    %v7244 = vpop.f32.mrb[0].mxu0
    %v7245 = vadd.f32 %v7136, %v7244
    %v7246 = vpop.f32.mrb[0].mxu0
    %v7247 = vpop.f32.mrb[0].mxu0
    %v7248 = vadd.f32 %v7136, %v7247
    %v7249 = vpop.f32.mrb[0].mxu0
    %7250 = vdwg.mxu0
    %v7251 = vadd.f32 %v69, %v7221
    %v7252 = vadd.f32 %v70, %v7224
    %v7253 = vadd.f32 %v71, %v7229
    %v7254 = vadd.f32 %v72, %v7232
    %v7255 = vadd.f32 %v73, %v7237
    %v7256 = vadd.f32 %v74, %v7240
    %v7257 = vadd.f32 %v75, %v7245
    %v7258 = vadd.f32 %v76, %v7248
    %7259 = vst [vmem:[#allocation8] sm:$0xff] %v7251
    %7260 = vst [vmem:[#allocation8 + $0x8] sm:$0xff] %v7252
    %7261 = vst [vmem:[#allocation8 + $0x10] sm:$0xff] %v7253
    %7262 = vst [vmem:[#allocation8 + $0x18] sm:$0xff] %v7254
    %7263 = vst [vmem:[#allocation8 + $0x20] sm:$0xff] %v7255
    %7264 = vst [vmem:[#allocation8 + $0x28] sm:$0xff] %v7256
    %7265 = vst [vmem:[#allocation8 + $0x30] sm:$0xff] %v7257
    %7266 = vst [vmem:[#allocation8 + $0x38] sm:$0xff] %v7258
    // Predicated region
    $region42: #{tpu_custom_call.1} parent=1 // pred_check
      _
    $region43: #{tpu_custom_call.1} parent=1 // pred_check_branch
      %7268 = sbr.rel (0) target = $region45
    $region44: #{tpu_custom_call.1} parent=1 // pred_region
      %s7270 = ssub.s32 1024, 1024
      %7271 = vsyncadd [#allocation4], %s7270
      %s7272 = sshll.u32 [#allocation8], 4
      %s7273 = int_to_ptr.vmem [resolvable:$true] %s7272
      %7278 = dma.vmem_to_hbm [thread:$0]  %s7273, 1024, %s7, [#allocation4], 128, 128, 8
    $region45: #{tpu_custom_call.1} parent=1 // pred_fallthru
      _
    // Predicated region
    $region46: #{tpu_custom_call.1} parent=1 // pred_check
      _
    $region47: #{tpu_custom_call.1} parent=1 // pred_check_branch
      %7280 = sbr.rel (0) target = $region49
    $region48: #{tpu_custom_call.1} parent=1 // pred_region
      %7281 = dma.done [#allocation4], 1024
    $region49: #{tpu_custom_call.1} parent=1 // pred_fallthru
      _
    %7282 = vsyncpa [#allocation3], 1
    %7283 = vsyncpa [#allocation6], 1
    %7284 = vsyncpa [#allocation4], 1

</llo_original>
